<compile_context>
chip_gen: v6e
topology: v6e:2x2x1
jax: 0.10.0
libtpu: 0.0.40
codegen_flags: <defaults>
</compile_context>

<pallas_src>
import functools

import jax
import jax.numpy as jnp
from jax import lax
from jax.experimental import pallas as pl
from jax.experimental.pallas import tpu as pltpu


# ----------------------------------------------------------------------------
# In-kernel LSTM cell.  Gate layout is [i, f, o, g] (repacked host-side).
# ----------------------------------------------------------------------------
def _lstm_cell(xp_row, w_hh, h_prev, c_prev, H):
    """One LSTM cell step.

    xp_row: (B, 4H) f32   precomputed x_t @ W_ih.T + b_ih + b_hh
    w_hh:   (H, 4H) bf16
    h_prev, c_prev: (B, H) f32 (loop-carried in vregs)
    """
    gates = xp_row + jnp.dot(h_prev.astype(w_hh.dtype), w_hh,
                             preferred_element_type=jnp.float32)     # (B, 4H) f32
    ifo = jax.nn.sigmoid(gates[:, :3 * H])        # one EUP call over 3H lanes
    g = jnp.tanh(gates[:, 3 * H:])                # one EUP call over H lanes
    i_g = ifo[:, 0 * H:1 * H]
    f_g = ifo[:, 1 * H:2 * H]
    o_g = ifo[:, 2 * H:3 * H]
    c_new = f_g * c_prev + i_g * g
    h_new = o_g * jnp.tanh(c_new)
    return h_new, c_new


# ----------------------------------------------------------------------------
# Pallas kernels
# ----------------------------------------------------------------------------
def _bilstm_seq_kernel(x_ref, w_ih_ref, w_hh_ref, b_ref, out_ref, xp_ref,
                       *, T, B, H, unroll):
    """One bidirectional LSTM layer over the full sequence, single launch.

    x_ref:    (T*B, D_in) bf16   (batch already padded to a multiple of 8)
    w_ih_ref: (D_in, 8H)  bf16   [W_ih_fwd.T | W_ih_bwd.T], gate order [i,f,o,g]
    w_hh_ref: (2, H, 4H)  bf16   per-direction recurrent weights
    b_ref:    (1, 8H)     f32    (b_ih + b_hh) for both directions
    out_ref:  (T, B, 2H)  bf16   per-step [h_fwd(t) | h_bwd(t)]
    xp_ref:   (T*B, 8H)   f32    scratch -- hoisted input projection
    """
    # Hoisted, time-independent input projection (one big MXU matmul), bias folded in.
    xp_ref[...] = (
        jnp.dot(x_ref[...], w_ih_ref[...], preferred_element_type=jnp.float32)
        + b_ref[...])

    # Loop-invariant recurrent weights stay in vregs across the whole time loop.
    w_hh_f = w_hh_ref[0]
    w_hh_b = w_hh_ref[1]

    def step(t, carry):
        h_f, c_f, h_b, c_b = carry
        s = T - 1 - t                                       # backward time index
        row_f = xp_ref[pl.ds(pl.multiple_of(t * B, B), B), 0:4 * H]
        row_b = xp_ref[pl.ds(pl.multiple_of(s * B, B), B), 4 * H:8 * H]
        h_f, c_f = _lstm_cell(row_f, w_hh_f, h_f, c_f, H)
        h_b, c_b = _lstm_cell(row_b, w_hh_b, h_b, c_b, H)
        out_ref[t, :, 0:H] = h_f.astype(out_ref.dtype)      # direct store, no concat
        out_ref[s, :, H:2 * H] = h_b.astype(out_ref.dtype)
        return (h_f, c_f, h_b, c_b)

    z = jnp.zeros((B, H), jnp.float32)
    lax.fori_loop(0, T, step, (z, z, z, z), unroll=unroll)


def _bilstm_last_fc_kernel(x_ref, w_ih_ref, w_hh_ref, b_ref, fcw_ref, fcb_ref,
                           out_ref, xp_ref, *, T, B, H, unroll):
    """Last bidirectional LSTM layer fused with the final Linear.

    Only the final hidden state of each direction is needed (hidden[-2], hidden[-1]),
    so no per-step outputs are materialized.  out_ref: (B, O) f32 logits.
    """
    xp_ref[...] = (
        jnp.dot(x_ref[...], w_ih_ref[...], preferred_element_type=jnp.float32)
        + b_ref[...])

    w_hh_f = w_hh_ref[0]
    w_hh_b = w_hh_ref[1]

    def step(t, carry):
        h_f, c_f, h_b, c_b = carry
        s = T - 1 - t
        row_f = xp_ref[pl.ds(pl.multiple_of(t * B, B), B), 0:4 * H]
        row_b = xp_ref[pl.ds(pl.multiple_of(s * B, B), B), 4 * H:8 * H]
        h_f, c_f = _lstm_cell(row_f, w_hh_f, h_f, c_f, H)
        h_b, c_b = _lstm_cell(row_b, w_hh_b, h_b, c_b, H)
        return (h_f, c_f, h_b, c_b)

    z = jnp.zeros((B, H), jnp.float32)
    h_f, _, h_b, _ = lax.fori_loop(0, T, step, (z, z, z, z), unroll=unroll)

    # cat(hidden[-2], hidden[-1], dim=1) : forward final first, backward final second.
    hidden_cat = jnp.concatenate([h_f, h_b], axis=-1)                 # (B, 2H) f32
    out_ref[...] = (
        jnp.dot(hidden_cat, fcw_ref[...], preferred_element_type=jnp.float32)
        + fcb_ref[...])


# ----------------------------------------------------------------------------
# Wrappers
# ----------------------------------------------------------------------------
_VMEM_SPEC = pl.BlockSpec(memory_space=pltpu.MemorySpace.VMEM)


def _vmem_limit_bytes(shapes_dtypes):
    need = 0
    for shape, dtype in shapes_dtypes:
        n = 1
        for d in shape:
            n *= int(d)
        need += n * jnp.dtype(dtype).itemsize
    # 2x headroom for double buffering / spills, clamped to sane bounds.
    return int(min(128 * 1024 * 1024, max(32 * 1024 * 1024, 2 * need + (4 << 20))))


def bilstm_layer(x2d, w_ih, w_hh, b, *, seq_len, batch):
    """x2d: (T*B, D_in) bf16 (B padded to mult of 8) -> (T, B, 2H) bf16."""
    T, B = seq_len, batch
    H = w_hh.shape[-1] // 4
    out_shape = jax.ShapeDtypeStruct((T, B, 2 * H), jnp.bfloat16)
    limit = _vmem_limit_bytes([
        (x2d.shape, x2d.dtype), (w_ih.shape, w_ih.dtype),
        (w_hh.shape, w_hh.dtype), (b.shape, b.dtype),
        (out_shape.shape, out_shape.dtype),
        ((T * B, 8 * H), jnp.float32),
    ])
    kernel = functools.partial(_bilstm_seq_kernel, T=T, B=B, H=H, unroll=min(8, T))
    return pl.pallas_call(
        kernel,
        out_shape=out_shape,
        in_specs=[_VMEM_SPEC] * 4,
        out_specs=_VMEM_SPEC,
        scratch_shapes=[pltpu.VMEM((T * B, 8 * H), jnp.float32)],
        compiler_params=pltpu.CompilerParams(vmem_limit_bytes=limit),
    )(x2d, w_ih, w_hh, b)


def bilstm_last_layer_fc(x2d, w_ih, w_hh, b, fc_w_t, fc_b, *, seq_len, batch):
    """Last layer + fused Linear.  fc_w_t: (2H, O) f32, fc_b: (1, O) f32."""
    T, B = seq_len, batch
    H = w_hh.shape[-1] // 4
    O = fc_w_t.shape[-1]
    out_shape = jax.ShapeDtypeStruct((B, O), jnp.float32)
    limit = _vmem_limit_bytes([
        (x2d.shape, x2d.dtype), (w_ih.shape, w_ih.dtype),
        (w_hh.shape, w_hh.dtype), (b.shape, b.dtype),
        (fc_w_t.shape, fc_w_t.dtype), (fc_b.shape, fc_b.dtype),
        (out_shape.shape, out_shape.dtype),
        ((T * B, 8 * H), jnp.float32),
    ])
    kernel = functools.partial(_bilstm_last_fc_kernel, T=T, B=B, H=H, unroll=min(8, T))
    return pl.pallas_call(
        kernel,
        out_shape=out_shape,
        in_specs=[_VMEM_SPEC] * 6,
        out_specs=_VMEM_SPEC,
        scratch_shapes=[pltpu.VMEM((T * B, 8 * H), jnp.float32)],
        compiler_params=pltpu.CompilerParams(vmem_limit_bytes=limit),
    )(x2d, w_ih, w_hh, b, fc_w_t, fc_b)


# ----------------------------------------------------------------------------
# Host-side parameter packing
# ----------------------------------------------------------------------------
def _reorder_ifgo_to_ifog(a):
    """PyTorch LSTM gate order [i,f,g,o] -> [i,f,o,g] along axis 0."""
    i, f, g, o = jnp.split(a, 4, axis=0)
    return jnp.concatenate([i, f, o, g], axis=0)


def _pack_dir_params(w_ih, w_hh, b_ih, b_hh):
    """Per-direction PyTorch weights -> (Din,4H), (H,4H), (4H,) in [i,f,o,g] order."""
    w_ih = _reorder_ifgo_to_ifog(jnp.asarray(w_ih, jnp.float32))      # (4H, Din)
    w_hh = _reorder_ifgo_to_ifog(jnp.asarray(w_hh, jnp.float32))      # (4H, H)
    bias = _reorder_ifgo_to_ifog(
        jnp.asarray(b_ih, jnp.float32) + jnp.asarray(b_hh, jnp.float32))  # (4H,)
    return w_ih.T, w_hh.T, bias


def prepare_params(params):
    """One-time host-side packing (outside the per-call path)."""
    layers = []
    for layer in params["lstm"]:
        wi_f, wh_f, b_f = _pack_dir_params(*layer["fwd"])
        wi_b, wh_b, b_b = _pack_dir_params(*layer["bwd"])
        layers.append((
            jnp.concatenate([wi_f, wi_b], axis=1).astype(jnp.bfloat16),   # (Din, 8H)
            jnp.stack([wh_f, wh_b], axis=0).astype(jnp.bfloat16),         # (2, H, 4H)
            jnp.concatenate([b_f, b_b]).reshape(1, -1),                   # (1, 8H) f32
        ))
    return {
        "layers": layers,
        "fc_w_t": jnp.asarray(params["fc_w"], jnp.float32).T,             # (2H, O)
        "fc_b": jnp.asarray(params["fc_b"], jnp.float32).reshape(1, -1),  # (1, O)
    }


def rnn_forward(x, packed):
    """Full RNN.forward: multi-layer bidirectional LSTM + concat final hiddens + fc.

    x: (T, B, D) f32  ->  (B, output_dim) f32.  Dropout layers are identity (inference).
    """
    T, B, D = x.shape
    B_pad = ((B + 7) // 8) * 8                     # sublane-align the batch
    if B_pad != B:
        x = jnp.pad(x, ((0, 0), (0, B_pad - B), (0, 0)))
    layer_in = x.astype(jnp.bfloat16).reshape(T * B_pad, D)   # free XLA reshape

    for (w_ih, w_hh, b) in packed["layers"][:-1]:
        out3d = bilstm_layer(layer_in, w_ih, w_hh, b, seq_len=T, batch=B_pad)
        layer_in = out3d.reshape(T * B_pad, out3d.shape[-1])

    w_ih, w_hh, b = packed["layers"][-1]
    logits = bilstm_last_layer_fc(layer_in, w_ih, w_hh, b,
                                  packed["fc_w_t"], packed["fc_b"],
                                  seq_len=T, batch=B_pad)
    return logits[:B]


# ----------------------------------------------------------------------------
# Deterministic parameter construction (matches nn.LSTM / nn.Linear shapes)
# ----------------------------------------------------------------------------
def make_params(key, embedding_dim, hidden_dim, output_dim, n_layers):
    H = hidden_dim
    k = 1.0 / jnp.sqrt(jnp.float32(H))
    params = {"lstm": []}
    for l in range(n_layers):
        in_dim = embedding_dim if l == 0 else 2 * H
        layer = {}
        for d in ("fwd", "bwd"):
            key, k1, k2, k3, k4 = jax.random.split(key, 5)
            layer[d] = (
                jax.random.uniform(k1, (4 * H, in_dim), jnp.float32, -k, k),  # w_ih
                jax.random.uniform(k2, (4 * H, H), jnp.float32, -k, k),       # w_hh
                jax.random.uniform(k3, (4 * H,), jnp.float32, -k, k),         # b_ih
                jax.random.uniform(k4, (4 * H,), jnp.float32, -k, k),         # b_hh
            )
        params["lstm"].append(layer)
    key, kw, kb = jax.random.split(key, 3)
    kf = 1.0 / jnp.sqrt(jnp.float32(2 * H))
    params["fc_w"] = jax.random.uniform(kw, (output_dim, 2 * H), jnp.float32, -kf, kf)
    params["fc_b"] = jax.random.uniform(kb, (output_dim,), jnp.float32, -kf, kf)
    return params


# ----------------------------------------------------------------------------
# Main
# ----------------------------------------------------------------------------
if __name__ == "__main__":
    SEQ_LEN = 8
    BATCH = 2          # padded to 8 internally (sublane alignment)
    EMB_DIM = 16
    HIDDEN_DIM = 32
    OUTPUT_DIM = 3     # SNLI: 3 classes
    N_LAYERS = 2

    key = jax.random.PRNGKey(0)
    key, kx = jax.random.split(key)
    x = jax.random.normal(kx, (SEQ_LEN, BATCH, EMB_DIM), jnp.float32)

    params = make_params(key, EMB_DIM, HIDDEN_DIM, OUTPUT_DIM, N_LAYERS)
    packed = prepare_params(params)

    fwd = jax.jit(rnn_forward)
    out = fwd(x, packed)
    out = jax.block_until_ready(out)

    assert out.shape == (BATCH, OUTPUT_DIM), out.shape
    assert jnp.all(jnp.isfinite(out))
    print("KERNEL_OK")
</pallas_src>

<mosaic_0001>
module attributes {stable_mosaic.version = 11 : i64} {
  func.func @_bilstm_seq_kernel(%arg0: memref<64x16xbf16, #tpu.memory_space<vmem>>, %arg1: memref<16x256xbf16, #tpu.memory_space<vmem>>, %arg2: memref<2x32x128xbf16, #tpu.memory_space<vmem>>, %arg3: memref<1x256xf32, #tpu.memory_space<vmem>>, %arg4: memref<8x8x64xbf16, #tpu.memory_space<vmem>>, %arg5: memref<64x256xf32, #tpu.memory_space<vmem>>) attributes {dimension_semantics = [], scalar_prefetch = 0 : i64, scratch_operands = 1 : i64, tpu.core_type = #tpu.core_type<tc>} {
    %c0 = arith.constant 0 : index
    %c0_0 = arith.constant 0 : index
    %0 = vector.load %arg0[%c0, %c0_0] : memref<64x16xbf16, #tpu.memory_space<vmem>>, vector<64x16xbf16>
    %c0_1 = arith.constant 0 : index
    %c0_2 = arith.constant 0 : index
    %1 = vector.load %arg1[%c0_1, %c0_2] : memref<16x256xbf16, #tpu.memory_space<vmem>>, vector<16x256xbf16>
    %cst = arith.constant dense<0.000000e+00> : vector<64x256xf32>
    %2 = tpu.matmul %0, %1, %cst {dimension_numbers = #tpu.dot_dimension_numbers<[1], [0], [0], [1], [0, 0, 1, 1], [], []>} : vector<64x16xbf16>, vector<16x256xbf16>, vector<64x256xf32> -> vector<64x256xf32>
    %c0_3 = arith.constant 0 : index
    %c0_4 = arith.constant 0 : index
    %3 = vector.load %arg3[%c0_3, %c0_4] : memref<1x256xf32, #tpu.memory_space<vmem>>, vector<1x256xf32>
    %4 = vector.broadcast %3 : vector<1x256xf32> to vector<64x256xf32>
    %5 = arith.addf %2, %4 : vector<64x256xf32>
    %c0_5 = arith.constant 0 : index
    %c0_6 = arith.constant 0 : index
    %6 = vector.load %arg5[%c0_5, %c0_6] : memref<64x256xf32, #tpu.memory_space<vmem>>, vector<64x256xf32>
    tpu.vector_store %arg5[%c0_5, %c0_6], %5 {strides = array<i32>} : memref<64x256xf32, #tpu.memory_space<vmem>>, vector<64x256xf32>,
    %c0_7 = arith.constant 0 : index
    %c0_8 = arith.constant 0 : index
    %c0_9 = arith.constant 0 : index
    %7 = vector.load %arg2[%c0_7, %c0_8, %c0_9] : memref<2x32x128xbf16, #tpu.memory_space<vmem>>, vector<1x32x128xbf16>
    %8 = vector.shape_cast %7 : vector<1x32x128xbf16> to vector<32x128xbf16>
    %c1 = arith.constant 1 : index
    %c0_10 = arith.constant 0 : index
    %c0_11 = arith.constant 0 : index
    %9 = vector.load %arg2[%c1, %c0_10, %c0_11] : memref<2x32x128xbf16, #tpu.memory_space<vmem>>, vector<1x32x128xbf16>
    %10 = vector.shape_cast %9 : vector<1x32x128xbf16> to vector<32x128xbf16>
    %cst_12 = arith.constant 0.000000e+00 : f32
    %11 = vector.broadcast %cst_12 : f32 to vector<8x32xf32>
    %c0_i32 = arith.constant 0 : i32
    %c7_i32 = arith.constant 7 : i32
    %12 = arith.subi %c7_i32, %c0_i32 : i32
    %c8_i32 = arith.constant 8 : i32
    %13 = arith.muli %c0_i32, %c8_i32 : i32
    %14 = tpu.assume_multiple %13, 8 : i32
    %15 = arith.index_cast %14 : i32 to index
    %c0_13 = arith.constant 0 : index
    %16 = vector.load %arg5[%15, %c0_13] : memref<64x256xf32, #tpu.memory_space<vmem>>, vector<8x128xf32>
    %c8_i32_14 = arith.constant 8 : i32
    %17 = arith.muli %12, %c8_i32_14 : i32
    %18 = tpu.assume_multiple %17, 8 : i32
    %19 = arith.index_cast %18 : i32 to index
    %c128 = arith.constant 128 : index
    %20 = vector.load %arg5[%19, %c128] : memref<64x256xf32, #tpu.memory_space<vmem>>, vector<8x128xf32>
    %21 = arith.truncf %11 : vector<8x32xf32> to vector<8x32xbf16>
    %cst_15 = arith.constant dense<0.000000e+00> : vector<8x128xf32>
    %22 = tpu.matmul %21, %8, %cst_15 {dimension_numbers = #tpu.dot_dimension_numbers<[1], [0], [0], [1], [0, 0, 1, 1], [], []>} : vector<8x32xbf16>, vector<32x128xbf16>, vector<8x128xf32> -> vector<8x128xf32>
    %23 = arith.addf %16, %22 : vector<8x128xf32>
    %24 = vector.extract_strided_slice %23 {offsets = [0, 0], sizes = [8, 96], strides = [1, 1]} : vector<8x128xf32> to vector<8x96xf32>
    %25 = arith.negf %24 : vector<8x96xf32>
    %26 = math.exp %25 : vector<8x96xf32>
    %cst_16 = arith.constant 1.000000e+00 : f32
    %27 = vector.broadcast %cst_16 : f32 to vector<8x96xf32>
    %28 = arith.addf %27, %26 : vector<8x96xf32>
    %29 = arith.divf %27, %28 : vector<8x96xf32>
    %30 = vector.extract_strided_slice %23 {offsets = [0, 96], sizes = [8, 32], strides = [1, 1]} : vector<8x128xf32> to vector<8x32xf32>
    %31 = math.tanh %30 : vector<8x32xf32>
    %32 = vector.extract_strided_slice %29 {offsets = [0, 0], sizes = [8, 32], strides = [1, 1]} : vector<8x96xf32> to vector<8x32xf32>
    %33 = vector.extract_strided_slice %29 {offsets = [0, 32], sizes = [8, 32], strides = [1, 1]} : vector<8x96xf32> to vector<8x32xf32>
    %34 = vector.extract_strided_slice %29 {offsets = [0, 64], sizes = [8, 32], strides = [1, 1]} : vector<8x96xf32> to vector<8x32xf32>
    %35 = arith.mulf %33, %11 : vector<8x32xf32>
    %36 = arith.mulf %32, %31 : vector<8x32xf32>
    %37 = arith.addf %35, %36 : vector<8x32xf32>
    %38 = math.tanh %37 : vector<8x32xf32>
    %39 = arith.mulf %34, %38 : vector<8x32xf32>
    %40 = arith.truncf %11 : vector<8x32xf32> to vector<8x32xbf16>
    %cst_17 = arith.constant dense<0.000000e+00> : vector<8x128xf32>
    %41 = tpu.matmul %40, %10, %cst_17 {dimension_numbers = #tpu.dot_dimension_numbers<[1], [0], [0], [1], [0, 0, 1, 1], [], []>} : vector<8x32xbf16>, vector<32x128xbf16>, vector<8x128xf32> -> vector<8x128xf32>
    %42 = arith.addf %20, %41 : vector<8x128xf32>
    %43 = vector.extract_strided_slice %42 {offsets = [0, 0], sizes = [8, 96], strides = [1, 1]} : vector<8x128xf32> to vector<8x96xf32>
    %44 = arith.negf %43 : vector<8x96xf32>
    %45 = math.exp %44 : vector<8x96xf32>
    %cst_18 = arith.constant 1.000000e+00 : f32
    %46 = vector.broadcast %cst_18 : f32 to vector<8x96xf32>
    %47 = arith.addf %46, %45 : vector<8x96xf32>
    %48 = arith.divf %46, %47 : vector<8x96xf32>
    %49 = vector.extract_strided_slice %42 {offsets = [0, 96], sizes = [8, 32], strides = [1, 1]} : vector<8x128xf32> to vector<8x32xf32>
    %50 = math.tanh %49 : vector<8x32xf32>
    %51 = vector.extract_strided_slice %48 {offsets = [0, 0], sizes = [8, 32], strides = [1, 1]} : vector<8x96xf32> to vector<8x32xf32>
    %52 = vector.extract_strided_slice %48 {offsets = [0, 32], sizes = [8, 32], strides = [1, 1]} : vector<8x96xf32> to vector<8x32xf32>
    %53 = vector.extract_strided_slice %48 {offsets = [0, 64], sizes = [8, 32], strides = [1, 1]} : vector<8x96xf32> to vector<8x32xf32>
    %54 = arith.mulf %52, %11 : vector<8x32xf32>
    %55 = arith.mulf %51, %50 : vector<8x32xf32>
    %56 = arith.addf %54, %55 : vector<8x32xf32>
    %57 = math.tanh %56 : vector<8x32xf32>
    %58 = arith.mulf %53, %57 : vector<8x32xf32>
    %59 = arith.truncf %39 : vector<8x32xf32> to vector<8x32xbf16>
    %60 = arith.index_cast %c0_i32 : i32 to index
    %c0_19 = arith.constant 0 : index
    %c0_20 = arith.constant 0 : index
    %61 = vector.load %arg4[%60, %c0_19, %c0_20] : memref<8x8x64xbf16, #tpu.memory_space<vmem>>, vector<1x8x32xbf16>
    %62 = vector.shape_cast %61 : vector<1x8x32xbf16> to vector<8x32xbf16>
    %63 = vector.shape_cast %59 : vector<8x32xbf16> to vector<1x8x32xbf16>
    tpu.vector_store %arg4[%60, %c0_19, %c0_20], %63 {strides = array<i32>} : memref<8x8x64xbf16, #tpu.memory_space<vmem>>, vector<1x8x32xbf16>,
    %64 = arith.truncf %58 : vector<8x32xf32> to vector<8x32xbf16>
    %65 = arith.index_cast %12 : i32 to index
    %c0_21 = arith.constant 0 : index
    %c32 = arith.constant 32 : index
    %66 = vector.load %arg4[%65, %c0_21, %c32] : memref<8x8x64xbf16, #tpu.memory_space<vmem>>, vector<1x8x32xbf16>
    %67 = vector.shape_cast %66 : vector<1x8x32xbf16> to vector<8x32xbf16>
    %68 = vector.shape_cast %64 : vector<8x32xbf16> to vector<1x8x32xbf16>
    tpu.vector_store %arg4[%65, %c0_21, %c32], %68 {strides = array<i32>} : memref<8x8x64xbf16, #tpu.memory_space<vmem>>, vector<1x8x32xbf16>,
    %c1_i32 = arith.constant 1 : i32
    %c7_i32_22 = arith.constant 7 : i32
    %69 = arith.subi %c7_i32_22, %c1_i32 : i32
    %c8_i32_23 = arith.constant 8 : i32
    %70 = arith.muli %c1_i32, %c8_i32_23 : i32
    %71 = tpu.assume_multiple %70, 8 : i32
    %72 = arith.index_cast %71 : i32 to index
    %c0_24 = arith.constant 0 : index
    %73 = vector.load %arg5[%72, %c0_24] : memref<64x256xf32, #tpu.memory_space<vmem>>, vector<8x128xf32>
    %c8_i32_25 = arith.constant 8 : i32
    %74 = arith.muli %69, %c8_i32_25 : i32
    %75 = tpu.assume_multiple %74, 8 : i32
    %76 = arith.index_cast %75 : i32 to index
    %c128_26 = arith.constant 128 : index
    %77 = vector.load %arg5[%76, %c128_26] : memref<64x256xf32, #tpu.memory_space<vmem>>, vector<8x128xf32>
    %78 = arith.truncf %39 : vector<8x32xf32> to vector<8x32xbf16>
    %cst_27 = arith.constant dense<0.000000e+00> : vector<8x128xf32>
    %79 = tpu.matmul %78, %8, %cst_27 {dimension_numbers = #tpu.dot_dimension_numbers<[1], [0], [0], [1], [0, 0, 1, 1], [], []>} : vector<8x32xbf16>, vector<32x128xbf16>, vector<8x128xf32> -> vector<8x128xf32>
    %80 = arith.addf %73, %79 : vector<8x128xf32>
    %81 = vector.extract_strided_slice %80 {offsets = [0, 0], sizes = [8, 96], strides = [1, 1]} : vector<8x128xf32> to vector<8x96xf32>
    %82 = arith.negf %81 : vector<8x96xf32>
    %83 = math.exp %82 : vector<8x96xf32>
    %cst_28 = arith.constant 1.000000e+00 : f32
    %84 = vector.broadcast %cst_28 : f32 to vector<8x96xf32>
    %85 = arith.addf %84, %83 : vector<8x96xf32>
    %86 = arith.divf %84, %85 : vector<8x96xf32>
    %87 = vector.extract_strided_slice %80 {offsets = [0, 96], sizes = [8, 32], strides = [1, 1]} : vector<8x128xf32> to vector<8x32xf32>
    %88 = math.tanh %87 : vector<8x32xf32>
    %89 = vector.extract_strided_slice %86 {offsets = [0, 0], sizes = [8, 32], strides = [1, 1]} : vector<8x96xf32> to vector<8x32xf32>
    %90 = vector.extract_strided_slice %86 {offsets = [0, 32], sizes = [8, 32], strides = [1, 1]} : vector<8x96xf32> to vector<8x32xf32>
    %91 = vector.extract_strided_slice %86 {offsets = [0, 64], sizes = [8, 32], strides = [1, 1]} : vector<8x96xf32> to vector<8x32xf32>
    %92 = arith.mulf %90, %37 : vector<8x32xf32>
    %93 = arith.mulf %89, %88 : vector<8x32xf32>
    %94 = arith.addf %92, %93 : vector<8x32xf32>
    %95 = math.tanh %94 : vector<8x32xf32>
    %96 = arith.mulf %91, %95 : vector<8x32xf32>
    %97 = arith.truncf %58 : vector<8x32xf32> to vector<8x32xbf16>
    %cst_29 = arith.constant dense<0.000000e+00> : vector<8x128xf32>
    %98 = tpu.matmul %97, %10, %cst_29 {dimension_numbers = #tpu.dot_dimension_numbers<[1], [0], [0], [1], [0, 0, 1, 1], [], []>} : vector<8x32xbf16>, vector<32x128xbf16>, vector<8x128xf32> -> vector<8x128xf32>
    %99 = arith.addf %77, %98 : vector<8x128xf32>
    %100 = vector.extract_strided_slice %99 {offsets = [0, 0], sizes = [8, 96], strides = [1, 1]} : vector<8x128xf32> to vector<8x96xf32>
    %101 = arith.negf %100 : vector<8x96xf32>
    %102 = math.exp %101 : vector<8x96xf32>
    %cst_30 = arith.constant 1.000000e+00 : f32
    %103 = vector.broadcast %cst_30 : f32 to vector<8x96xf32>
    %104 = arith.addf %103, %102 : vector<8x96xf32>
    %105 = arith.divf %103, %104 : vector<8x96xf32>
    %106 = vector.extract_strided_slice %99 {offsets = [0, 96], sizes = [8, 32], strides = [1, 1]} : vector<8x128xf32> to vector<8x32xf32>
    %107 = math.tanh %106 : vector<8x32xf32>
    %108 = vector.extract_strided_slice %105 {offsets = [0, 0], sizes = [8, 32], strides = [1, 1]} : vector<8x96xf32> to vector<8x32xf32>
    %109 = vector.extract_strided_slice %105 {offsets = [0, 32], sizes = [8, 32], strides = [1, 1]} : vector<8x96xf32> to vector<8x32xf32>
    %110 = vector.extract_strided_slice %105 {offsets = [0, 64], sizes = [8, 32], strides = [1, 1]} : vector<8x96xf32> to vector<8x32xf32>
    %111 = arith.mulf %109, %56 : vector<8x32xf32>
    %112 = arith.mulf %108, %107 : vector<8x32xf32>
    %113 = arith.addf %111, %112 : vector<8x32xf32>
    %114 = math.tanh %113 : vector<8x32xf32>
    %115 = arith.mulf %110, %114 : vector<8x32xf32>
    %116 = arith.truncf %96 : vector<8x32xf32> to vector<8x32xbf16>
    %117 = arith.index_cast %c1_i32 : i32 to index
    %c0_31 = arith.constant 0 : index
    %c0_32 = arith.constant 0 : index
    %118 = vector.load %arg4[%117, %c0_31, %c0_32] : memref<8x8x64xbf16, #tpu.memory_space<vmem>>, vector<1x8x32xbf16>
    %119 = vector.shape_cast %118 : vector<1x8x32xbf16> to vector<8x32xbf16>
    %120 = vector.shape_cast %116 : vector<8x32xbf16> to vector<1x8x32xbf16>
    tpu.vector_store %arg4[%117, %c0_31, %c0_32], %120 {strides = array<i32>} : memref<8x8x64xbf16, #tpu.memory_space<vmem>>, vector<1x8x32xbf16>,
    %121 = arith.truncf %115 : vector<8x32xf32> to vector<8x32xbf16>
    %122 = arith.index_cast %69 : i32 to index
    %c0_33 = arith.constant 0 : index
    %c32_34 = arith.constant 32 : index
    %123 = vector.load %arg4[%122, %c0_33, %c32_34] : memref<8x8x64xbf16, #tpu.memory_space<vmem>>, vector<1x8x32xbf16>
    %124 = vector.shape_cast %123 : vector<1x8x32xbf16> to vector<8x32xbf16>
    %125 = vector.shape_cast %121 : vector<8x32xbf16> to vector<1x8x32xbf16>
    tpu.vector_store %arg4[%122, %c0_33, %c32_34], %125 {strides = array<i32>} : memref<8x8x64xbf16, #tpu.memory_space<vmem>>, vector<1x8x32xbf16>,
    %c2_i32 = arith.constant 2 : i32
    %c7_i32_35 = arith.constant 7 : i32
    %126 = arith.subi %c7_i32_35, %c2_i32 : i32
    %c8_i32_36 = arith.constant 8 : i32
    %127 = arith.muli %c2_i32, %c8_i32_36 : i32
    %128 = tpu.assume_multiple %127, 8 : i32
    %129 = arith.index_cast %128 : i32 to index
    %c0_37 = arith.constant 0 : index
    %130 = vector.load %arg5[%129, %c0_37] : memref<64x256xf32, #tpu.memory_space<vmem>>, vector<8x128xf32>
    %c8_i32_38 = arith.constant 8 : i32
    %131 = arith.muli %126, %c8_i32_38 : i32
    %132 = tpu.assume_multiple %131, 8 : i32
    %133 = arith.index_cast %132 : i32 to index
    %c128_39 = arith.constant 128 : index
    %134 = vector.load %arg5[%133, %c128_39] : memref<64x256xf32, #tpu.memory_space<vmem>>, vector<8x128xf32>
    %135 = arith.truncf %96 : vector<8x32xf32> to vector<8x32xbf16>
    %cst_40 = arith.constant dense<0.000000e+00> : vector<8x128xf32>
    %136 = tpu.matmul %135, %8, %cst_40 {dimension_numbers = #tpu.dot_dimension_numbers<[1], [0], [0], [1], [0, 0, 1, 1], [], []>} : vector<8x32xbf16>, vector<32x128xbf16>, vector<8x128xf32> -> vector<8x128xf32>
    %137 = arith.addf %130, %136 : vector<8x128xf32>
    %138 = vector.extract_strided_slice %137 {offsets = [0, 0], sizes = [8, 96], strides = [1, 1]} : vector<8x128xf32> to vector<8x96xf32>
    %139 = arith.negf %138 : vector<8x96xf32>
    %140 = math.exp %139 : vector<8x96xf32>
    %cst_41 = arith.constant 1.000000e+00 : f32
    %141 = vector.broadcast %cst_41 : f32 to vector<8x96xf32>
    %142 = arith.addf %141, %140 : vector<8x96xf32>
    %143 = arith.divf %141, %142 : vector<8x96xf32>
    %144 = vector.extract_strided_slice %137 {offsets = [0, 96], sizes = [8, 32], strides = [1, 1]} : vector<8x128xf32> to vector<8x32xf32>
    %145 = math.tanh %144 : vector<8x32xf32>
    %146 = vector.extract_strided_slice %143 {offsets = [0, 0], sizes = [8, 32], strides = [1, 1]} : vector<8x96xf32> to vector<8x32xf32>
    %147 = vector.extract_strided_slice %143 {offsets = [0, 32], sizes = [8, 32], strides = [1, 1]} : vector<8x96xf32> to vector<8x32xf32>
    %148 = vector.extract_strided_slice %143 {offsets = [0, 64], sizes = [8, 32], strides = [1, 1]} : vector<8x96xf32> to vector<8x32xf32>
    %149 = arith.mulf %147, %94 : vector<8x32xf32>
    %150 = arith.mulf %146, %145 : vector<8x32xf32>
    %151 = arith.addf %149, %150 : vector<8x32xf32>
    %152 = math.tanh %151 : vector<8x32xf32>
    %153 = arith.mulf %148, %152 : vector<8x32xf32>
    %154 = arith.truncf %115 : vector<8x32xf32> to vector<8x32xbf16>
    %cst_42 = arith.constant dense<0.000000e+00> : vector<8x128xf32>
    %155 = tpu.matmul %154, %10, %cst_42 {dimension_numbers = #tpu.dot_dimension_numbers<[1], [0], [0], [1], [0, 0, 1, 1], [], []>} : vector<8x32xbf16>, vector<32x128xbf16>, vector<8x128xf32> -> vector<8x128xf32>
    %156 = arith.addf %134, %155 : vector<8x128xf32>
    %157 = vector.extract_strided_slice %156 {offsets = [0, 0], sizes = [8, 96], strides = [1, 1]} : vector<8x128xf32> to vector<8x96xf32>
    %158 = arith.negf %157 : vector<8x96xf32>
    %159 = math.exp %158 : vector<8x96xf32>
    %cst_43 = arith.constant 1.000000e+00 : f32
    %160 = vector.broadcast %cst_43 : f32 to vector<8x96xf32>
    %161 = arith.addf %160, %159 : vector<8x96xf32>
    %162 = arith.divf %160, %161 : vector<8x96xf32>
    %163 = vector.extract_strided_slice %156 {offsets = [0, 96], sizes = [8, 32], strides = [1, 1]} : vector<8x128xf32> to vector<8x32xf32>
    %164 = math.tanh %163 : vector<8x32xf32>
    %165 = vector.extract_strided_slice %162 {offsets = [0, 0], sizes = [8, 32], strides = [1, 1]} : vector<8x96xf32> to vector<8x32xf32>
    %166 = vector.extract_strided_slice %162 {offsets = [0, 32], sizes = [8, 32], strides = [1, 1]} : vector<8x96xf32> to vector<8x32xf32>
    %167 = vector.extract_strided_slice %162 {offsets = [0, 64], sizes = [8, 32], strides = [1, 1]} : vector<8x96xf32> to vector<8x32xf32>
    %168 = arith.mulf %166, %113 : vector<8x32xf32>
    %169 = arith.mulf %165, %164 : vector<8x32xf32>
    %170 = arith.addf %168, %169 : vector<8x32xf32>
    %171 = math.tanh %170 : vector<8x32xf32>
    %172 = arith.mulf %167, %171 : vector<8x32xf32>
    %173 = arith.truncf %153 : vector<8x32xf32> to vector<8x32xbf16>
    %174 = arith.index_cast %c2_i32 : i32 to index
    %c0_44 = arith.constant 0 : index
    %c0_45 = arith.constant 0 : index
    %175 = vector.load %arg4[%174, %c0_44, %c0_45] : memref<8x8x64xbf16, #tpu.memory_space<vmem>>, vector<1x8x32xbf16>
    %176 = vector.shape_cast %175 : vector<1x8x32xbf16> to vector<8x32xbf16>
    %177 = vector.shape_cast %173 : vector<8x32xbf16> to vector<1x8x32xbf16>
    tpu.vector_store %arg4[%174, %c0_44, %c0_45], %177 {strides = array<i32>} : memref<8x8x64xbf16, #tpu.memory_space<vmem>>, vector<1x8x32xbf16>,
    %178 = arith.truncf %172 : vector<8x32xf32> to vector<8x32xbf16>
    %179 = arith.index_cast %126 : i32 to index
    %c0_46 = arith.constant 0 : index
    %c32_47 = arith.constant 32 : index
    %180 = vector.load %arg4[%179, %c0_46, %c32_47] : memref<8x8x64xbf16, #tpu.memory_space<vmem>>, vector<1x8x32xbf16>
    %181 = vector.shape_cast %180 : vector<1x8x32xbf16> to vector<8x32xbf16>
    %182 = vector.shape_cast %178 : vector<8x32xbf16> to vector<1x8x32xbf16>
    tpu.vector_store %arg4[%179, %c0_46, %c32_47], %182 {strides = array<i32>} : memref<8x8x64xbf16, #tpu.memory_space<vmem>>, vector<1x8x32xbf16>,
    %c3_i32 = arith.constant 3 : i32
    %c7_i32_48 = arith.constant 7 : i32
    %183 = arith.subi %c7_i32_48, %c3_i32 : i32
    %c8_i32_49 = arith.constant 8 : i32
    %184 = arith.muli %c3_i32, %c8_i32_49 : i32
    %185 = tpu.assume_multiple %184, 8 : i32
    %186 = arith.index_cast %185 : i32 to index
    %c0_50 = arith.constant 0 : index
    %187 = vector.load %arg5[%186, %c0_50] : memref<64x256xf32, #tpu.memory_space<vmem>>, vector<8x128xf32>
    %c8_i32_51 = arith.constant 8 : i32
    %188 = arith.muli %183, %c8_i32_51 : i32
    %189 = tpu.assume_multiple %188, 8 : i32
    %190 = arith.index_cast %189 : i32 to index
    %c128_52 = arith.constant 128 : index
    %191 = vector.load %arg5[%190, %c128_52] : memref<64x256xf32, #tpu.memory_space<vmem>>, vector<8x128xf32>
    %192 = arith.truncf %153 : vector<8x32xf32> to vector<8x32xbf16>
    %cst_53 = arith.constant dense<0.000000e+00> : vector<8x128xf32>
    %193 = tpu.matmul %192, %8, %cst_53 {dimension_numbers = #tpu.dot_dimension_numbers<[1], [0], [0], [1], [0, 0, 1, 1], [], []>} : vector<8x32xbf16>, vector<32x128xbf16>, vector<8x128xf32> -> vector<8x128xf32>
    %194 = arith.addf %187, %193 : vector<8x128xf32>
    %195 = vector.extract_strided_slice %194 {offsets = [0, 0], sizes = [8, 96], strides = [1, 1]} : vector<8x128xf32> to vector<8x96xf32>
    %196 = arith.negf %195 : vector<8x96xf32>
    %197 = math.exp %196 : vector<8x96xf32>
    %cst_54 = arith.constant 1.000000e+00 : f32
    %198 = vector.broadcast %cst_54 : f32 to vector<8x96xf32>
    %199 = arith.addf %198, %197 : vector<8x96xf32>
    %200 = arith.divf %198, %199 : vector<8x96xf32>
    %201 = vector.extract_strided_slice %194 {offsets = [0, 96], sizes = [8, 32], strides = [1, 1]} : vector<8x128xf32> to vector<8x32xf32>
    %202 = math.tanh %201 : vector<8x32xf32>
    %203 = vector.extract_strided_slice %200 {offsets = [0, 0], sizes = [8, 32], strides = [1, 1]} : vector<8x96xf32> to vector<8x32xf32>
    %204 = vector.extract_strided_slice %200 {offsets = [0, 32], sizes = [8, 32], strides = [1, 1]} : vector<8x96xf32> to vector<8x32xf32>
    %205 = vector.extract_strided_slice %200 {offsets = [0, 64], sizes = [8, 32], strides = [1, 1]} : vector<8x96xf32> to vector<8x32xf32>
    %206 = arith.mulf %204, %151 : vector<8x32xf32>
    %207 = arith.mulf %203, %202 : vector<8x32xf32>
    %208 = arith.addf %206, %207 : vector<8x32xf32>
    %209 = math.tanh %208 : vector<8x32xf32>
    %210 = arith.mulf %205, %209 : vector<8x32xf32>
    %211 = arith.truncf %172 : vector<8x32xf32> to vector<8x32xbf16>
    %cst_55 = arith.constant dense<0.000000e+00> : vector<8x128xf32>
    %212 = tpu.matmul %211, %10, %cst_55 {dimension_numbers = #tpu.dot_dimension_numbers<[1], [0], [0], [1], [0, 0, 1, 1], [], []>} : vector<8x32xbf16>, vector<32x128xbf16>, vector<8x128xf32> -> vector<8x128xf32>
    %213 = arith.addf %191, %212 : vector<8x128xf32>
    %214 = vector.extract_strided_slice %213 {offsets = [0, 0], sizes = [8, 96], strides = [1, 1]} : vector<8x128xf32> to vector<8x96xf32>
    %215 = arith.negf %214 : vector<8x96xf32>
    %216 = math.exp %215 : vector<8x96xf32>
    %cst_56 = arith.constant 1.000000e+00 : f32
    %217 = vector.broadcast %cst_56 : f32 to vector<8x96xf32>
    %218 = arith.addf %217, %216 : vector<8x96xf32>
    %219 = arith.divf %217, %218 : vector<8x96xf32>
    %220 = vector.extract_strided_slice %213 {offsets = [0, 96], sizes = [8, 32], strides = [1, 1]} : vector<8x128xf32> to vector<8x32xf32>
    %221 = math.tanh %220 : vector<8x32xf32>
    %222 = vector.extract_strided_slice %219 {offsets = [0, 0], sizes = [8, 32], strides = [1, 1]} : vector<8x96xf32> to vector<8x32xf32>
    %223 = vector.extract_strided_slice %219 {offsets = [0, 32], sizes = [8, 32], strides = [1, 1]} : vector<8x96xf32> to vector<8x32xf32>
    %224 = vector.extract_strided_slice %219 {offsets = [0, 64], sizes = [8, 32], strides = [1, 1]} : vector<8x96xf32> to vector<8x32xf32>
    %225 = arith.mulf %223, %170 : vector<8x32xf32>
    %226 = arith.mulf %222, %221 : vector<8x32xf32>
    %227 = arith.addf %225, %226 : vector<8x32xf32>
    %228 = math.tanh %227 : vector<8x32xf32>
    %229 = arith.mulf %224, %228 : vector<8x32xf32>
    %230 = arith.truncf %210 : vector<8x32xf32> to vector<8x32xbf16>
    %231 = arith.index_cast %c3_i32 : i32 to index
    %c0_57 = arith.constant 0 : index
    %c0_58 = arith.constant 0 : index
    %232 = vector.load %arg4[%231, %c0_57, %c0_58] : memref<8x8x64xbf16, #tpu.memory_space<vmem>>, vector<1x8x32xbf16>
    %233 = vector.shape_cast %232 : vector<1x8x32xbf16> to vector<8x32xbf16>
    %234 = vector.shape_cast %230 : vector<8x32xbf16> to vector<1x8x32xbf16>
    tpu.vector_store %arg4[%231, %c0_57, %c0_58], %234 {strides = array<i32>} : memref<8x8x64xbf16, #tpu.memory_space<vmem>>, vector<1x8x32xbf16>,
    %235 = arith.truncf %229 : vector<8x32xf32> to vector<8x32xbf16>
    %236 = arith.index_cast %183 : i32 to index
    %c0_59 = arith.constant 0 : index
    %c32_60 = arith.constant 32 : index
    %237 = vector.load %arg4[%236, %c0_59, %c32_60] : memref<8x8x64xbf16, #tpu.memory_space<vmem>>, vector<1x8x32xbf16>
    %238 = vector.shape_cast %237 : vector<1x8x32xbf16> to vector<8x32xbf16>
    %239 = vector.shape_cast %235 : vector<8x32xbf16> to vector<1x8x32xbf16>
    tpu.vector_store %arg4[%236, %c0_59, %c32_60], %239 {strides = array<i32>} : memref<8x8x64xbf16, #tpu.memory_space<vmem>>, vector<1x8x32xbf16>,
    %c4_i32 = arith.constant 4 : i32
    %c7_i32_61 = arith.constant 7 : i32
    %240 = arith.subi %c7_i32_61, %c4_i32 : i32
    %c8_i32_62 = arith.constant 8 : i32
    %241 = arith.muli %c4_i32, %c8_i32_62 : i32
    %242 = tpu.assume_multiple %241, 8 : i32
    %243 = arith.index_cast %242 : i32 to index
    %c0_63 = arith.constant 0 : index
    %244 = vector.load %arg5[%243, %c0_63] : memref<64x256xf32, #tpu.memory_space<vmem>>, vector<8x128xf32>
    %c8_i32_64 = arith.constant 8 : i32
    %245 = arith.muli %240, %c8_i32_64 : i32
    %246 = tpu.assume_multiple %245, 8 : i32
    %247 = arith.index_cast %246 : i32 to index
    %c128_65 = arith.constant 128 : index
    %248 = vector.load %arg5[%247, %c128_65] : memref<64x256xf32, #tpu.memory_space<vmem>>, vector<8x128xf32>
    %249 = arith.truncf %210 : vector<8x32xf32> to vector<8x32xbf16>
    %cst_66 = arith.constant dense<0.000000e+00> : vector<8x128xf32>
    %250 = tpu.matmul %249, %8, %cst_66 {dimension_numbers = #tpu.dot_dimension_numbers<[1], [0], [0], [1], [0, 0, 1, 1], [], []>} : vector<8x32xbf16>, vector<32x128xbf16>, vector<8x128xf32> -> vector<8x128xf32>
    %251 = arith.addf %244, %250 : vector<8x128xf32>
    %252 = vector.extract_strided_slice %251 {offsets = [0, 0], sizes = [8, 96], strides = [1, 1]} : vector<8x128xf32> to vector<8x96xf32>
    %253 = arith.negf %252 : vector<8x96xf32>
    %254 = math.exp %253 : vector<8x96xf32>
    %cst_67 = arith.constant 1.000000e+00 : f32
    %255 = vector.broadcast %cst_67 : f32 to vector<8x96xf32>
    %256 = arith.addf %255, %254 : vector<8x96xf32>
    %257 = arith.divf %255, %256 : vector<8x96xf32>
    %258 = vector.extract_strided_slice %251 {offsets = [0, 96], sizes = [8, 32], strides = [1, 1]} : vector<8x128xf32> to vector<8x32xf32>
    %259 = math.tanh %258 : vector<8x32xf32>
    %260 = vector.extract_strided_slice %257 {offsets = [0, 0], sizes = [8, 32], strides = [1, 1]} : vector<8x96xf32> to vector<8x32xf32>
    %261 = vector.extract_strided_slice %257 {offsets = [0, 32], sizes = [8, 32], strides = [1, 1]} : vector<8x96xf32> to vector<8x32xf32>
    %262 = vector.extract_strided_slice %257 {offsets = [0, 64], sizes = [8, 32], strides = [1, 1]} : vector<8x96xf32> to vector<8x32xf32>
    %263 = arith.mulf %261, %208 : vector<8x32xf32>
    %264 = arith.mulf %260, %259 : vector<8x32xf32>
    %265 = arith.addf %263, %264 : vector<8x32xf32>
    %266 = math.tanh %265 : vector<8x32xf32>
    %267 = arith.mulf %262, %266 : vector<8x32xf32>
    %268 = arith.truncf %229 : vector<8x32xf32> to vector<8x32xbf16>
    %cst_68 = arith.constant dense<0.000000e+00> : vector<8x128xf32>
    %269 = tpu.matmul %268, %10, %cst_68 {dimension_numbers = #tpu.dot_dimension_numbers<[1], [0], [0], [1], [0, 0, 1, 1], [], []>} : vector<8x32xbf16>, vector<32x128xbf16>, vector<8x128xf32> -> vector<8x128xf32>
    %270 = arith.addf %248, %269 : vector<8x128xf32>
    %271 = vector.extract_strided_slice %270 {offsets = [0, 0], sizes = [8, 96], strides = [1, 1]} : vector<8x128xf32> to vector<8x96xf32>
    %272 = arith.negf %271 : vector<8x96xf32>
    %273 = math.exp %272 : vector<8x96xf32>
    %cst_69 = arith.constant 1.000000e+00 : f32
    %274 = vector.broadcast %cst_69 : f32 to vector<8x96xf32>
    %275 = arith.addf %274, %273 : vector<8x96xf32>
    %276 = arith.divf %274, %275 : vector<8x96xf32>
    %277 = vector.extract_strided_slice %270 {offsets = [0, 96], sizes = [8, 32], strides = [1, 1]} : vector<8x128xf32> to vector<8x32xf32>
    %278 = math.tanh %277 : vector<8x32xf32>
    %279 = vector.extract_strided_slice %276 {offsets = [0, 0], sizes = [8, 32], strides = [1, 1]} : vector<8x96xf32> to vector<8x32xf32>
    %280 = vector.extract_strided_slice %276 {offsets = [0, 32], sizes = [8, 32], strides = [1, 1]} : vector<8x96xf32> to vector<8x32xf32>
    %281 = vector.extract_strided_slice %276 {offsets = [0, 64], sizes = [8, 32], strides = [1, 1]} : vector<8x96xf32> to vector<8x32xf32>
    %282 = arith.mulf %280, %227 : vector<8x32xf32>
    %283 = arith.mulf %279, %278 : vector<8x32xf32>
    %284 = arith.addf %282, %283 : vector<8x32xf32>
    %285 = math.tanh %284 : vector<8x32xf32>
    %286 = arith.mulf %281, %285 : vector<8x32xf32>
    %287 = arith.truncf %267 : vector<8x32xf32> to vector<8x32xbf16>
    %288 = arith.index_cast %c4_i32 : i32 to index
    %c0_70 = arith.constant 0 : index
    %c0_71 = arith.constant 0 : index
    %289 = vector.load %arg4[%288, %c0_70, %c0_71] : memref<8x8x64xbf16, #tpu.memory_space<vmem>>, vector<1x8x32xbf16>
    %290 = vector.shape_cast %289 : vector<1x8x32xbf16> to vector<8x32xbf16>
    %291 = vector.shape_cast %287 : vector<8x32xbf16> to vector<1x8x32xbf16>
    tpu.vector_store %arg4[%288, %c0_70, %c0_71], %291 {strides = array<i32>} : memref<8x8x64xbf16, #tpu.memory_space<vmem>>, vector<1x8x32xbf16>,
    %292 = arith.truncf %286 : vector<8x32xf32> to vector<8x32xbf16>
    %293 = arith.index_cast %240 : i32 to index
    %c0_72 = arith.constant 0 : index
    %c32_73 = arith.constant 32 : index
    %294 = vector.load %arg4[%293, %c0_72, %c32_73] : memref<8x8x64xbf16, #tpu.memory_space<vmem>>, vector<1x8x32xbf16>
    %295 = vector.shape_cast %294 : vector<1x8x32xbf16> to vector<8x32xbf16>
    %296 = vector.shape_cast %292 : vector<8x32xbf16> to vector<1x8x32xbf16>
    tpu.vector_store %arg4[%293, %c0_72, %c32_73], %296 {strides = array<i32>} : memref<8x8x64xbf16, #tpu.memory_space<vmem>>, vector<1x8x32xbf16>,
    %c5_i32 = arith.constant 5 : i32
    %c7_i32_74 = arith.constant 7 : i32
    %297 = arith.subi %c7_i32_74, %c5_i32 : i32
    %c8_i32_75 = arith.constant 8 : i32
    %298 = arith.muli %c5_i32, %c8_i32_75 : i32
    %299 = tpu.assume_multiple %298, 8 : i32
    %300 = arith.index_cast %299 : i32 to index
    %c0_76 = arith.constant 0 : index
    %301 = vector.load %arg5[%300, %c0_76] : memref<64x256xf32, #tpu.memory_space<vmem>>, vector<8x128xf32>
    %c8_i32_77 = arith.constant 8 : i32
    %302 = arith.muli %297, %c8_i32_77 : i32
    %303 = tpu.assume_multiple %302, 8 : i32
    %304 = arith.index_cast %303 : i32 to index
    %c128_78 = arith.constant 128 : index
    %305 = vector.load %arg5[%304, %c128_78] : memref<64x256xf32, #tpu.memory_space<vmem>>, vector<8x128xf32>
    %306 = arith.truncf %267 : vector<8x32xf32> to vector<8x32xbf16>
    %cst_79 = arith.constant dense<0.000000e+00> : vector<8x128xf32>
    %307 = tpu.matmul %306, %8, %cst_79 {dimension_numbers = #tpu.dot_dimension_numbers<[1], [0], [0], [1], [0, 0, 1, 1], [], []>} : vector<8x32xbf16>, vector<32x128xbf16>, vector<8x128xf32> -> vector<8x128xf32>
    %308 = arith.addf %301, %307 : vector<8x128xf32>
    %309 = vector.extract_strided_slice %308 {offsets = [0, 0], sizes = [8, 96], strides = [1, 1]} : vector<8x128xf32> to vector<8x96xf32>
    %310 = arith.negf %309 : vector<8x96xf32>
    %311 = math.exp %310 : vector<8x96xf32>
    %cst_80 = arith.constant 1.000000e+00 : f32
    %312 = vector.broadcast %cst_80 : f32 to vector<8x96xf32>
    %313 = arith.addf %312, %311 : vector<8x96xf32>
    %314 = arith.divf %312, %313 : vector<8x96xf32>
    %315 = vector.extract_strided_slice %308 {offsets = [0, 96], sizes = [8, 32], strides = [1, 1]} : vector<8x128xf32> to vector<8x32xf32>
    %316 = math.tanh %315 : vector<8x32xf32>
    %317 = vector.extract_strided_slice %314 {offsets = [0, 0], sizes = [8, 32], strides = [1, 1]} : vector<8x96xf32> to vector<8x32xf32>
    %318 = vector.extract_strided_slice %314 {offsets = [0, 32], sizes = [8, 32], strides = [1, 1]} : vector<8x96xf32> to vector<8x32xf32>
    %319 = vector.extract_strided_slice %314 {offsets = [0, 64], sizes = [8, 32], strides = [1, 1]} : vector<8x96xf32> to vector<8x32xf32>
    %320 = arith.mulf %318, %265 : vector<8x32xf32>
    %321 = arith.mulf %317, %316 : vector<8x32xf32>
    %322 = arith.addf %320, %321 : vector<8x32xf32>
    %323 = math.tanh %322 : vector<8x32xf32>
    %324 = arith.mulf %319, %323 : vector<8x32xf32>
    %325 = arith.truncf %286 : vector<8x32xf32> to vector<8x32xbf16>
    %cst_81 = arith.constant dense<0.000000e+00> : vector<8x128xf32>
    %326 = tpu.matmul %325, %10, %cst_81 {dimension_numbers = #tpu.dot_dimension_numbers<[1], [0], [0], [1], [0, 0, 1, 1], [], []>} : vector<8x32xbf16>, vector<32x128xbf16>, vector<8x128xf32> -> vector<8x128xf32>
    %327 = arith.addf %305, %326 : vector<8x128xf32>
    %328 = vector.extract_strided_slice %327 {offsets = [0, 0], sizes = [8, 96], strides = [1, 1]} : vector<8x128xf32> to vector<8x96xf32>
    %329 = arith.negf %328 : vector<8x96xf32>
    %330 = math.exp %329 : vector<8x96xf32>
    %cst_82 = arith.constant 1.000000e+00 : f32
    %331 = vector.broadcast %cst_82 : f32 to vector<8x96xf32>
    %332 = arith.addf %331, %330 : vector<8x96xf32>
    %333 = arith.divf %331, %332 : vector<8x96xf32>
    %334 = vector.extract_strided_slice %327 {offsets = [0, 96], sizes = [8, 32], strides = [1, 1]} : vector<8x128xf32> to vector<8x32xf32>
    %335 = math.tanh %334 : vector<8x32xf32>
    %336 = vector.extract_strided_slice %333 {offsets = [0, 0], sizes = [8, 32], strides = [1, 1]} : vector<8x96xf32> to vector<8x32xf32>
    %337 = vector.extract_strided_slice %333 {offsets = [0, 32], sizes = [8, 32], strides = [1, 1]} : vector<8x96xf32> to vector<8x32xf32>
    %338 = vector.extract_strided_slice %333 {offsets = [0, 64], sizes = [8, 32], strides = [1, 1]} : vector<8x96xf32> to vector<8x32xf32>
    %339 = arith.mulf %337, %284 : vector<8x32xf32>
    %340 = arith.mulf %336, %335 : vector<8x32xf32>
    %341 = arith.addf %339, %340 : vector<8x32xf32>
    %342 = math.tanh %341 : vector<8x32xf32>
    %343 = arith.mulf %338, %342 : vector<8x32xf32>
    %344 = arith.truncf %324 : vector<8x32xf32> to vector<8x32xbf16>
    %345 = arith.index_cast %c5_i32 : i32 to index
    %c0_83 = arith.constant 0 : index
    %c0_84 = arith.constant 0 : index
    %346 = vector.load %arg4[%345, %c0_83, %c0_84] : memref<8x8x64xbf16, #tpu.memory_space<vmem>>, vector<1x8x32xbf16>
    %347 = vector.shape_cast %346 : vector<1x8x32xbf16> to vector<8x32xbf16>
    %348 = vector.shape_cast %344 : vector<8x32xbf16> to vector<1x8x32xbf16>
    tpu.vector_store %arg4[%345, %c0_83, %c0_84], %348 {strides = array<i32>} : memref<8x8x64xbf16, #tpu.memory_space<vmem>>, vector<1x8x32xbf16>,
    %349 = arith.truncf %343 : vector<8x32xf32> to vector<8x32xbf16>
    %350 = arith.index_cast %297 : i32 to index
    %c0_85 = arith.constant 0 : index
    %c32_86 = arith.constant 32 : index
    %351 = vector.load %arg4[%350, %c0_85, %c32_86] : memref<8x8x64xbf16, #tpu.memory_space<vmem>>, vector<1x8x32xbf16>
    %352 = vector.shape_cast %351 : vector<1x8x32xbf16> to vector<8x32xbf16>
    %353 = vector.shape_cast %349 : vector<8x32xbf16> to vector<1x8x32xbf16>
    tpu.vector_store %arg4[%350, %c0_85, %c32_86], %353 {strides = array<i32>} : memref<8x8x64xbf16, #tpu.memory_space<vmem>>, vector<1x8x32xbf16>,
    %c6_i32 = arith.constant 6 : i32
    %c7_i32_87 = arith.constant 7 : i32
    %354 = arith.subi %c7_i32_87, %c6_i32 : i32
    %c8_i32_88 = arith.constant 8 : i32
    %355 = arith.muli %c6_i32, %c8_i32_88 : i32
    %356 = tpu.assume_multiple %355, 8 : i32
    %357 = arith.index_cast %356 : i32 to index
    %c0_89 = arith.constant 0 : index
    %358 = vector.load %arg5[%357, %c0_89] : memref<64x256xf32, #tpu.memory_space<vmem>>, vector<8x128xf32>
    %c8_i32_90 = arith.constant 8 : i32
    %359 = arith.muli %354, %c8_i32_90 : i32
    %360 = tpu.assume_multiple %359, 8 : i32
    %361 = arith.index_cast %360 : i32 to index
    %c128_91 = arith.constant 128 : index
    %362 = vector.load %arg5[%361, %c128_91] : memref<64x256xf32, #tpu.memory_space<vmem>>, vector<8x128xf32>
    %363 = arith.truncf %324 : vector<8x32xf32> to vector<8x32xbf16>
    %cst_92 = arith.constant dense<0.000000e+00> : vector<8x128xf32>
    %364 = tpu.matmul %363, %8, %cst_92 {dimension_numbers = #tpu.dot_dimension_numbers<[1], [0], [0], [1], [0, 0, 1, 1], [], []>} : vector<8x32xbf16>, vector<32x128xbf16>, vector<8x128xf32> -> vector<8x128xf32>
    %365 = arith.addf %358, %364 : vector<8x128xf32>
    %366 = vector.extract_strided_slice %365 {offsets = [0, 0], sizes = [8, 96], strides = [1, 1]} : vector<8x128xf32> to vector<8x96xf32>
    %367 = arith.negf %366 : vector<8x96xf32>
    %368 = math.exp %367 : vector<8x96xf32>
    %cst_93 = arith.constant 1.000000e+00 : f32
    %369 = vector.broadcast %cst_93 : f32 to vector<8x96xf32>
    %370 = arith.addf %369, %368 : vector<8x96xf32>
    %371 = arith.divf %369, %370 : vector<8x96xf32>
    %372 = vector.extract_strided_slice %365 {offsets = [0, 96], sizes = [8, 32], strides = [1, 1]} : vector<8x128xf32> to vector<8x32xf32>
    %373 = math.tanh %372 : vector<8x32xf32>
    %374 = vector.extract_strided_slice %371 {offsets = [0, 0], sizes = [8, 32], strides = [1, 1]} : vector<8x96xf32> to vector<8x32xf32>
    %375 = vector.extract_strided_slice %371 {offsets = [0, 32], sizes = [8, 32], strides = [1, 1]} : vector<8x96xf32> to vector<8x32xf32>
    %376 = vector.extract_strided_slice %371 {offsets = [0, 64], sizes = [8, 32], strides = [1, 1]} : vector<8x96xf32> to vector<8x32xf32>
    %377 = arith.mulf %375, %322 : vector<8x32xf32>
    %378 = arith.mulf %374, %373 : vector<8x32xf32>
    %379 = arith.addf %377, %378 : vector<8x32xf32>
    %380 = math.tanh %379 : vector<8x32xf32>
    %381 = arith.mulf %376, %380 : vector<8x32xf32>
    %382 = arith.truncf %343 : vector<8x32xf32> to vector<8x32xbf16>
    %cst_94 = arith.constant dense<0.000000e+00> : vector<8x128xf32>
    %383 = tpu.matmul %382, %10, %cst_94 {dimension_numbers = #tpu.dot_dimension_numbers<[1], [0], [0], [1], [0, 0, 1, 1], [], []>} : vector<8x32xbf16>, vector<32x128xbf16>, vector<8x128xf32> -> vector<8x128xf32>
    %384 = arith.addf %362, %383 : vector<8x128xf32>
    %385 = vector.extract_strided_slice %384 {offsets = [0, 0], sizes = [8, 96], strides = [1, 1]} : vector<8x128xf32> to vector<8x96xf32>
    %386 = arith.negf %385 : vector<8x96xf32>
    %387 = math.exp %386 : vector<8x96xf32>
    %cst_95 = arith.constant 1.000000e+00 : f32
    %388 = vector.broadcast %cst_95 : f32 to vector<8x96xf32>
    %389 = arith.addf %388, %387 : vector<8x96xf32>
    %390 = arith.divf %388, %389 : vector<8x96xf32>
    %391 = vector.extract_strided_slice %384 {offsets = [0, 96], sizes = [8, 32], strides = [1, 1]} : vector<8x128xf32> to vector<8x32xf32>
    %392 = math.tanh %391 : vector<8x32xf32>
    %393 = vector.extract_strided_slice %390 {offsets = [0, 0], sizes = [8, 32], strides = [1, 1]} : vector<8x96xf32> to vector<8x32xf32>
    %394 = vector.extract_strided_slice %390 {offsets = [0, 32], sizes = [8, 32], strides = [1, 1]} : vector<8x96xf32> to vector<8x32xf32>
    %395 = vector.extract_strided_slice %390 {offsets = [0, 64], sizes = [8, 32], strides = [1, 1]} : vector<8x96xf32> to vector<8x32xf32>
    %396 = arith.mulf %394, %341 : vector<8x32xf32>
    %397 = arith.mulf %393, %392 : vector<8x32xf32>
    %398 = arith.addf %396, %397 : vector<8x32xf32>
    %399 = math.tanh %398 : vector<8x32xf32>
    %400 = arith.mulf %395, %399 : vector<8x32xf32>
    %401 = arith.truncf %381 : vector<8x32xf32> to vector<8x32xbf16>
    %402 = arith.index_cast %c6_i32 : i32 to index
    %c0_96 = arith.constant 0 : index
    %c0_97 = arith.constant 0 : index
    %403 = vector.load %arg4[%402, %c0_96, %c0_97] : memref<8x8x64xbf16, #tpu.memory_space<vmem>>, vector<1x8x32xbf16>
    %404 = vector.shape_cast %403 : vector<1x8x32xbf16> to vector<8x32xbf16>
    %405 = vector.shape_cast %401 : vector<8x32xbf16> to vector<1x8x32xbf16>
    tpu.vector_store %arg4[%402, %c0_96, %c0_97], %405 {strides = array<i32>} : memref<8x8x64xbf16, #tpu.memory_space<vmem>>, vector<1x8x32xbf16>,
    %406 = arith.truncf %400 : vector<8x32xf32> to vector<8x32xbf16>
    %407 = arith.index_cast %354 : i32 to index
    %c0_98 = arith.constant 0 : index
    %c32_99 = arith.constant 32 : index
    %408 = vector.load %arg4[%407, %c0_98, %c32_99] : memref<8x8x64xbf16, #tpu.memory_space<vmem>>, vector<1x8x32xbf16>
    %409 = vector.shape_cast %408 : vector<1x8x32xbf16> to vector<8x32xbf16>
    %410 = vector.shape_cast %406 : vector<8x32xbf16> to vector<1x8x32xbf16>
    tpu.vector_store %arg4[%407, %c0_98, %c32_99], %410 {strides = array<i32>} : memref<8x8x64xbf16, #tpu.memory_space<vmem>>, vector<1x8x32xbf16>,
    %c7_i32_100 = arith.constant 7 : i32
    %c7_i32_101 = arith.constant 7 : i32
    %411 = arith.subi %c7_i32_101, %c7_i32_100 : i32
    %c8_i32_102 = arith.constant 8 : i32
    %412 = arith.muli %c7_i32_100, %c8_i32_102 : i32
    %413 = tpu.assume_multiple %412, 8 : i32
    %414 = arith.index_cast %413 : i32 to index
    %c0_103 = arith.constant 0 : index
    %415 = vector.load %arg5[%414, %c0_103] : memref<64x256xf32, #tpu.memory_space<vmem>>, vector<8x128xf32>
    %c8_i32_104 = arith.constant 8 : i32
    %416 = arith.muli %411, %c8_i32_104 : i32
    %417 = tpu.assume_multiple %416, 8 : i32
    %418 = arith.index_cast %417 : i32 to index
    %c128_105 = arith.constant 128 : index
    %419 = vector.load %arg5[%418, %c128_105] : memref<64x256xf32, #tpu.memory_space<vmem>>, vector<8x128xf32>
    %420 = arith.truncf %381 : vector<8x32xf32> to vector<8x32xbf16>
    %cst_106 = arith.constant dense<0.000000e+00> : vector<8x128xf32>
    %421 = tpu.matmul %420, %8, %cst_106 {dimension_numbers = #tpu.dot_dimension_numbers<[1], [0], [0], [1], [0, 0, 1, 1], [], []>} : vector<8x32xbf16>, vector<32x128xbf16>, vector<8x128xf32> -> vector<8x128xf32>
    %422 = arith.addf %415, %421 : vector<8x128xf32>
    %423 = vector.extract_strided_slice %422 {offsets = [0, 0], sizes = [8, 96], strides = [1, 1]} : vector<8x128xf32> to vector<8x96xf32>
    %424 = arith.negf %423 : vector<8x96xf32>
    %425 = math.exp %424 : vector<8x96xf32>
    %cst_107 = arith.constant 1.000000e+00 : f32
    %426 = vector.broadcast %cst_107 : f32 to vector<8x96xf32>
    %427 = arith.addf %426, %425 : vector<8x96xf32>
    %428 = arith.divf %426, %427 : vector<8x96xf32>
    %429 = vector.extract_strided_slice %422 {offsets = [0, 96], sizes = [8, 32], strides = [1, 1]} : vector<8x128xf32> to vector<8x32xf32>
    %430 = math.tanh %429 : vector<8x32xf32>
    %431 = vector.extract_strided_slice %428 {offsets = [0, 0], sizes = [8, 32], strides = [1, 1]} : vector<8x96xf32> to vector<8x32xf32>
    %432 = vector.extract_strided_slice %428 {offsets = [0, 32], sizes = [8, 32], strides = [1, 1]} : vector<8x96xf32> to vector<8x32xf32>
    %433 = vector.extract_strided_slice %428 {offsets = [0, 64], sizes = [8, 32], strides = [1, 1]} : vector<8x96xf32> to vector<8x32xf32>
    %434 = arith.mulf %432, %379 : vector<8x32xf32>
    %435 = arith.mulf %431, %430 : vector<8x32xf32>
    %436 = arith.addf %434, %435 : vector<8x32xf32>
    %437 = math.tanh %436 : vector<8x32xf32>
    %438 = arith.mulf %433, %437 : vector<8x32xf32>
    %439 = arith.truncf %400 : vector<8x32xf32> to vector<8x32xbf16>
    %cst_108 = arith.constant dense<0.000000e+00> : vector<8x128xf32>
    %440 = tpu.matmul %439, %10, %cst_108 {dimension_numbers = #tpu.dot_dimension_numbers<[1], [0], [0], [1], [0, 0, 1, 1], [], []>} : vector<8x32xbf16>, vector<32x128xbf16>, vector<8x128xf32> -> vector<8x128xf32>
    %441 = arith.addf %419, %440 : vector<8x128xf32>
    %442 = vector.extract_strided_slice %441 {offsets = [0, 0], sizes = [8, 96], strides = [1, 1]} : vector<8x128xf32> to vector<8x96xf32>
    %443 = arith.negf %442 : vector<8x96xf32>
    %444 = math.exp %443 : vector<8x96xf32>
    %cst_109 = arith.constant 1.000000e+00 : f32
    %445 = vector.broadcast %cst_109 : f32 to vector<8x96xf32>
    %446 = arith.addf %445, %444 : vector<8x96xf32>
    %447 = arith.divf %445, %446 : vector<8x96xf32>
    %448 = vector.extract_strided_slice %441 {offsets = [0, 96], sizes = [8, 32], strides = [1, 1]} : vector<8x128xf32> to vector<8x32xf32>
    %449 = math.tanh %448 : vector<8x32xf32>
    %450 = vector.extract_strided_slice %447 {offsets = [0, 0], sizes = [8, 32], strides = [1, 1]} : vector<8x96xf32> to vector<8x32xf32>
    %451 = vector.extract_strided_slice %447 {offsets = [0, 32], sizes = [8, 32], strides = [1, 1]} : vector<8x96xf32> to vector<8x32xf32>
    %452 = vector.extract_strided_slice %447 {offsets = [0, 64], sizes = [8, 32], strides = [1, 1]} : vector<8x96xf32> to vector<8x32xf32>
    %453 = arith.mulf %451, %398 : vector<8x32xf32>
    %454 = arith.mulf %450, %449 : vector<8x32xf32>
    %455 = arith.addf %453, %454 : vector<8x32xf32>
    %456 = math.tanh %455 : vector<8x32xf32>
    %457 = arith.mulf %452, %456 : vector<8x32xf32>
    %458 = arith.truncf %438 : vector<8x32xf32> to vector<8x32xbf16>
    %459 = arith.index_cast %c7_i32_100 : i32 to index
    %c0_110 = arith.constant 0 : index
    %c0_111 = arith.constant 0 : index
    %460 = vector.load %arg4[%459, %c0_110, %c0_111] : memref<8x8x64xbf16, #tpu.memory_space<vmem>>, vector<1x8x32xbf16>
    %461 = vector.shape_cast %460 : vector<1x8x32xbf16> to vector<8x32xbf16>
    %462 = vector.shape_cast %458 : vector<8x32xbf16> to vector<1x8x32xbf16>
    tpu.vector_store %arg4[%459, %c0_110, %c0_111], %462 {strides = array<i32>} : memref<8x8x64xbf16, #tpu.memory_space<vmem>>, vector<1x8x32xbf16>,
    %463 = arith.truncf %457 : vector<8x32xf32> to vector<8x32xbf16>
    %464 = arith.index_cast %411 : i32 to index
    %c0_112 = arith.constant 0 : index
    %c32_113 = arith.constant 32 : index
    %465 = vector.load %arg4[%464, %c0_112, %c32_113] : memref<8x8x64xbf16, #tpu.memory_space<vmem>>, vector<1x8x32xbf16>
    %466 = vector.shape_cast %465 : vector<1x8x32xbf16> to vector<8x32xbf16>
    %467 = vector.shape_cast %463 : vector<8x32xbf16> to vector<1x8x32xbf16>
    tpu.vector_store %arg4[%464, %c0_112, %c32_113], %467 {strides = array<i32>} : memref<8x8x64xbf16, #tpu.memory_space<vmem>>, vector<1x8x32xbf16>,
    %c8_i32_114 = arith.constant 8 : i32
    return
  }
}

module attributes {stable_mosaic.version = 11 : i64} {
  func.func @_bilstm_last_fc_kernel(%arg0: memref<64x64xbf16, #tpu.memory_space<vmem>>, %arg1: memref<64x256xbf16, #tpu.memory_space<vmem>>, %arg2: memref<2x32x128xbf16, #tpu.memory_space<vmem>>, %arg3: memref<1x256xf32, #tpu.memory_space<vmem>>, %arg4: memref<64x3xf32, #tpu.memory_space<vmem>>, %arg5: memref<1x3xf32, #tpu.memory_space<vmem>>, %arg6: memref<8x3xf32, #tpu.memory_space<vmem>>, %arg7: memref<64x256xf32, #tpu.memory_space<vmem>>) attributes {dimension_semantics = [], scalar_prefetch = 0 : i64, scratch_operands = 1 : i64, tpu.core_type = #tpu.core_type<tc>} {
    %c0 = arith.constant 0 : index
    %c0_0 = arith.constant 0 : index
    %0 = vector.load %arg0[%c0, %c0_0] : memref<64x64xbf16, #tpu.memory_space<vmem>>, vector<64x64xbf16>
    %c0_1 = arith.constant 0 : index
    %c0_2 = arith.constant 0 : index
    %1 = vector.load %arg1[%c0_1, %c0_2] : memref<64x256xbf16, #tpu.memory_space<vmem>>, vector<64x256xbf16>
    %cst = arith.constant dense<0.000000e+00> : vector<64x256xf32>
    %2 = tpu.matmul %0, %1, %cst {dimension_numbers = #tpu.dot_dimension_numbers<[1], [0], [0], [1], [0, 0, 1, 1], [], []>} : vector<64x64xbf16>, vector<64x256xbf16>, vector<64x256xf32> -> vector<64x256xf32>
    %c0_3 = arith.constant 0 : index
    %c0_4 = arith.constant 0 : index
    %3 = vector.load %arg3[%c0_3, %c0_4] : memref<1x256xf32, #tpu.memory_space<vmem>>, vector<1x256xf32>
    %4 = vector.broadcast %3 : vector<1x256xf32> to vector<64x256xf32>
    %5 = arith.addf %2, %4 : vector<64x256xf32>
    %c0_5 = arith.constant 0 : index
    %c0_6 = arith.constant 0 : index
    %6 = vector.load %arg7[%c0_5, %c0_6] : memref<64x256xf32, #tpu.memory_space<vmem>>, vector<64x256xf32>
    tpu.vector_store %arg7[%c0_5, %c0_6], %5 {strides = array<i32>} : memref<64x256xf32, #tpu.memory_space<vmem>>, vector<64x256xf32>,
    %c0_7 = arith.constant 0 : index
    %c0_8 = arith.constant 0 : index
    %c0_9 = arith.constant 0 : index
    %7 = vector.load %arg2[%c0_7, %c0_8, %c0_9] : memref<2x32x128xbf16, #tpu.memory_space<vmem>>, vector<1x32x128xbf16>
    %8 = vector.shape_cast %7 : vector<1x32x128xbf16> to vector<32x128xbf16>
    %c1 = arith.constant 1 : index
    %c0_10 = arith.constant 0 : index
    %c0_11 = arith.constant 0 : index
    %9 = vector.load %arg2[%c1, %c0_10, %c0_11] : memref<2x32x128xbf16, #tpu.memory_space<vmem>>, vector<1x32x128xbf16>
    %10 = vector.shape_cast %9 : vector<1x32x128xbf16> to vector<32x128xbf16>
    %cst_12 = arith.constant 0.000000e+00 : f32
    %11 = vector.broadcast %cst_12 : f32 to vector<8x32xf32>
    %c0_i32 = arith.constant 0 : i32
    %c7_i32 = arith.constant 7 : i32
    %12 = arith.subi %c7_i32, %c0_i32 : i32
    %c8_i32 = arith.constant 8 : i32
    %13 = arith.muli %c0_i32, %c8_i32 : i32
    %14 = tpu.assume_multiple %13, 8 : i32
    %15 = arith.index_cast %14 : i32 to index
    %c0_13 = arith.constant 0 : index
    %16 = vector.load %arg7[%15, %c0_13] : memref<64x256xf32, #tpu.memory_space<vmem>>, vector<8x128xf32>
    %c8_i32_14 = arith.constant 8 : i32
    %17 = arith.muli %12, %c8_i32_14 : i32
    %18 = tpu.assume_multiple %17, 8 : i32
    %19 = arith.index_cast %18 : i32 to index
    %c128 = arith.constant 128 : index
    %20 = vector.load %arg7[%19, %c128] : memref<64x256xf32, #tpu.memory_space<vmem>>, vector<8x128xf32>
    %21 = arith.truncf %11 : vector<8x32xf32> to vector<8x32xbf16>
    %cst_15 = arith.constant dense<0.000000e+00> : vector<8x128xf32>
    %22 = tpu.matmul %21, %8, %cst_15 {dimension_numbers = #tpu.dot_dimension_numbers<[1], [0], [0], [1], [0, 0, 1, 1], [], []>} : vector<8x32xbf16>, vector<32x128xbf16>, vector<8x128xf32> -> vector<8x128xf32>
    %23 = arith.addf %16, %22 : vector<8x128xf32>
    %24 = vector.extract_strided_slice %23 {offsets = [0, 0], sizes = [8, 96], strides = [1, 1]} : vector<8x128xf32> to vector<8x96xf32>
    %25 = arith.negf %24 : vector<8x96xf32>
    %26 = math.exp %25 : vector<8x96xf32>
    %cst_16 = arith.constant 1.000000e+00 : f32
    %27 = vector.broadcast %cst_16 : f32 to vector<8x96xf32>
    %28 = arith.addf %27, %26 : vector<8x96xf32>
    %29 = arith.divf %27, %28 : vector<8x96xf32>
    %30 = vector.extract_strided_slice %23 {offsets = [0, 96], sizes = [8, 32], strides = [1, 1]} : vector<8x128xf32> to vector<8x32xf32>
    %31 = math.tanh %30 : vector<8x32xf32>
    %32 = vector.extract_strided_slice %29 {offsets = [0, 0], sizes = [8, 32], strides = [1, 1]} : vector<8x96xf32> to vector<8x32xf32>
    %33 = vector.extract_strided_slice %29 {offsets = [0, 32], sizes = [8, 32], strides = [1, 1]} : vector<8x96xf32> to vector<8x32xf32>
    %34 = vector.extract_strided_slice %29 {offsets = [0, 64], sizes = [8, 32], strides = [1, 1]} : vector<8x96xf32> to vector<8x32xf32>
    %35 = arith.mulf %33, %11 : vector<8x32xf32>
    %36 = arith.mulf %32, %31 : vector<8x32xf32>
    %37 = arith.addf %35, %36 : vector<8x32xf32>
    %38 = math.tanh %37 : vector<8x32xf32>
    %39 = arith.mulf %34, %38 : vector<8x32xf32>
    %40 = arith.truncf %11 : vector<8x32xf32> to vector<8x32xbf16>
    %cst_17 = arith.constant dense<0.000000e+00> : vector<8x128xf32>
    %41 = tpu.matmul %40, %10, %cst_17 {dimension_numbers = #tpu.dot_dimension_numbers<[1], [0], [0], [1], [0, 0, 1, 1], [], []>} : vector<8x32xbf16>, vector<32x128xbf16>, vector<8x128xf32> -> vector<8x128xf32>
    %42 = arith.addf %20, %41 : vector<8x128xf32>
    %43 = vector.extract_strided_slice %42 {offsets = [0, 0], sizes = [8, 96], strides = [1, 1]} : vector<8x128xf32> to vector<8x96xf32>
    %44 = arith.negf %43 : vector<8x96xf32>
    %45 = math.exp %44 : vector<8x96xf32>
    %cst_18 = arith.constant 1.000000e+00 : f32
    %46 = vector.broadcast %cst_18 : f32 to vector<8x96xf32>
    %47 = arith.addf %46, %45 : vector<8x96xf32>
    %48 = arith.divf %46, %47 : vector<8x96xf32>
    %49 = vector.extract_strided_slice %42 {offsets = [0, 96], sizes = [8, 32], strides = [1, 1]} : vector<8x128xf32> to vector<8x32xf32>
    %50 = math.tanh %49 : vector<8x32xf32>
    %51 = vector.extract_strided_slice %48 {offsets = [0, 0], sizes = [8, 32], strides = [1, 1]} : vector<8x96xf32> to vector<8x32xf32>
    %52 = vector.extract_strided_slice %48 {offsets = [0, 32], sizes = [8, 32], strides = [1, 1]} : vector<8x96xf32> to vector<8x32xf32>
    %53 = vector.extract_strided_slice %48 {offsets = [0, 64], sizes = [8, 32], strides = [1, 1]} : vector<8x96xf32> to vector<8x32xf32>
    %54 = arith.mulf %52, %11 : vector<8x32xf32>
    %55 = arith.mulf %51, %50 : vector<8x32xf32>
    %56 = arith.addf %54, %55 : vector<8x32xf32>
    %57 = math.tanh %56 : vector<8x32xf32>
    %58 = arith.mulf %53, %57 : vector<8x32xf32>
    %c1_i32 = arith.constant 1 : i32
    %c7_i32_19 = arith.constant 7 : i32
    %59 = arith.subi %c7_i32_19, %c1_i32 : i32
    %c8_i32_20 = arith.constant 8 : i32
    %60 = arith.muli %c1_i32, %c8_i32_20 : i32
    %61 = tpu.assume_multiple %60, 8 : i32
    %62 = arith.index_cast %61 : i32 to index
    %c0_21 = arith.constant 0 : index
    %63 = vector.load %arg7[%62, %c0_21] : memref<64x256xf32, #tpu.memory_space<vmem>>, vector<8x128xf32>
    %c8_i32_22 = arith.constant 8 : i32
    %64 = arith.muli %59, %c8_i32_22 : i32
    %65 = tpu.assume_multiple %64, 8 : i32
    %66 = arith.index_cast %65 : i32 to index
    %c128_23 = arith.constant 128 : index
    %67 = vector.load %arg7[%66, %c128_23] : memref<64x256xf32, #tpu.memory_space<vmem>>, vector<8x128xf32>
    %68 = arith.truncf %39 : vector<8x32xf32> to vector<8x32xbf16>
    %cst_24 = arith.constant dense<0.000000e+00> : vector<8x128xf32>
    %69 = tpu.matmul %68, %8, %cst_24 {dimension_numbers = #tpu.dot_dimension_numbers<[1], [0], [0], [1], [0, 0, 1, 1], [], []>} : vector<8x32xbf16>, vector<32x128xbf16>, vector<8x128xf32> -> vector<8x128xf32>
    %70 = arith.addf %63, %69 : vector<8x128xf32>
    %71 = vector.extract_strided_slice %70 {offsets = [0, 0], sizes = [8, 96], strides = [1, 1]} : vector<8x128xf32> to vector<8x96xf32>
    %72 = arith.negf %71 : vector<8x96xf32>
    %73 = math.exp %72 : vector<8x96xf32>
    %cst_25 = arith.constant 1.000000e+00 : f32
    %74 = vector.broadcast %cst_25 : f32 to vector<8x96xf32>
    %75 = arith.addf %74, %73 : vector<8x96xf32>
    %76 = arith.divf %74, %75 : vector<8x96xf32>
    %77 = vector.extract_strided_slice %70 {offsets = [0, 96], sizes = [8, 32], strides = [1, 1]} : vector<8x128xf32> to vector<8x32xf32>
    %78 = math.tanh %77 : vector<8x32xf32>
    %79 = vector.extract_strided_slice %76 {offsets = [0, 0], sizes = [8, 32], strides = [1, 1]} : vector<8x96xf32> to vector<8x32xf32>
    %80 = vector.extract_strided_slice %76 {offsets = [0, 32], sizes = [8, 32], strides = [1, 1]} : vector<8x96xf32> to vector<8x32xf32>
    %81 = vector.extract_strided_slice %76 {offsets = [0, 64], sizes = [8, 32], strides = [1, 1]} : vector<8x96xf32> to vector<8x32xf32>
    %82 = arith.mulf %80, %37 : vector<8x32xf32>
    %83 = arith.mulf %79, %78 : vector<8x32xf32>
    %84 = arith.addf %82, %83 : vector<8x32xf32>
    %85 = math.tanh %84 : vector<8x32xf32>
    %86 = arith.mulf %81, %85 : vector<8x32xf32>
    %87 = arith.truncf %58 : vector<8x32xf32> to vector<8x32xbf16>
    %cst_26 = arith.constant dense<0.000000e+00> : vector<8x128xf32>
    %88 = tpu.matmul %87, %10, %cst_26 {dimension_numbers = #tpu.dot_dimension_numbers<[1], [0], [0], [1], [0, 0, 1, 1], [], []>} : vector<8x32xbf16>, vector<32x128xbf16>, vector<8x128xf32> -> vector<8x128xf32>
    %89 = arith.addf %67, %88 : vector<8x128xf32>
    %90 = vector.extract_strided_slice %89 {offsets = [0, 0], sizes = [8, 96], strides = [1, 1]} : vector<8x128xf32> to vector<8x96xf32>
    %91 = arith.negf %90 : vector<8x96xf32>
    %92 = math.exp %91 : vector<8x96xf32>
    %cst_27 = arith.constant 1.000000e+00 : f32
    %93 = vector.broadcast %cst_27 : f32 to vector<8x96xf32>
    %94 = arith.addf %93, %92 : vector<8x96xf32>
    %95 = arith.divf %93, %94 : vector<8x96xf32>
    %96 = vector.extract_strided_slice %89 {offsets = [0, 96], sizes = [8, 32], strides = [1, 1]} : vector<8x128xf32> to vector<8x32xf32>
    %97 = math.tanh %96 : vector<8x32xf32>
    %98 = vector.extract_strided_slice %95 {offsets = [0, 0], sizes = [8, 32], strides = [1, 1]} : vector<8x96xf32> to vector<8x32xf32>
    %99 = vector.extract_strided_slice %95 {offsets = [0, 32], sizes = [8, 32], strides = [1, 1]} : vector<8x96xf32> to vector<8x32xf32>
    %100 = vector.extract_strided_slice %95 {offsets = [0, 64], sizes = [8, 32], strides = [1, 1]} : vector<8x96xf32> to vector<8x32xf32>
    %101 = arith.mulf %99, %56 : vector<8x32xf32>
    %102 = arith.mulf %98, %97 : vector<8x32xf32>
    %103 = arith.addf %101, %102 : vector<8x32xf32>
    %104 = math.tanh %103 : vector<8x32xf32>
    %105 = arith.mulf %100, %104 : vector<8x32xf32>
    %c2_i32 = arith.constant 2 : i32
    %c7_i32_28 = arith.constant 7 : i32
    %106 = arith.subi %c7_i32_28, %c2_i32 : i32
    %c8_i32_29 = arith.constant 8 : i32
    %107 = arith.muli %c2_i32, %c8_i32_29 : i32
    %108 = tpu.assume_multiple %107, 8 : i32
    %109 = arith.index_cast %108 : i32 to index
    %c0_30 = arith.constant 0 : index
    %110 = vector.load %arg7[%109, %c0_30] : memref<64x256xf32, #tpu.memory_space<vmem>>, vector<8x128xf32>
    %c8_i32_31 = arith.constant 8 : i32
    %111 = arith.muli %106, %c8_i32_31 : i32
    %112 = tpu.assume_multiple %111, 8 : i32
    %113 = arith.index_cast %112 : i32 to index
    %c128_32 = arith.constant 128 : index
    %114 = vector.load %arg7[%113, %c128_32] : memref<64x256xf32, #tpu.memory_space<vmem>>, vector<8x128xf32>
    %115 = arith.truncf %86 : vector<8x32xf32> to vector<8x32xbf16>
    %cst_33 = arith.constant dense<0.000000e+00> : vector<8x128xf32>
    %116 = tpu.matmul %115, %8, %cst_33 {dimension_numbers = #tpu.dot_dimension_numbers<[1], [0], [0], [1], [0, 0, 1, 1], [], []>} : vector<8x32xbf16>, vector<32x128xbf16>, vector<8x128xf32> -> vector<8x128xf32>
    %117 = arith.addf %110, %116 : vector<8x128xf32>
    %118 = vector.extract_strided_slice %117 {offsets = [0, 0], sizes = [8, 96], strides = [1, 1]} : vector<8x128xf32> to vector<8x96xf32>
    %119 = arith.negf %118 : vector<8x96xf32>
    %120 = math.exp %119 : vector<8x96xf32>
    %cst_34 = arith.constant 1.000000e+00 : f32
    %121 = vector.broadcast %cst_34 : f32 to vector<8x96xf32>
    %122 = arith.addf %121, %120 : vector<8x96xf32>
    %123 = arith.divf %121, %122 : vector<8x96xf32>
    %124 = vector.extract_strided_slice %117 {offsets = [0, 96], sizes = [8, 32], strides = [1, 1]} : vector<8x128xf32> to vector<8x32xf32>
    %125 = math.tanh %124 : vector<8x32xf32>
    %126 = vector.extract_strided_slice %123 {offsets = [0, 0], sizes = [8, 32], strides = [1, 1]} : vector<8x96xf32> to vector<8x32xf32>
    %127 = vector.extract_strided_slice %123 {offsets = [0, 32], sizes = [8, 32], strides = [1, 1]} : vector<8x96xf32> to vector<8x32xf32>
    %128 = vector.extract_strided_slice %123 {offsets = [0, 64], sizes = [8, 32], strides = [1, 1]} : vector<8x96xf32> to vector<8x32xf32>
    %129 = arith.mulf %127, %84 : vector<8x32xf32>
    %130 = arith.mulf %126, %125 : vector<8x32xf32>
    %131 = arith.addf %129, %130 : vector<8x32xf32>
    %132 = math.tanh %131 : vector<8x32xf32>
    %133 = arith.mulf %128, %132 : vector<8x32xf32>
    %134 = arith.truncf %105 : vector<8x32xf32> to vector<8x32xbf16>
    %cst_35 = arith.constant dense<0.000000e+00> : vector<8x128xf32>
    %135 = tpu.matmul %134, %10, %cst_35 {dimension_numbers = #tpu.dot_dimension_numbers<[1], [0], [0], [1], [0, 0, 1, 1], [], []>} : vector<8x32xbf16>, vector<32x128xbf16>, vector<8x128xf32> -> vector<8x128xf32>
    %136 = arith.addf %114, %135 : vector<8x128xf32>
    %137 = vector.extract_strided_slice %136 {offsets = [0, 0], sizes = [8, 96], strides = [1, 1]} : vector<8x128xf32> to vector<8x96xf32>
    %138 = arith.negf %137 : vector<8x96xf32>
    %139 = math.exp %138 : vector<8x96xf32>
    %cst_36 = arith.constant 1.000000e+00 : f32
    %140 = vector.broadcast %cst_36 : f32 to vector<8x96xf32>
    %141 = arith.addf %140, %139 : vector<8x96xf32>
    %142 = arith.divf %140, %141 : vector<8x96xf32>
    %143 = vector.extract_strided_slice %136 {offsets = [0, 96], sizes = [8, 32], strides = [1, 1]} : vector<8x128xf32> to vector<8x32xf32>
    %144 = math.tanh %143 : vector<8x32xf32>
    %145 = vector.extract_strided_slice %142 {offsets = [0, 0], sizes = [8, 32], strides = [1, 1]} : vector<8x96xf32> to vector<8x32xf32>
    %146 = vector.extract_strided_slice %142 {offsets = [0, 32], sizes = [8, 32], strides = [1, 1]} : vector<8x96xf32> to vector<8x32xf32>
    %147 = vector.extract_strided_slice %142 {offsets = [0, 64], sizes = [8, 32], strides = [1, 1]} : vector<8x96xf32> to vector<8x32xf32>
    %148 = arith.mulf %146, %103 : vector<8x32xf32>
    %149 = arith.mulf %145, %144 : vector<8x32xf32>
    %150 = arith.addf %148, %149 : vector<8x32xf32>
    %151 = math.tanh %150 : vector<8x32xf32>
    %152 = arith.mulf %147, %151 : vector<8x32xf32>
    %c3_i32 = arith.constant 3 : i32
    %c7_i32_37 = arith.constant 7 : i32
    %153 = arith.subi %c7_i32_37, %c3_i32 : i32
    %c8_i32_38 = arith.constant 8 : i32
    %154 = arith.muli %c3_i32, %c8_i32_38 : i32
    %155 = tpu.assume_multiple %154, 8 : i32
    %156 = arith.index_cast %155 : i32 to index
    %c0_39 = arith.constant 0 : index
    %157 = vector.load %arg7[%156, %c0_39] : memref<64x256xf32, #tpu.memory_space<vmem>>, vector<8x128xf32>
    %c8_i32_40 = arith.constant 8 : i32
    %158 = arith.muli %153, %c8_i32_40 : i32
    %159 = tpu.assume_multiple %158, 8 : i32
    %160 = arith.index_cast %159 : i32 to index
    %c128_41 = arith.constant 128 : index
    %161 = vector.load %arg7[%160, %c128_41] : memref<64x256xf32, #tpu.memory_space<vmem>>, vector<8x128xf32>
    %162 = arith.truncf %133 : vector<8x32xf32> to vector<8x32xbf16>
    %cst_42 = arith.constant dense<0.000000e+00> : vector<8x128xf32>
    %163 = tpu.matmul %162, %8, %cst_42 {dimension_numbers = #tpu.dot_dimension_numbers<[1], [0], [0], [1], [0, 0, 1, 1], [], []>} : vector<8x32xbf16>, vector<32x128xbf16>, vector<8x128xf32> -> vector<8x128xf32>
    %164 = arith.addf %157, %163 : vector<8x128xf32>
    %165 = vector.extract_strided_slice %164 {offsets = [0, 0], sizes = [8, 96], strides = [1, 1]} : vector<8x128xf32> to vector<8x96xf32>
    %166 = arith.negf %165 : vector<8x96xf32>
    %167 = math.exp %166 : vector<8x96xf32>
    %cst_43 = arith.constant 1.000000e+00 : f32
    %168 = vector.broadcast %cst_43 : f32 to vector<8x96xf32>
    %169 = arith.addf %168, %167 : vector<8x96xf32>
    %170 = arith.divf %168, %169 : vector<8x96xf32>
    %171 = vector.extract_strided_slice %164 {offsets = [0, 96], sizes = [8, 32], strides = [1, 1]} : vector<8x128xf32> to vector<8x32xf32>
    %172 = math.tanh %171 : vector<8x32xf32>
    %173 = vector.extract_strided_slice %170 {offsets = [0, 0], sizes = [8, 32], strides = [1, 1]} : vector<8x96xf32> to vector<8x32xf32>
    %174 = vector.extract_strided_slice %170 {offsets = [0, 32], sizes = [8, 32], strides = [1, 1]} : vector<8x96xf32> to vector<8x32xf32>
    %175 = vector.extract_strided_slice %170 {offsets = [0, 64], sizes = [8, 32], strides = [1, 1]} : vector<8x96xf32> to vector<8x32xf32>
    %176 = arith.mulf %174, %131 : vector<8x32xf32>
    %177 = arith.mulf %173, %172 : vector<8x32xf32>
    %178 = arith.addf %176, %177 : vector<8x32xf32>
    %179 = math.tanh %178 : vector<8x32xf32>
    %180 = arith.mulf %175, %179 : vector<8x32xf32>
    %181 = arith.truncf %152 : vector<8x32xf32> to vector<8x32xbf16>
    %cst_44 = arith.constant dense<0.000000e+00> : vector<8x128xf32>
    %182 = tpu.matmul %181, %10, %cst_44 {dimension_numbers = #tpu.dot_dimension_numbers<[1], [0], [0], [1], [0, 0, 1, 1], [], []>} : vector<8x32xbf16>, vector<32x128xbf16>, vector<8x128xf32> -> vector<8x128xf32>
    %183 = arith.addf %161, %182 : vector<8x128xf32>
    %184 = vector.extract_strided_slice %183 {offsets = [0, 0], sizes = [8, 96], strides = [1, 1]} : vector<8x128xf32> to vector<8x96xf32>
    %185 = arith.negf %184 : vector<8x96xf32>
    %186 = math.exp %185 : vector<8x96xf32>
    %cst_45 = arith.constant 1.000000e+00 : f32
    %187 = vector.broadcast %cst_45 : f32 to vector<8x96xf32>
    %188 = arith.addf %187, %186 : vector<8x96xf32>
    %189 = arith.divf %187, %188 : vector<8x96xf32>
    %190 = vector.extract_strided_slice %183 {offsets = [0, 96], sizes = [8, 32], strides = [1, 1]} : vector<8x128xf32> to vector<8x32xf32>
    %191 = math.tanh %190 : vector<8x32xf32>
    %192 = vector.extract_strided_slice %189 {offsets = [0, 0], sizes = [8, 32], strides = [1, 1]} : vector<8x96xf32> to vector<8x32xf32>
    %193 = vector.extract_strided_slice %189 {offsets = [0, 32], sizes = [8, 32], strides = [1, 1]} : vector<8x96xf32> to vector<8x32xf32>
    %194 = vector.extract_strided_slice %189 {offsets = [0, 64], sizes = [8, 32], strides = [1, 1]} : vector<8x96xf32> to vector<8x32xf32>
    %195 = arith.mulf %193, %150 : vector<8x32xf32>
    %196 = arith.mulf %192, %191 : vector<8x32xf32>
    %197 = arith.addf %195, %196 : vector<8x32xf32>
    %198 = math.tanh %197 : vector<8x32xf32>
    %199 = arith.mulf %194, %198 : vector<8x32xf32>
    %c4_i32 = arith.constant 4 : i32
    %c7_i32_46 = arith.constant 7 : i32
    %200 = arith.subi %c7_i32_46, %c4_i32 : i32
    %c8_i32_47 = arith.constant 8 : i32
    %201 = arith.muli %c4_i32, %c8_i32_47 : i32
    %202 = tpu.assume_multiple %201, 8 : i32
    %203 = arith.index_cast %202 : i32 to index
    %c0_48 = arith.constant 0 : index
    %204 = vector.load %arg7[%203, %c0_48] : memref<64x256xf32, #tpu.memory_space<vmem>>, vector<8x128xf32>
    %c8_i32_49 = arith.constant 8 : i32
    %205 = arith.muli %200, %c8_i32_49 : i32
    %206 = tpu.assume_multiple %205, 8 : i32
    %207 = arith.index_cast %206 : i32 to index
    %c128_50 = arith.constant 128 : index
    %208 = vector.load %arg7[%207, %c128_50] : memref<64x256xf32, #tpu.memory_space<vmem>>, vector<8x128xf32>
    %209 = arith.truncf %180 : vector<8x32xf32> to vector<8x32xbf16>
    %cst_51 = arith.constant dense<0.000000e+00> : vector<8x128xf32>
    %210 = tpu.matmul %209, %8, %cst_51 {dimension_numbers = #tpu.dot_dimension_numbers<[1], [0], [0], [1], [0, 0, 1, 1], [], []>} : vector<8x32xbf16>, vector<32x128xbf16>, vector<8x128xf32> -> vector<8x128xf32>
    %211 = arith.addf %204, %210 : vector<8x128xf32>
    %212 = vector.extract_strided_slice %211 {offsets = [0, 0], sizes = [8, 96], strides = [1, 1]} : vector<8x128xf32> to vector<8x96xf32>
    %213 = arith.negf %212 : vector<8x96xf32>
    %214 = math.exp %213 : vector<8x96xf32>
    %cst_52 = arith.constant 1.000000e+00 : f32
    %215 = vector.broadcast %cst_52 : f32 to vector<8x96xf32>
    %216 = arith.addf %215, %214 : vector<8x96xf32>
    %217 = arith.divf %215, %216 : vector<8x96xf32>
    %218 = vector.extract_strided_slice %211 {offsets = [0, 96], sizes = [8, 32], strides = [1, 1]} : vector<8x128xf32> to vector<8x32xf32>
    %219 = math.tanh %218 : vector<8x32xf32>
    %220 = vector.extract_strided_slice %217 {offsets = [0, 0], sizes = [8, 32], strides = [1, 1]} : vector<8x96xf32> to vector<8x32xf32>
    %221 = vector.extract_strided_slice %217 {offsets = [0, 32], sizes = [8, 32], strides = [1, 1]} : vector<8x96xf32> to vector<8x32xf32>
    %222 = vector.extract_strided_slice %217 {offsets = [0, 64], sizes = [8, 32], strides = [1, 1]} : vector<8x96xf32> to vector<8x32xf32>
    %223 = arith.mulf %221, %178 : vector<8x32xf32>
    %224 = arith.mulf %220, %219 : vector<8x32xf32>
    %225 = arith.addf %223, %224 : vector<8x32xf32>
    %226 = math.tanh %225 : vector<8x32xf32>
    %227 = arith.mulf %222, %226 : vector<8x32xf32>
    %228 = arith.truncf %199 : vector<8x32xf32> to vector<8x32xbf16>
    %cst_53 = arith.constant dense<0.000000e+00> : vector<8x128xf32>
    %229 = tpu.matmul %228, %10, %cst_53 {dimension_numbers = #tpu.dot_dimension_numbers<[1], [0], [0], [1], [0, 0, 1, 1], [], []>} : vector<8x32xbf16>, vector<32x128xbf16>, vector<8x128xf32> -> vector<8x128xf32>
    %230 = arith.addf %208, %229 : vector<8x128xf32>
    %231 = vector.extract_strided_slice %230 {offsets = [0, 0], sizes = [8, 96], strides = [1, 1]} : vector<8x128xf32> to vector<8x96xf32>
    %232 = arith.negf %231 : vector<8x96xf32>
    %233 = math.exp %232 : vector<8x96xf32>
    %cst_54 = arith.constant 1.000000e+00 : f32
    %234 = vector.broadcast %cst_54 : f32 to vector<8x96xf32>
    %235 = arith.addf %234, %233 : vector<8x96xf32>
    %236 = arith.divf %234, %235 : vector<8x96xf32>
    %237 = vector.extract_strided_slice %230 {offsets = [0, 96], sizes = [8, 32], strides = [1, 1]} : vector<8x128xf32> to vector<8x32xf32>
    %238 = math.tanh %237 : vector<8x32xf32>
    %239 = vector.extract_strided_slice %236 {offsets = [0, 0], sizes = [8, 32], strides = [1, 1]} : vector<8x96xf32> to vector<8x32xf32>
    %240 = vector.extract_strided_slice %236 {offsets = [0, 32], sizes = [8, 32], strides = [1, 1]} : vector<8x96xf32> to vector<8x32xf32>
    %241 = vector.extract_strided_slice %236 {offsets = [0, 64], sizes = [8, 32], strides = [1, 1]} : vector<8x96xf32> to vector<8x32xf32>
    %242 = arith.mulf %240, %197 : vector<8x32xf32>
    %243 = arith.mulf %239, %238 : vector<8x32xf32>
    %244 = arith.addf %242, %243 : vector<8x32xf32>
    %245 = math.tanh %244 : vector<8x32xf32>
    %246 = arith.mulf %241, %245 : vector<8x32xf32>
    %c5_i32 = arith.constant 5 : i32
    %c7_i32_55 = arith.constant 7 : i32
    %247 = arith.subi %c7_i32_55, %c5_i32 : i32
    %c8_i32_56 = arith.constant 8 : i32
    %248 = arith.muli %c5_i32, %c8_i32_56 : i32
    %249 = tpu.assume_multiple %248, 8 : i32
    %250 = arith.index_cast %249 : i32 to index
    %c0_57 = arith.constant 0 : index
    %251 = vector.load %arg7[%250, %c0_57] : memref<64x256xf32, #tpu.memory_space<vmem>>, vector<8x128xf32>
    %c8_i32_58 = arith.constant 8 : i32
    %252 = arith.muli %247, %c8_i32_58 : i32
    %253 = tpu.assume_multiple %252, 8 : i32
    %254 = arith.index_cast %253 : i32 to index
    %c128_59 = arith.constant 128 : index
    %255 = vector.load %arg7[%254, %c128_59] : memref<64x256xf32, #tpu.memory_space<vmem>>, vector<8x128xf32>
    %256 = arith.truncf %227 : vector<8x32xf32> to vector<8x32xbf16>
    %cst_60 = arith.constant dense<0.000000e+00> : vector<8x128xf32>
    %257 = tpu.matmul %256, %8, %cst_60 {dimension_numbers = #tpu.dot_dimension_numbers<[1], [0], [0], [1], [0, 0, 1, 1], [], []>} : vector<8x32xbf16>, vector<32x128xbf16>, vector<8x128xf32> -> vector<8x128xf32>
    %258 = arith.addf %251, %257 : vector<8x128xf32>
    %259 = vector.extract_strided_slice %258 {offsets = [0, 0], sizes = [8, 96], strides = [1, 1]} : vector<8x128xf32> to vector<8x96xf32>
    %260 = arith.negf %259 : vector<8x96xf32>
    %261 = math.exp %260 : vector<8x96xf32>
    %cst_61 = arith.constant 1.000000e+00 : f32
    %262 = vector.broadcast %cst_61 : f32 to vector<8x96xf32>
    %263 = arith.addf %262, %261 : vector<8x96xf32>
    %264 = arith.divf %262, %263 : vector<8x96xf32>
    %265 = vector.extract_strided_slice %258 {offsets = [0, 96], sizes = [8, 32], strides = [1, 1]} : vector<8x128xf32> to vector<8x32xf32>
    %266 = math.tanh %265 : vector<8x32xf32>
    %267 = vector.extract_strided_slice %264 {offsets = [0, 0], sizes = [8, 32], strides = [1, 1]} : vector<8x96xf32> to vector<8x32xf32>
    %268 = vector.extract_strided_slice %264 {offsets = [0, 32], sizes = [8, 32], strides = [1, 1]} : vector<8x96xf32> to vector<8x32xf32>
    %269 = vector.extract_strided_slice %264 {offsets = [0, 64], sizes = [8, 32], strides = [1, 1]} : vector<8x96xf32> to vector<8x32xf32>
    %270 = arith.mulf %268, %225 : vector<8x32xf32>
    %271 = arith.mulf %267, %266 : vector<8x32xf32>
    %272 = arith.addf %270, %271 : vector<8x32xf32>
    %273 = math.tanh %272 : vector<8x32xf32>
    %274 = arith.mulf %269, %273 : vector<8x32xf32>
    %275 = arith.truncf %246 : vector<8x32xf32> to vector<8x32xbf16>
    %cst_62 = arith.constant dense<0.000000e+00> : vector<8x128xf32>
    %276 = tpu.matmul %275, %10, %cst_62 {dimension_numbers = #tpu.dot_dimension_numbers<[1], [0], [0], [1], [0, 0, 1, 1], [], []>} : vector<8x32xbf16>, vector<32x128xbf16>, vector<8x128xf32> -> vector<8x128xf32>
    %277 = arith.addf %255, %276 : vector<8x128xf32>
    %278 = vector.extract_strided_slice %277 {offsets = [0, 0], sizes = [8, 96], strides = [1, 1]} : vector<8x128xf32> to vector<8x96xf32>
    %279 = arith.negf %278 : vector<8x96xf32>
    %280 = math.exp %279 : vector<8x96xf32>
    %cst_63 = arith.constant 1.000000e+00 : f32
    %281 = vector.broadcast %cst_63 : f32 to vector<8x96xf32>
    %282 = arith.addf %281, %280 : vector<8x96xf32>
    %283 = arith.divf %281, %282 : vector<8x96xf32>
    %284 = vector.extract_strided_slice %277 {offsets = [0, 96], sizes = [8, 32], strides = [1, 1]} : vector<8x128xf32> to vector<8x32xf32>
    %285 = math.tanh %284 : vector<8x32xf32>
    %286 = vector.extract_strided_slice %283 {offsets = [0, 0], sizes = [8, 32], strides = [1, 1]} : vector<8x96xf32> to vector<8x32xf32>
    %287 = vector.extract_strided_slice %283 {offsets = [0, 32], sizes = [8, 32], strides = [1, 1]} : vector<8x96xf32> to vector<8x32xf32>
    %288 = vector.extract_strided_slice %283 {offsets = [0, 64], sizes = [8, 32], strides = [1, 1]} : vector<8x96xf32> to vector<8x32xf32>
    %289 = arith.mulf %287, %244 : vector<8x32xf32>
    %290 = arith.mulf %286, %285 : vector<8x32xf32>
    %291 = arith.addf %289, %290 : vector<8x32xf32>
    %292 = math.tanh %291 : vector<8x32xf32>
    %293 = arith.mulf %288, %292 : vector<8x32xf32>
    %c6_i32 = arith.constant 6 : i32
    %c7_i32_64 = arith.constant 7 : i32
    %294 = arith.subi %c7_i32_64, %c6_i32 : i32
    %c8_i32_65 = arith.constant 8 : i32
    %295 = arith.muli %c6_i32, %c8_i32_65 : i32
    %296 = tpu.assume_multiple %295, 8 : i32
    %297 = arith.index_cast %296 : i32 to index
    %c0_66 = arith.constant 0 : index
    %298 = vector.load %arg7[%297, %c0_66] : memref<64x256xf32, #tpu.memory_space<vmem>>, vector<8x128xf32>
    %c8_i32_67 = arith.constant 8 : i32
    %299 = arith.muli %294, %c8_i32_67 : i32
    %300 = tpu.assume_multiple %299, 8 : i32
    %301 = arith.index_cast %300 : i32 to index
    %c128_68 = arith.constant 128 : index
    %302 = vector.load %arg7[%301, %c128_68] : memref<64x256xf32, #tpu.memory_space<vmem>>, vector<8x128xf32>
    %303 = arith.truncf %274 : vector<8x32xf32> to vector<8x32xbf16>
    %cst_69 = arith.constant dense<0.000000e+00> : vector<8x128xf32>
    %304 = tpu.matmul %303, %8, %cst_69 {dimension_numbers = #tpu.dot_dimension_numbers<[1], [0], [0], [1], [0, 0, 1, 1], [], []>} : vector<8x32xbf16>, vector<32x128xbf16>, vector<8x128xf32> -> vector<8x128xf32>
    %305 = arith.addf %298, %304 : vector<8x128xf32>
    %306 = vector.extract_strided_slice %305 {offsets = [0, 0], sizes = [8, 96], strides = [1, 1]} : vector<8x128xf32> to vector<8x96xf32>
    %307 = arith.negf %306 : vector<8x96xf32>
    %308 = math.exp %307 : vector<8x96xf32>
    %cst_70 = arith.constant 1.000000e+00 : f32
    %309 = vector.broadcast %cst_70 : f32 to vector<8x96xf32>
    %310 = arith.addf %309, %308 : vector<8x96xf32>
    %311 = arith.divf %309, %310 : vector<8x96xf32>
    %312 = vector.extract_strided_slice %305 {offsets = [0, 96], sizes = [8, 32], strides = [1, 1]} : vector<8x128xf32> to vector<8x32xf32>
    %313 = math.tanh %312 : vector<8x32xf32>
    %314 = vector.extract_strided_slice %311 {offsets = [0, 0], sizes = [8, 32], strides = [1, 1]} : vector<8x96xf32> to vector<8x32xf32>
    %315 = vector.extract_strided_slice %311 {offsets = [0, 32], sizes = [8, 32], strides = [1, 1]} : vector<8x96xf32> to vector<8x32xf32>
    %316 = vector.extract_strided_slice %311 {offsets = [0, 64], sizes = [8, 32], strides = [1, 1]} : vector<8x96xf32> to vector<8x32xf32>
    %317 = arith.mulf %315, %272 : vector<8x32xf32>
    %318 = arith.mulf %314, %313 : vector<8x32xf32>
    %319 = arith.addf %317, %318 : vector<8x32xf32>
    %320 = math.tanh %319 : vector<8x32xf32>
    %321 = arith.mulf %316, %320 : vector<8x32xf32>
    %322 = arith.truncf %293 : vector<8x32xf32> to vector<8x32xbf16>
    %cst_71 = arith.constant dense<0.000000e+00> : vector<8x128xf32>
    %323 = tpu.matmul %322, %10, %cst_71 {dimension_numbers = #tpu.dot_dimension_numbers<[1], [0], [0], [1], [0, 0, 1, 1], [], []>} : vector<8x32xbf16>, vector<32x128xbf16>, vector<8x128xf32> -> vector<8x128xf32>
    %324 = arith.addf %302, %323 : vector<8x128xf32>
    %325 = vector.extract_strided_slice %324 {offsets = [0, 0], sizes = [8, 96], strides = [1, 1]} : vector<8x128xf32> to vector<8x96xf32>
    %326 = arith.negf %325 : vector<8x96xf32>
    %327 = math.exp %326 : vector<8x96xf32>
    %cst_72 = arith.constant 1.000000e+00 : f32
    %328 = vector.broadcast %cst_72 : f32 to vector<8x96xf32>
    %329 = arith.addf %328, %327 : vector<8x96xf32>
    %330 = arith.divf %328, %329 : vector<8x96xf32>
    %331 = vector.extract_strided_slice %324 {offsets = [0, 96], sizes = [8, 32], strides = [1, 1]} : vector<8x128xf32> to vector<8x32xf32>
    %332 = math.tanh %331 : vector<8x32xf32>
    %333 = vector.extract_strided_slice %330 {offsets = [0, 0], sizes = [8, 32], strides = [1, 1]} : vector<8x96xf32> to vector<8x32xf32>
    %334 = vector.extract_strided_slice %330 {offsets = [0, 32], sizes = [8, 32], strides = [1, 1]} : vector<8x96xf32> to vector<8x32xf32>
    %335 = vector.extract_strided_slice %330 {offsets = [0, 64], sizes = [8, 32], strides = [1, 1]} : vector<8x96xf32> to vector<8x32xf32>
    %336 = arith.mulf %334, %291 : vector<8x32xf32>
    %337 = arith.mulf %333, %332 : vector<8x32xf32>
    %338 = arith.addf %336, %337 : vector<8x32xf32>
    %339 = math.tanh %338 : vector<8x32xf32>
    %340 = arith.mulf %335, %339 : vector<8x32xf32>
    %c7_i32_73 = arith.constant 7 : i32
    %c7_i32_74 = arith.constant 7 : i32
    %341 = arith.subi %c7_i32_74, %c7_i32_73 : i32
    %c8_i32_75 = arith.constant 8 : i32
    %342 = arith.muli %c7_i32_73, %c8_i32_75 : i32
    %343 = tpu.assume_multiple %342, 8 : i32
    %344 = arith.index_cast %343 : i32 to index
    %c0_76 = arith.constant 0 : index
    %345 = vector.load %arg7[%344, %c0_76] : memref<64x256xf32, #tpu.memory_space<vmem>>, vector<8x128xf32>
    %c8_i32_77 = arith.constant 8 : i32
    %346 = arith.muli %341, %c8_i32_77 : i32
    %347 = tpu.assume_multiple %346, 8 : i32
    %348 = arith.index_cast %347 : i32 to index
    %c128_78 = arith.constant 128 : index
    %349 = vector.load %arg7[%348, %c128_78] : memref<64x256xf32, #tpu.memory_space<vmem>>, vector<8x128xf32>
    %350 = arith.truncf %321 : vector<8x32xf32> to vector<8x32xbf16>
    %cst_79 = arith.constant dense<0.000000e+00> : vector<8x128xf32>
    %351 = tpu.matmul %350, %8, %cst_79 {dimension_numbers = #tpu.dot_dimension_numbers<[1], [0], [0], [1], [0, 0, 1, 1], [], []>} : vector<8x32xbf16>, vector<32x128xbf16>, vector<8x128xf32> -> vector<8x128xf32>
    %352 = arith.addf %345, %351 : vector<8x128xf32>
    %353 = vector.extract_strided_slice %352 {offsets = [0, 0], sizes = [8, 96], strides = [1, 1]} : vector<8x128xf32> to vector<8x96xf32>
    %354 = arith.negf %353 : vector<8x96xf32>
    %355 = math.exp %354 : vector<8x96xf32>
    %cst_80 = arith.constant 1.000000e+00 : f32
    %356 = vector.broadcast %cst_80 : f32 to vector<8x96xf32>
    %357 = arith.addf %356, %355 : vector<8x96xf32>
    %358 = arith.divf %356, %357 : vector<8x96xf32>
    %359 = vector.extract_strided_slice %352 {offsets = [0, 96], sizes = [8, 32], strides = [1, 1]} : vector<8x128xf32> to vector<8x32xf32>
    %360 = math.tanh %359 : vector<8x32xf32>
    %361 = vector.extract_strided_slice %358 {offsets = [0, 0], sizes = [8, 32], strides = [1, 1]} : vector<8x96xf32> to vector<8x32xf32>
    %362 = vector.extract_strided_slice %358 {offsets = [0, 32], sizes = [8, 32], strides = [1, 1]} : vector<8x96xf32> to vector<8x32xf32>
    %363 = vector.extract_strided_slice %358 {offsets = [0, 64], sizes = [8, 32], strides = [1, 1]} : vector<8x96xf32> to vector<8x32xf32>
    %364 = arith.mulf %362, %319 : vector<8x32xf32>
    %365 = arith.mulf %361, %360 : vector<8x32xf32>
    %366 = arith.addf %364, %365 : vector<8x32xf32>
    %367 = math.tanh %366 : vector<8x32xf32>
    %368 = arith.mulf %363, %367 : vector<8x32xf32>
    %369 = arith.truncf %340 : vector<8x32xf32> to vector<8x32xbf16>
    %cst_81 = arith.constant dense<0.000000e+00> : vector<8x128xf32>
    %370 = tpu.matmul %369, %10, %cst_81 {dimension_numbers = #tpu.dot_dimension_numbers<[1], [0], [0], [1], [0, 0, 1, 1], [], []>} : vector<8x32xbf16>, vector<32x128xbf16>, vector<8x128xf32> -> vector<8x128xf32>
    %371 = arith.addf %349, %370 : vector<8x128xf32>
    %372 = vector.extract_strided_slice %371 {offsets = [0, 0], sizes = [8, 96], strides = [1, 1]} : vector<8x128xf32> to vector<8x96xf32>
    %373 = arith.negf %372 : vector<8x96xf32>
    %374 = math.exp %373 : vector<8x96xf32>
    %cst_82 = arith.constant 1.000000e+00 : f32
    %375 = vector.broadcast %cst_82 : f32 to vector<8x96xf32>
    %376 = arith.addf %375, %374 : vector<8x96xf32>
    %377 = arith.divf %375, %376 : vector<8x96xf32>
    %378 = vector.extract_strided_slice %371 {offsets = [0, 96], sizes = [8, 32], strides = [1, 1]} : vector<8x128xf32> to vector<8x32xf32>
    %379 = math.tanh %378 : vector<8x32xf32>
    %380 = vector.extract_strided_slice %377 {offsets = [0, 0], sizes = [8, 32], strides = [1, 1]} : vector<8x96xf32> to vector<8x32xf32>
    %381 = vector.extract_strided_slice %377 {offsets = [0, 32], sizes = [8, 32], strides = [1, 1]} : vector<8x96xf32> to vector<8x32xf32>
    %382 = vector.extract_strided_slice %377 {offsets = [0, 64], sizes = [8, 32], strides = [1, 1]} : vector<8x96xf32> to vector<8x32xf32>
    %383 = arith.mulf %381, %338 : vector<8x32xf32>
    %384 = arith.mulf %380, %379 : vector<8x32xf32>
    %385 = arith.addf %383, %384 : vector<8x32xf32>
    %386 = math.tanh %385 : vector<8x32xf32>
    %387 = arith.mulf %382, %386 : vector<8x32xf32>
    %c8_i32_83 = arith.constant 8 : i32
    %388 = tpu.concatenate %368, %387 in 1 : vector<8x32xf32>, vector<8x32xf32> -> vector<8x64xf32>
    %c0_84 = arith.constant 0 : index
    %c0_85 = arith.constant 0 : index
    %389 = vector.load %arg4[%c0_84, %c0_85] : memref<64x3xf32, #tpu.memory_space<vmem>>, vector<64x3xf32>
    %cst_86 = arith.constant dense<0.000000e+00> : vector<8x3xf32>
    %390 = tpu.matmul %388, %389, %cst_86 {dimension_numbers = #tpu.dot_dimension_numbers<[1], [0], [0], [1], [0, 0, 1, 1], [], []>} : vector<8x64xf32>, vector<64x3xf32>, vector<8x3xf32> -> vector<8x3xf32>
    %c0_87 = arith.constant 0 : index
    %c0_88 = arith.constant 0 : index
    %391 = vector.load %arg5[%c0_87, %c0_88] : memref<1x3xf32, #tpu.memory_space<vmem>>, vector<1x3xf32>
    %392 = vector.broadcast %391 : vector<1x3xf32> to vector<8x3xf32>
    %393 = arith.addf %390, %392 : vector<8x3xf32>
    %c0_89 = arith.constant 0 : index
    %c0_90 = arith.constant 0 : index
    %394 = vector.load %arg6[%c0_89, %c0_90] : memref<8x3xf32, #tpu.memory_space<vmem>>, vector<8x3xf32>
    tpu.vector_store %arg6[%c0_89, %c0_90], %393 {strides = array<i32>} : memref<8x3xf32, #tpu.memory_space<vmem>>, vector<8x3xf32>,
    return
  }
}

</mosaic_0001>

<llo_original>
// kernel: rnn_forward.3
$region0: #{rnn_forward.3}
  #allocation0 [shape = 'u32[]', space=smem, size = 0x4, offset = 0x4, fixed_abs, tag = 'smem constant byte address 0x4 - core index']
  #allocation1 [shape = 'u32[144,128]{1,0:T(1,128)}', space=vmem, size = 0x12000, scoped, tag = 'internal scratch']
  #allocation2 [shape = 'f32[64,256]{1,0:T(8,128)}', space=vmem, size = 0x10000, scoped, tag = 'scratch operand']
  %s0 = inlined_call_operand.vmem [shape: bf16[64,64], index: 0, kind: input, shape index: {}]
  %s1 = inlined_call_operand.vmem [shape: bf16[64,256], index: 1, kind: input, shape index: {}]
  %s2 = inlined_call_operand.vmem [shape: bf16[2,32,128], index: 2, kind: input, shape index: {}]
  %s3 = inlined_call_operand.vmem [shape: f32[1,256], index: 3, kind: input, shape index: {}]
  %s4 = inlined_call_operand.vmem [shape: f32[64,3], index: 4, kind: input, shape index: {}]
  %s5 = inlined_call_operand.vmem [shape: f32[1,3], index: 5, kind: input, shape index: {}]
  %s6 = inlined_call_operand.vmem [shape: f32[8,3], index: 6, kind: output, shape index: {}]
  %s7 = sld [smem:[#allocation0]]
  $region34: #{rnn_forward.3} parent=0
    _
  %s9 = ssub.s32 1, %s7
  %s10 = scalar_select 0, %s9, %s7
  // Predicated region
  $region2: #{rnn_forward.3} parent=0 // pred_check
    _
  $region3: #{rnn_forward.3} parent=0 // pred_check_branch
    %12 = sbr.rel (0) target = $region5
  $region4: #{rnn_forward.3} parent=0 // pred_region
    _
  $region5: #{rnn_forward.3} parent=0 // pred_fallthru
    _
  // Predicated region
  $region6: #{rnn_forward.3} parent=0 // pred_check
    _
  $region7: #{rnn_forward.3} parent=0 // pred_check_branch
    %14 = sbr.rel (0) target = $region9
  $region8: #{rnn_forward.3} parent=0 // pred_region
    _
  $region9: #{rnn_forward.3} parent=0 // pred_fallthru
    _
  // Predicated region
  $region10: #{rnn_forward.3} parent=0 // pred_check
    _
  $region11: #{rnn_forward.3} parent=0 // pred_check_branch
    %16 = sbr.rel (0) target = $region13
  $region12: #{rnn_forward.3} parent=0 // pred_region
    _
  $region13: #{rnn_forward.3} parent=0 // pred_fallthru
    _
  // Predicated region
  $region14: #{rnn_forward.3} parent=0 // pred_check
    _
  $region15: #{rnn_forward.3} parent=0 // pred_check_branch
    %18 = sbr.rel (0) target = $region17
  $region16: #{rnn_forward.3} parent=0 // pred_region
    _
  $region17: #{rnn_forward.3} parent=0 // pred_fallthru
    _
  // Predicated region
  $region18: #{rnn_forward.3} parent=0 // pred_check
    _
  $region19: #{rnn_forward.3} parent=0 // pred_check_branch
    %20 = sbr.rel (0) target = $region21
  $region20: #{rnn_forward.3} parent=0 // pred_region
    _
  $region21: #{rnn_forward.3} parent=0 // pred_fallthru
    _
  // Predicated region
  $region22: #{rnn_forward.3} parent=0 // pred_check
    _
  $region23: #{rnn_forward.3} parent=0 // pred_check_branch
    %22 = sbr.rel (0) target = $region25
  $region24: #{rnn_forward.3} parent=0 // pred_region
    _
  $region25: #{rnn_forward.3} parent=0 // pred_fallthru
    _
  %v24 = vld [vmem:[%s0] sm:$0xf]
  %v25 = vld [vmem:[%s0 + $0x4] sm:$0xf]
  %v26 = vld [vmem:[%s0 + $0x8] sm:$0xf]
  %v27 = vld [vmem:[%s0 + $0xc] sm:$0xf]
  %v28 = vld [vmem:[%s0 + $0x10] sm:$0xf]
  %v29 = vld [vmem:[%s0 + $0x14] sm:$0xf]
  %v30 = vld [vmem:[%s0 + $0x18] sm:$0xf]
  %v31 = vld [vmem:[%s0 + $0x1c] sm:$0xf]
  %v32 = vld [vmem:[%s1] sm:$0xff]
  %v33 = vld [vmem:[%s1 + $0x8] sm:$0xff]
  %v34 = vld [vmem:[%s1 + $0x10] sm:$0xff]
  %v35 = vld [vmem:[%s1 + $0x18] sm:$0xff]
  %v36 = vld [vmem:[%s1 + $0x20] sm:$0xff]
  %v37 = vld [vmem:[%s1 + $0x28] sm:$0xff]
  %v38 = vld [vmem:[%s1 + $0x30] sm:$0xff]
  %v39 = vld [vmem:[%s1 + $0x38] sm:$0xff]
  %v40 = vld [vmem:[%s3] sm:$0x3]
  %v42 = vlaneseq
  %v43 = vshrl.u32 %v42, 7
  %v44 = vsub.s32 0, %v43
  %v45 = vrot.slane %v40, %v44
  %v46 = vlaneseq
  %v47 = vshrl.u32 %v46, 7
  %v48 = vsub.s32 1, %v47
  %v49 = vrot.slane %v40, %v48
  %v60 = vunpack.c.l.b16 %v24
  %v61 = vunpack.c.l.b16 %v25
  %v62 = vunpack.c.l.b16 %v26
  %v63 = vunpack.c.l.b16 %v27
  %v64 = vunpack.c.l.b16 %v28
  %v65 = vunpack.c.l.b16 %v29
  %v66 = vunpack.c.l.b16 %v30
  %v67 = vunpack.c.l.b16 %v31
  %v68 = vpack.c.b16 %v61, %v60
  %v69 = vpack.c.b16 %v63, %v62
  %v70 = vpack.c.b16 %v65, %v64
  %v71 = vpack.c.b16 %v67, %v66
  %v80 = vunpack.c.l.b16 %v32
  %v81 = vunpack.c.h.b16 %v32
  %v82 = vunpack.c.l.b16 %v33
  %v83 = vunpack.c.h.b16 %v33
  %v84 = vunpack.c.l.b16 %v34
  %v85 = vunpack.c.h.b16 %v34
  %v86 = vunpack.c.l.b16 %v35
  %v87 = vunpack.c.h.b16 %v35
  %v88 = vunpack.c.l.b16 %v36
  %v89 = vunpack.c.h.b16 %v36
  %v90 = vunpack.c.l.b16 %v37
  %v91 = vunpack.c.h.b16 %v37
  %v92 = vunpack.c.l.b16 %v38
  %v93 = vunpack.c.h.b16 %v38
  %v94 = vunpack.c.l.b16 %v39
  %v95 = vunpack.c.h.b16 %v39
  %v96 = vpack.c.b16 %v82, %v80
  %v97 = vpack.c.b16 %v83, %v81
  %v98 = vpack.c.b16 %v86, %v84
  %v99 = vpack.c.b16 %v87, %v85
  %v100 = vpack.c.b16 %v90, %v88
  %v101 = vpack.c.b16 %v91, %v89
  %v102 = vpack.c.b16 %v94, %v92
  %v103 = vpack.c.b16 %v95, %v93
  %vm112 = vcmask 523264
  %v114 = vsel %vm112, %v68, 0
  %v117 = vsel %vm112, %v69, 0
  %v120 = vsel %vm112, %v70, 0
  %v123 = vsel %vm112, %v71, 0
  %125 = vmatprep.subr.bf16.mxu0 0
  %126 = vmatpush1.bf16.msra.mxu0 0
  %127 = vmatprep.subr.bf16.mxu0 0
  %128 = vmatpush1.bf16.msra.mxu0 0
  %129 = vmatprep.subr.bf16.mxu0 0
  %130 = vmatpush1.bf16.msra.mxu0 0
  %131 = vmatprep.subr.bf16.mxu0 0
  %132 = vmatpush1.bf16.msra.mxu0 0
  %133 = vmatprep.subr.bf16.mxu0 %v103
  %134 = vmatpush1.bf16.msra.mxu0 %v102
  %135 = vmatprep.subr.bf16.mxu0 %v101
  %136 = vmatpush1.bf16.msra.mxu0 %v100
  %137 = vmatprep.subr.bf16.mxu0 %v99
  %138 = vmatpush1.bf16.msra.mxu0 %v98
  %139 = vmatprep.subr.bf16.mxu0 %v97
  %140 = vmatpush1.bf16.msra.mxu0 %v96
  %141 = vmatprep.subr.bf16.mxu0 0
  %142 = vmatpush2.bf16.msra.mxu0 0
  %143 = vmatprep.subr.bf16.mxu0 0
  %144 = vmatpush2.bf16.msra.mxu0 0
  %145 = vmatprep.subr.bf16.mxu0 0
  %146 = vmatpush2.bf16.msra.mxu0 0
  %147 = vmatprep.subr.bf16.mxu0 0
  %148 = vmatpush2.bf16.msra.mxu0 0
  %149 = vmatprep.subr.bf16.mxu0 0
  %150 = vmatpush2.bf16.msra.mxu0 0
  %151 = vmatprep.subr.bf16.mxu0 0
  %152 = vmatpush2.bf16.msra.mxu0 0
  %153 = vmatprep.subr.bf16.mxu0 0
  %154 = vmatpush2.bf16.msra.mxu0 0
  %155 = vmatprep.subr.bf16.mxu0 0
  %156 = vmatpush2.bf16.msra.mxu0 0
  %157 = vmatprep.mubr.bf16.mxu0 0
  %158 = vmatmul.mubr.bf16.gmra.mxu0 %v114
  %v159 = vpop.f32.mrf.mxu0
  %v160 = vadd.f32 %v45, %v159
  %v161 = vpop.f32.mrf.mxu0
  %v162 = vadd.f32 %v49, %v161
  %v163 = vpop.f32.mrf.mxu0
  %v164 = vadd.f32 %v45, %v163
  %v165 = vpop.f32.mrf.mxu0
  %v166 = vadd.f32 %v49, %v165
  %167 = vmatprep.mubr.bf16.mxu0 0
  %168 = vmatmul.mubr.bf16.gmra.mxu0 %v117
  %v169 = vpop.f32.mrf.mxu0
  %v170 = vadd.f32 %v45, %v169
  %v171 = vpop.f32.mrf.mxu0
  %v172 = vadd.f32 %v49, %v171
  %v173 = vpop.f32.mrf.mxu0
  %v174 = vadd.f32 %v45, %v173
  %v175 = vpop.f32.mrf.mxu0
  %v176 = vadd.f32 %v49, %v175
  %177 = vmatprep.mubr.bf16.mxu0 0
  %178 = vmatmul.mubr.bf16.gmra.mxu0 %v120
  %v179 = vpop.f32.mrf.mxu0
  %v180 = vadd.f32 %v45, %v179
  %v181 = vpop.f32.mrf.mxu0
  %v182 = vadd.f32 %v49, %v181
  %v183 = vpop.f32.mrf.mxu0
  %v184 = vadd.f32 %v45, %v183
  %v185 = vpop.f32.mrf.mxu0
  %v186 = vadd.f32 %v49, %v185
  %187 = vmatprep.mubr.bf16.mxu0 0
  %188 = vmatmul.mubr.bf16.gmra.mxu0 %v123
  %v189 = vpop.f32.mrf.mxu0
  %v190 = vadd.f32 %v45, %v189
  %v191 = vpop.f32.mrf.mxu0
  %v192 = vadd.f32 %v49, %v191
  %v193 = vpop.f32.mrf.mxu0
  %v194 = vadd.f32 %v45, %v193
  %v195 = vpop.f32.mrf.mxu0
  %v196 = vadd.f32 %v49, %v195
  %197 = vdwg.mxu0
  %198 = vst [vmem:[#allocation2] sm:$0xff] %v160
  %199 = vst [vmem:[#allocation2 + $0x8] sm:$0xff] %v162
  %200 = vst [vmem:[#allocation2 + $0x10] sm:$0xff] %v164
  %201 = vst [vmem:[#allocation2 + $0x18] sm:$0xff] %v166
  %202 = vst [vmem:[#allocation2 + $0x20] sm:$0xff] %v170
  %203 = vst [vmem:[#allocation2 + $0x28] sm:$0xff] %v172
  %204 = vst [vmem:[#allocation2 + $0x30] sm:$0xff] %v174
  %205 = vst [vmem:[#allocation2 + $0x38] sm:$0xff] %v176
  %206 = vst [vmem:[#allocation2 + $0x40] sm:$0xff] %v180
  %207 = vst [vmem:[#allocation2 + $0x48] sm:$0xff] %v182
  %208 = vst [vmem:[#allocation2 + $0x50] sm:$0xff] %v184
  %209 = vst [vmem:[#allocation2 + $0x58] sm:$0xff] %v186
  %210 = vst [vmem:[#allocation2 + $0x60] sm:$0xff] %v190
  %211 = vst [vmem:[#allocation2 + $0x68] sm:$0xff] %v192
  %212 = vst [vmem:[#allocation2 + $0x70] sm:$0xff] %v194
  %213 = vst [vmem:[#allocation2 + $0x78] sm:$0xff] %v196
  %v214 = vld [vmem:[%s2] sm:$0xf]
  %v215 = vld [vmem:[%s2 + $0x4] sm:$0xf]
  %v216 = vld [vmem:[%s2 + $0x8] sm:$0xf]
  %v217 = vld [vmem:[%s2 + $0xc] sm:$0xf]
  %s218 = scalar_lea.vmem %s2, 16
  %v219 = vld [vmem:[%s218] sm:$0xf]
  %v220 = vld [vmem:[%s218 + $0x4] sm:$0xf]
  %v221 = vld [vmem:[%s218 + $0x8] sm:$0xf]
  %v222 = vld [vmem:[%s218 + $0xc] sm:$0xf]
  %s223 = smul.u32 0, 2
  %s224 = smul.addr %s223, 8
  %s225 = scalar_lea.vmem [#allocation2], %s224
  %v226 = vld [vmem:[%s225] sm:$0xff]
  %s227 = smul.u32 7, 2
  %s228 = smul.addr %s227, 8
  %s229 = scalar_lea.vmem [#allocation2], %s228
  %v230 = vld [vmem:[%s229 + $0x8] sm:$0xff]
  %v235 = vunpack.c.l.b16 %v214
  %v236 = vunpack.c.l.b16 %v215
  %v237 = vunpack.c.l.b16 %v216
  %v238 = vunpack.c.l.b16 %v217
  %v239 = vpack.c.b16 %v236, %v235
  %v240 = vpack.c.b16 %v238, %v237
  %vm243 = vcmask 261120
  %v245 = vsel %vm243, 0, 0
  %247 = vmatprep.subr.bf16.mxu0 0
  %248 = vmatpush1.bf16.msra.mxu0 0
  %249 = vmatprep.subr.bf16.mxu0 0
  %250 = vmatpush1.bf16.msra.mxu0 0
  %251 = vmatprep.subr.bf16.mxu0 0
  %252 = vmatpush1.bf16.msra.mxu0 0
  %253 = vmatprep.subr.bf16.mxu0 0
  %254 = vmatpush1.bf16.msra.mxu0 0
  %255 = vmatprep.subr.bf16.mxu0 0
  %256 = vmatpush1.bf16.msra.mxu0 0
  %257 = vmatprep.subr.bf16.mxu0 0
  %258 = vmatpush1.bf16.msra.mxu0 0
  %259 = vmatprep.subr.bf16.mxu0 0
  %260 = vmatpush1.bf16.msra.mxu0 %v240
  %261 = vmatprep.subr.bf16.mxu0 0
  %262 = vmatpush1.bf16.msra.mxu0 %v239
  %263 = vmatprep.subr.bf16.mxu0 0
  %264 = vmatpush2.bf16.msra.mxu0 0
  %265 = vmatprep.subr.bf16.mxu0 0
  %266 = vmatpush2.bf16.msra.mxu0 0
  %267 = vmatprep.subr.bf16.mxu0 0
  %268 = vmatpush2.bf16.msra.mxu0 0
  %269 = vmatprep.subr.bf16.mxu0 0
  %270 = vmatpush2.bf16.msra.mxu0 0
  %271 = vmatprep.subr.bf16.mxu0 0
  %272 = vmatpush2.bf16.msra.mxu0 0
  %273 = vmatprep.subr.bf16.mxu0 0
  %274 = vmatpush2.bf16.msra.mxu0 0
  %275 = vmatprep.subr.bf16.mxu0 0
  %276 = vmatpush2.bf16.msra.mxu0 0
  %277 = vmatprep.subr.bf16.mxu0 0
  %278 = vmatpush2.bf16.msra.mxu0 0
  %279 = vmatprep.mubr.bf16.mxu0 0
  %280 = vmatmul.mubr.bf16.gmra.mxu0 %v245
  %v281 = vpop.f32.mrf.mxu0
  %v282 = vadd.f32 0.0, %v281
  %v283 = vpop.f32.mrf.mxu0
  %v284 = vpop.f32.mrf.mxu0
  %v285 = vpop.f32.mrf.mxu0
  %286 = vdwg.mxu0
  %v287 = vadd.f32 %v226, %v282
  %v288 = vxor.u32 %v287, 2147483648
  %v289 = vmul.f32 %v288, 1.442695
  %v290 = vpow.pop %v289
  %v291 = vadd.f32 %v290, 1.0
  %v292 = vrcp.pop %v291
  %v293 = vmul.f32 1.0, %v292
  %v294 = vtanh.pop %v287
  %v295 = vmul.f32 %v293, 0.0
  %297 = vrot.lane.b32.xlu0 %v294, 32
  %v298 = vpop.permute.xlu0 %297
  %v300 = vmul.f32 %v293, %v298
  %302 = vrot.lane.b32.xlu0 %v300, 32
  %v303 = vpop.permute.xlu0 %302
  %v305 = vadd.f32 %v295, %v303
  %v306 = vtanh.pop %v305
  %308 = vrot.lane.b32.xlu0 %v306, 32
  %v309 = vpop.permute.xlu0 %308
  %v311 = vmul.f32 %v293, %v309
  %v316 = vunpack.c.l.b16 %v219
  %v317 = vunpack.c.l.b16 %v220
  %v318 = vunpack.c.l.b16 %v221
  %v319 = vunpack.c.l.b16 %v222
  %v320 = vpack.c.b16 %v317, %v316
  %v321 = vpack.c.b16 %v319, %v318
  %324 = vmatprep.subr.bf16.mxu0 0
  %325 = vmatpush1.bf16.msra.mxu0 0
  %326 = vmatprep.subr.bf16.mxu0 0
  %327 = vmatpush1.bf16.msra.mxu0 0
  %328 = vmatprep.subr.bf16.mxu0 0
  %329 = vmatpush1.bf16.msra.mxu0 0
  %330 = vmatprep.subr.bf16.mxu0 0
  %331 = vmatpush1.bf16.msra.mxu0 0
  %332 = vmatprep.subr.bf16.mxu0 0
  %333 = vmatpush1.bf16.msra.mxu0 0
  %334 = vmatprep.subr.bf16.mxu0 0
  %335 = vmatpush1.bf16.msra.mxu0 0
  %336 = vmatprep.subr.bf16.mxu0 0
  %337 = vmatpush1.bf16.msra.mxu0 %v321
  %338 = vmatprep.subr.bf16.mxu0 0
  %339 = vmatpush1.bf16.msra.mxu0 %v320
  %340 = vmatprep.subr.bf16.mxu0 0
  %341 = vmatpush2.bf16.msra.mxu0 0
  %342 = vmatprep.subr.bf16.mxu0 0
  %343 = vmatpush2.bf16.msra.mxu0 0
  %344 = vmatprep.subr.bf16.mxu0 0
  %345 = vmatpush2.bf16.msra.mxu0 0
  %346 = vmatprep.subr.bf16.mxu0 0
  %347 = vmatpush2.bf16.msra.mxu0 0
  %348 = vmatprep.subr.bf16.mxu0 0
  %349 = vmatpush2.bf16.msra.mxu0 0
  %350 = vmatprep.subr.bf16.mxu0 0
  %351 = vmatpush2.bf16.msra.mxu0 0
  %352 = vmatprep.subr.bf16.mxu0 0
  %353 = vmatpush2.bf16.msra.mxu0 0
  %354 = vmatprep.subr.bf16.mxu0 0
  %355 = vmatpush2.bf16.msra.mxu0 0
  %356 = vmatprep.mubr.bf16.mxu0 0
  %357 = vmatmul.mubr.bf16.gmra.mxu0 %v245
  %v358 = vpop.f32.mrf.mxu0
  %v359 = vadd.f32 0.0, %v358
  %v360 = vpop.f32.mrf.mxu0
  %v361 = vpop.f32.mrf.mxu0
  %v362 = vpop.f32.mrf.mxu0
  %363 = vdwg.mxu0
  %v364 = vadd.f32 %v230, %v359
  %v365 = vxor.u32 %v364, 2147483648
  %v366 = vmul.f32 %v365, 1.442695
  %v367 = vpow.pop %v366
  %v368 = vadd.f32 %v367, 1.0
  %v369 = vrcp.pop %v368
  %v370 = vmul.f32 1.0, %v369
  %v371 = vtanh.pop %v364
  %v372 = vmul.f32 %v370, 0.0
  %374 = vrot.lane.b32.xlu0 %v371, 32
  %v375 = vpop.permute.xlu0 %374
  %v377 = vmul.f32 %v370, %v375
  %379 = vrot.lane.b32.xlu0 %v377, 32
  %v380 = vpop.permute.xlu0 %379
  %v382 = vadd.f32 %v372, %v380
  %v383 = vtanh.pop %v382
  %385 = vrot.lane.b32.xlu0 %v383, 32
  %v386 = vpop.permute.xlu0 %385
  %v388 = vmul.f32 %v370, %v386
  %s389 = smul.u32 1, 2
  %s390 = smul.addr %s389, 8
  %s391 = scalar_lea.vmem [#allocation2], %s390
  %v392 = vld [vmem:[%s391] sm:$0xff]
  %s393 = smul.u32 6, 2
  %s394 = smul.addr %s393, 8
  %s395 = scalar_lea.vmem [#allocation2], %s394
  %v396 = vld [vmem:[%s395 + $0x8] sm:$0xff]
  %v397 = vpack.c.bf16 %v311, %v311
  %399 = vrot.lane.b32.xlu0 %v397, 64
  %v400 = vpop.permute.xlu0 %399
  %v402 = vsel %vm243, %v400, 0
  %404 = vmatprep.subr.bf16.mxu0 0
  %405 = vmatpush1.bf16.msra.mxu0 0
  %406 = vmatprep.subr.bf16.mxu0 0
  %407 = vmatpush1.bf16.msra.mxu0 0
  %408 = vmatprep.subr.bf16.mxu0 0
  %409 = vmatpush1.bf16.msra.mxu0 0
  %410 = vmatprep.subr.bf16.mxu0 0
  %411 = vmatpush1.bf16.msra.mxu0 0
  %412 = vmatprep.subr.bf16.mxu0 0
  %413 = vmatpush1.bf16.msra.mxu0 0
  %414 = vmatprep.subr.bf16.mxu0 0
  %415 = vmatpush1.bf16.msra.mxu0 0
  %416 = vmatprep.subr.bf16.mxu0 0
  %417 = vmatpush1.bf16.msra.mxu0 %v240
  %418 = vmatprep.subr.bf16.mxu0 0
  %419 = vmatpush1.bf16.msra.mxu0 %v239
  %420 = vmatprep.subr.bf16.mxu0 0
  %421 = vmatpush2.bf16.msra.mxu0 0
  %422 = vmatprep.subr.bf16.mxu0 0
  %423 = vmatpush2.bf16.msra.mxu0 0
  %424 = vmatprep.subr.bf16.mxu0 0
  %425 = vmatpush2.bf16.msra.mxu0 0
  %426 = vmatprep.subr.bf16.mxu0 0
  %427 = vmatpush2.bf16.msra.mxu0 0
  %428 = vmatprep.subr.bf16.mxu0 0
  %429 = vmatpush2.bf16.msra.mxu0 0
  %430 = vmatprep.subr.bf16.mxu0 0
  %431 = vmatpush2.bf16.msra.mxu0 0
  %432 = vmatprep.subr.bf16.mxu0 0
  %433 = vmatpush2.bf16.msra.mxu0 0
  %434 = vmatprep.subr.bf16.mxu0 0
  %435 = vmatpush2.bf16.msra.mxu0 0
  %436 = vmatprep.mubr.bf16.mxu0 0
  %437 = vmatmul.mubr.bf16.gmra.mxu0 %v402
  %v438 = vpop.f32.mrf.mxu0
  %v439 = vadd.f32 0.0, %v438
  %v440 = vpop.f32.mrf.mxu0
  %v441 = vpop.f32.mrf.mxu0
  %v442 = vpop.f32.mrf.mxu0
  %443 = vdwg.mxu0
  %v444 = vadd.f32 %v392, %v439
  %v445 = vxor.u32 %v444, 2147483648
  %v446 = vmul.f32 %v445, 1.442695
  %v447 = vpow.pop %v446
  %v448 = vadd.f32 %v447, 1.0
  %v449 = vrcp.pop %v448
  %v450 = vmul.f32 1.0, %v449
  %v451 = vtanh.pop %v444
  %v452 = vmul.f32 %v450, %v305
  %454 = vrot.lane.b32.xlu0 %v451, 32
  %v455 = vpop.permute.xlu0 %454
  %v457 = vmul.f32 %v450, %v455
  %459 = vrot.lane.b32.xlu0 %v457, 32
  %v460 = vpop.permute.xlu0 %459
  %v462 = vadd.f32 %v452, %v460
  %v463 = vtanh.pop %v462
  %465 = vrot.lane.b32.xlu0 %v463, 32
  %v466 = vpop.permute.xlu0 %465
  %v468 = vmul.f32 %v450, %v466
  %v469 = vpack.c.bf16 %v388, %v388
  %471 = vrot.lane.b32.xlu0 %v469, 64
  %v472 = vpop.permute.xlu0 %471
  %v474 = vsel %vm243, %v472, 0
  %476 = vmatprep.subr.bf16.mxu0 0
  %477 = vmatpush1.bf16.msra.mxu0 0
  %478 = vmatprep.subr.bf16.mxu0 0
  %479 = vmatpush1.bf16.msra.mxu0 0
  %480 = vmatprep.subr.bf16.mxu0 0
  %481 = vmatpush1.bf16.msra.mxu0 0
  %482 = vmatprep.subr.bf16.mxu0 0
  %483 = vmatpush1.bf16.msra.mxu0 0
  %484 = vmatprep.subr.bf16.mxu0 0
  %485 = vmatpush1.bf16.msra.mxu0 0
  %486 = vmatprep.subr.bf16.mxu0 0
  %487 = vmatpush1.bf16.msra.mxu0 0
  %488 = vmatprep.subr.bf16.mxu0 0
  %489 = vmatpush1.bf16.msra.mxu0 %v321
  %490 = vmatprep.subr.bf16.mxu0 0
  %491 = vmatpush1.bf16.msra.mxu0 %v320
  %492 = vmatprep.subr.bf16.mxu0 0
  %493 = vmatpush2.bf16.msra.mxu0 0
  %494 = vmatprep.subr.bf16.mxu0 0
  %495 = vmatpush2.bf16.msra.mxu0 0
  %496 = vmatprep.subr.bf16.mxu0 0
  %497 = vmatpush2.bf16.msra.mxu0 0
  %498 = vmatprep.subr.bf16.mxu0 0
  %499 = vmatpush2.bf16.msra.mxu0 0
  %500 = vmatprep.subr.bf16.mxu0 0
  %501 = vmatpush2.bf16.msra.mxu0 0
  %502 = vmatprep.subr.bf16.mxu0 0
  %503 = vmatpush2.bf16.msra.mxu0 0
  %504 = vmatprep.subr.bf16.mxu0 0
  %505 = vmatpush2.bf16.msra.mxu0 0
  %506 = vmatprep.subr.bf16.mxu0 0
  %507 = vmatpush2.bf16.msra.mxu0 0
  %508 = vmatprep.mubr.bf16.mxu0 0
  %509 = vmatmul.mubr.bf16.gmra.mxu0 %v474
  %v510 = vpop.f32.mrf.mxu0
  %v511 = vadd.f32 0.0, %v510
  %v512 = vpop.f32.mrf.mxu0
  %v513 = vpop.f32.mrf.mxu0
  %v514 = vpop.f32.mrf.mxu0
  %515 = vdwg.mxu0
  %v516 = vadd.f32 %v396, %v511
  %v517 = vxor.u32 %v516, 2147483648
  %v518 = vmul.f32 %v517, 1.442695
  %v519 = vpow.pop %v518
  %v520 = vadd.f32 %v519, 1.0
  %v521 = vrcp.pop %v520
  %v522 = vmul.f32 1.0, %v521
  %v523 = vtanh.pop %v516
  %v524 = vmul.f32 %v522, %v382
  %526 = vrot.lane.b32.xlu0 %v523, 32
  %v527 = vpop.permute.xlu0 %526
  %v529 = vmul.f32 %v522, %v527
  %531 = vrot.lane.b32.xlu0 %v529, 32
  %v532 = vpop.permute.xlu0 %531
  %v534 = vadd.f32 %v524, %v532
  %v535 = vtanh.pop %v534
  %537 = vrot.lane.b32.xlu0 %v535, 32
  %v538 = vpop.permute.xlu0 %537
  %v540 = vmul.f32 %v522, %v538
  %s541 = smul.u32 2, 2
  %s542 = smul.addr %s541, 8
  %s543 = scalar_lea.vmem [#allocation2], %s542
  %v544 = vld [vmem:[%s543] sm:$0xff]
  %s545 = smul.u32 5, 2
  %s546 = smul.addr %s545, 8
  %s547 = scalar_lea.vmem [#allocation2], %s546
  %v548 = vld [vmem:[%s547 + $0x8] sm:$0xff]
  %v549 = vpack.c.bf16 %v468, %v468
  %551 = vrot.lane.b32.xlu0 %v549, 64
  %v552 = vpop.permute.xlu0 %551
  %v554 = vsel %vm243, %v552, 0
  %556 = vmatprep.subr.bf16.mxu0 0
  %557 = vmatpush1.bf16.msra.mxu0 0
  %558 = vmatprep.subr.bf16.mxu0 0
  %559 = vmatpush1.bf16.msra.mxu0 0
  %560 = vmatprep.subr.bf16.mxu0 0
  %561 = vmatpush1.bf16.msra.mxu0 0
  %562 = vmatprep.subr.bf16.mxu0 0
  %563 = vmatpush1.bf16.msra.mxu0 0
  %564 = vmatprep.subr.bf16.mxu0 0
  %565 = vmatpush1.bf16.msra.mxu0 0
  %566 = vmatprep.subr.bf16.mxu0 0
  %567 = vmatpush1.bf16.msra.mxu0 0
  %568 = vmatprep.subr.bf16.mxu0 0
  %569 = vmatpush1.bf16.msra.mxu0 %v240
  %570 = vmatprep.subr.bf16.mxu0 0
  %571 = vmatpush1.bf16.msra.mxu0 %v239
  %572 = vmatprep.subr.bf16.mxu0 0
  %573 = vmatpush2.bf16.msra.mxu0 0
  %574 = vmatprep.subr.bf16.mxu0 0
  %575 = vmatpush2.bf16.msra.mxu0 0
  %576 = vmatprep.subr.bf16.mxu0 0
  %577 = vmatpush2.bf16.msra.mxu0 0
  %578 = vmatprep.subr.bf16.mxu0 0
  %579 = vmatpush2.bf16.msra.mxu0 0
  %580 = vmatprep.subr.bf16.mxu0 0
  %581 = vmatpush2.bf16.msra.mxu0 0
  %582 = vmatprep.subr.bf16.mxu0 0
  %583 = vmatpush2.bf16.msra.mxu0 0
  %584 = vmatprep.subr.bf16.mxu0 0
  %585 = vmatpush2.bf16.msra.mxu0 0
  %586 = vmatprep.subr.bf16.mxu0 0
  %587 = vmatpush2.bf16.msra.mxu0 0
  %588 = vmatprep.mubr.bf16.mxu0 0
  %589 = vmatmul.mubr.bf16.gmra.mxu0 %v554
  %v590 = vpop.f32.mrf.mxu0
  %v591 = vadd.f32 0.0, %v590
  %v592 = vpop.f32.mrf.mxu0
  %v593 = vpop.f32.mrf.mxu0
  %v594 = vpop.f32.mrf.mxu0
  %595 = vdwg.mxu0
  %v596 = vadd.f32 %v544, %v591
  %v597 = vxor.u32 %v596, 2147483648
  %v598 = vmul.f32 %v597, 1.442695
  %v599 = vpow.pop %v598
  %v600 = vadd.f32 %v599, 1.0
  %v601 = vrcp.pop %v600
  %v602 = vmul.f32 1.0, %v601
  %v603 = vtanh.pop %v596
  %v604 = vmul.f32 %v602, %v462
  %606 = vrot.lane.b32.xlu0 %v603, 32
  %v607 = vpop.permute.xlu0 %606
  %v609 = vmul.f32 %v602, %v607
  %611 = vrot.lane.b32.xlu0 %v609, 32
  %v612 = vpop.permute.xlu0 %611
  %v614 = vadd.f32 %v604, %v612
  %v615 = vtanh.pop %v614
  %617 = vrot.lane.b32.xlu0 %v615, 32
  %v618 = vpop.permute.xlu0 %617
  %v620 = vmul.f32 %v602, %v618
  %v621 = vpack.c.bf16 %v540, %v540
  %623 = vrot.lane.b32.xlu0 %v621, 64
  %v624 = vpop.permute.xlu0 %623
  %v626 = vsel %vm243, %v624, 0
  %628 = vmatprep.subr.bf16.mxu0 0
  %629 = vmatpush1.bf16.msra.mxu0 0
  %630 = vmatprep.subr.bf16.mxu0 0
  %631 = vmatpush1.bf16.msra.mxu0 0
  %632 = vmatprep.subr.bf16.mxu0 0
  %633 = vmatpush1.bf16.msra.mxu0 0
  %634 = vmatprep.subr.bf16.mxu0 0
  %635 = vmatpush1.bf16.msra.mxu0 0
  %636 = vmatprep.subr.bf16.mxu0 0
  %637 = vmatpush1.bf16.msra.mxu0 0
  %638 = vmatprep.subr.bf16.mxu0 0
  %639 = vmatpush1.bf16.msra.mxu0 0
  %640 = vmatprep.subr.bf16.mxu0 0
  %641 = vmatpush1.bf16.msra.mxu0 %v321
  %642 = vmatprep.subr.bf16.mxu0 0
  %643 = vmatpush1.bf16.msra.mxu0 %v320
  %644 = vmatprep.subr.bf16.mxu0 0
  %645 = vmatpush2.bf16.msra.mxu0 0
  %646 = vmatprep.subr.bf16.mxu0 0
  %647 = vmatpush2.bf16.msra.mxu0 0
  %648 = vmatprep.subr.bf16.mxu0 0
  %649 = vmatpush2.bf16.msra.mxu0 0
  %650 = vmatprep.subr.bf16.mxu0 0
  %651 = vmatpush2.bf16.msra.mxu0 0
  %652 = vmatprep.subr.bf16.mxu0 0
  %653 = vmatpush2.bf16.msra.mxu0 0
  %654 = vmatprep.subr.bf16.mxu0 0
  %655 = vmatpush2.bf16.msra.mxu0 0
  %656 = vmatprep.subr.bf16.mxu0 0
  %657 = vmatpush2.bf16.msra.mxu0 0
  %658 = vmatprep.subr.bf16.mxu0 0
  %659 = vmatpush2.bf16.msra.mxu0 0
  %660 = vmatprep.mubr.bf16.mxu0 0
  %661 = vmatmul.mubr.bf16.gmra.mxu0 %v626
  %v662 = vpop.f32.mrf.mxu0
  %v663 = vadd.f32 0.0, %v662
  %v664 = vpop.f32.mrf.mxu0
  %v665 = vpop.f32.mrf.mxu0
  %v666 = vpop.f32.mrf.mxu0
  %667 = vdwg.mxu0
  %v668 = vadd.f32 %v548, %v663
  %v669 = vxor.u32 %v668, 2147483648
  %v670 = vmul.f32 %v669, 1.442695
  %v671 = vpow.pop %v670
  %v672 = vadd.f32 %v671, 1.0
  %v673 = vrcp.pop %v672
  %v674 = vmul.f32 1.0, %v673
  %v675 = vtanh.pop %v668
  %v676 = vmul.f32 %v674, %v534
  %678 = vrot.lane.b32.xlu0 %v675, 32
  %v679 = vpop.permute.xlu0 %678
  %v681 = vmul.f32 %v674, %v679
  %683 = vrot.lane.b32.xlu0 %v681, 32
  %v684 = vpop.permute.xlu0 %683
  %v686 = vadd.f32 %v676, %v684
  %v687 = vtanh.pop %v686
  %689 = vrot.lane.b32.xlu0 %v687, 32
  %v690 = vpop.permute.xlu0 %689
  %v692 = vmul.f32 %v674, %v690
  %s693 = smul.u32 3, 2
  %s694 = smul.addr %s693, 8
  %s695 = scalar_lea.vmem [#allocation2], %s694
  %v696 = vld [vmem:[%s695] sm:$0xff]
  %s697 = smul.u32 4, 2
  %s698 = smul.addr %s697, 8
  %s699 = scalar_lea.vmem [#allocation2], %s698
  %v700 = vld [vmem:[%s699 + $0x8] sm:$0xff]
  %v701 = vpack.c.bf16 %v620, %v620
  %703 = vrot.lane.b32.xlu0 %v701, 64
  %v704 = vpop.permute.xlu0 %703
  %v706 = vsel %vm243, %v704, 0
  %708 = vmatprep.subr.bf16.mxu0 0
  %709 = vmatpush1.bf16.msra.mxu0 0
  %710 = vmatprep.subr.bf16.mxu0 0
  %711 = vmatpush1.bf16.msra.mxu0 0
  %712 = vmatprep.subr.bf16.mxu0 0
  %713 = vmatpush1.bf16.msra.mxu0 0
  %714 = vmatprep.subr.bf16.mxu0 0
  %715 = vmatpush1.bf16.msra.mxu0 0
  %716 = vmatprep.subr.bf16.mxu0 0
  %717 = vmatpush1.bf16.msra.mxu0 0
  %718 = vmatprep.subr.bf16.mxu0 0
  %719 = vmatpush1.bf16.msra.mxu0 0
  %720 = vmatprep.subr.bf16.mxu0 0
  %721 = vmatpush1.bf16.msra.mxu0 %v240
  %722 = vmatprep.subr.bf16.mxu0 0
  %723 = vmatpush1.bf16.msra.mxu0 %v239
  %724 = vmatprep.subr.bf16.mxu0 0
  %725 = vmatpush2.bf16.msra.mxu0 0
  %726 = vmatprep.subr.bf16.mxu0 0
  %727 = vmatpush2.bf16.msra.mxu0 0
  %728 = vmatprep.subr.bf16.mxu0 0
  %729 = vmatpush2.bf16.msra.mxu0 0
  %730 = vmatprep.subr.bf16.mxu0 0
  %731 = vmatpush2.bf16.msra.mxu0 0
  %732 = vmatprep.subr.bf16.mxu0 0
  %733 = vmatpush2.bf16.msra.mxu0 0
  %734 = vmatprep.subr.bf16.mxu0 0
  %735 = vmatpush2.bf16.msra.mxu0 0
  %736 = vmatprep.subr.bf16.mxu0 0
  %737 = vmatpush2.bf16.msra.mxu0 0
  %738 = vmatprep.subr.bf16.mxu0 0
  %739 = vmatpush2.bf16.msra.mxu0 0
  %740 = vmatprep.mubr.bf16.mxu0 0
  %741 = vmatmul.mubr.bf16.gmra.mxu0 %v706
  %v742 = vpop.f32.mrf.mxu0
  %v743 = vadd.f32 0.0, %v742
  %v744 = vpop.f32.mrf.mxu0
  %v745 = vpop.f32.mrf.mxu0
  %v746 = vpop.f32.mrf.mxu0
  %747 = vdwg.mxu0
  %v748 = vadd.f32 %v696, %v743
  %v749 = vxor.u32 %v748, 2147483648
  %v750 = vmul.f32 %v749, 1.442695
  %v751 = vpow.pop %v750
  %v752 = vadd.f32 %v751, 1.0
  %v753 = vrcp.pop %v752
  %v754 = vmul.f32 1.0, %v753
  %v755 = vtanh.pop %v748
  %v756 = vmul.f32 %v754, %v614
  %758 = vrot.lane.b32.xlu0 %v755, 32
  %v759 = vpop.permute.xlu0 %758
  %v761 = vmul.f32 %v754, %v759
  %763 = vrot.lane.b32.xlu0 %v761, 32
  %v764 = vpop.permute.xlu0 %763
  %v766 = vadd.f32 %v756, %v764
  %v767 = vtanh.pop %v766
  %769 = vrot.lane.b32.xlu0 %v767, 32
  %v770 = vpop.permute.xlu0 %769
  %v772 = vmul.f32 %v754, %v770
  %v773 = vpack.c.bf16 %v692, %v692
  %775 = vrot.lane.b32.xlu0 %v773, 64
  %v776 = vpop.permute.xlu0 %775
  %v778 = vsel %vm243, %v776, 0
  %780 = vmatprep.subr.bf16.mxu0 0
  %781 = vmatpush1.bf16.msra.mxu0 0
  %782 = vmatprep.subr.bf16.mxu0 0
  %783 = vmatpush1.bf16.msra.mxu0 0
  %784 = vmatprep.subr.bf16.mxu0 0
  %785 = vmatpush1.bf16.msra.mxu0 0
  %786 = vmatprep.subr.bf16.mxu0 0
  %787 = vmatpush1.bf16.msra.mxu0 0
  %788 = vmatprep.subr.bf16.mxu0 0
  %789 = vmatpush1.bf16.msra.mxu0 0
  %790 = vmatprep.subr.bf16.mxu0 0
  %791 = vmatpush1.bf16.msra.mxu0 0
  %792 = vmatprep.subr.bf16.mxu0 0
  %793 = vmatpush1.bf16.msra.mxu0 %v321
  %794 = vmatprep.subr.bf16.mxu0 0
  %795 = vmatpush1.bf16.msra.mxu0 %v320
  %796 = vmatprep.subr.bf16.mxu0 0
  %797 = vmatpush2.bf16.msra.mxu0 0
  %798 = vmatprep.subr.bf16.mxu0 0
  %799 = vmatpush2.bf16.msra.mxu0 0
  %800 = vmatprep.subr.bf16.mxu0 0
  %801 = vmatpush2.bf16.msra.mxu0 0
  %802 = vmatprep.subr.bf16.mxu0 0
  %803 = vmatpush2.bf16.msra.mxu0 0
  %804 = vmatprep.subr.bf16.mxu0 0
  %805 = vmatpush2.bf16.msra.mxu0 0
  %806 = vmatprep.subr.bf16.mxu0 0
  %807 = vmatpush2.bf16.msra.mxu0 0
  %808 = vmatprep.subr.bf16.mxu0 0
  %809 = vmatpush2.bf16.msra.mxu0 0
  %810 = vmatprep.subr.bf16.mxu0 0
  %811 = vmatpush2.bf16.msra.mxu0 0
  %812 = vmatprep.mubr.bf16.mxu0 0
  %813 = vmatmul.mubr.bf16.gmra.mxu0 %v778
  %v814 = vpop.f32.mrf.mxu0
  %v815 = vadd.f32 0.0, %v814
  %v816 = vpop.f32.mrf.mxu0
  %v817 = vpop.f32.mrf.mxu0
  %v818 = vpop.f32.mrf.mxu0
  %819 = vdwg.mxu0
  %v820 = vadd.f32 %v700, %v815
  %v821 = vxor.u32 %v820, 2147483648
  %v822 = vmul.f32 %v821, 1.442695
  %v823 = vpow.pop %v822
  %v824 = vadd.f32 %v823, 1.0
  %v825 = vrcp.pop %v824
  %v826 = vmul.f32 1.0, %v825
  %v827 = vtanh.pop %v820
  %v828 = vmul.f32 %v826, %v686
  %830 = vrot.lane.b32.xlu0 %v827, 32
  %v831 = vpop.permute.xlu0 %830
  %v833 = vmul.f32 %v826, %v831
  %835 = vrot.lane.b32.xlu0 %v833, 32
  %v836 = vpop.permute.xlu0 %835
  %v838 = vadd.f32 %v828, %v836
  %v839 = vtanh.pop %v838
  %841 = vrot.lane.b32.xlu0 %v839, 32
  %v842 = vpop.permute.xlu0 %841
  %v844 = vmul.f32 %v826, %v842
  %v845 = vld [vmem:[%s699] sm:$0xff]
  %v846 = vld [vmem:[%s695 + $0x8] sm:$0xff]
  %v847 = vpack.c.bf16 %v772, %v772
  %849 = vrot.lane.b32.xlu0 %v847, 64
  %v850 = vpop.permute.xlu0 %849
  %v852 = vsel %vm243, %v850, 0
  %854 = vmatprep.subr.bf16.mxu0 0
  %855 = vmatpush1.bf16.msra.mxu0 0
  %856 = vmatprep.subr.bf16.mxu0 0
  %857 = vmatpush1.bf16.msra.mxu0 0
  %858 = vmatprep.subr.bf16.mxu0 0
  %859 = vmatpush1.bf16.msra.mxu0 0
  %860 = vmatprep.subr.bf16.mxu0 0
  %861 = vmatpush1.bf16.msra.mxu0 0
  %862 = vmatprep.subr.bf16.mxu0 0
  %863 = vmatpush1.bf16.msra.mxu0 0
  %864 = vmatprep.subr.bf16.mxu0 0
  %865 = vmatpush1.bf16.msra.mxu0 0
  %866 = vmatprep.subr.bf16.mxu0 0
  %867 = vmatpush1.bf16.msra.mxu0 %v240
  %868 = vmatprep.subr.bf16.mxu0 0
  %869 = vmatpush1.bf16.msra.mxu0 %v239
  %870 = vmatprep.subr.bf16.mxu0 0
  %871 = vmatpush2.bf16.msra.mxu0 0
  %872 = vmatprep.subr.bf16.mxu0 0
  %873 = vmatpush2.bf16.msra.mxu0 0
  %874 = vmatprep.subr.bf16.mxu0 0
  %875 = vmatpush2.bf16.msra.mxu0 0
  %876 = vmatprep.subr.bf16.mxu0 0
  %877 = vmatpush2.bf16.msra.mxu0 0
  %878 = vmatprep.subr.bf16.mxu0 0
  %879 = vmatpush2.bf16.msra.mxu0 0
  %880 = vmatprep.subr.bf16.mxu0 0
  %881 = vmatpush2.bf16.msra.mxu0 0
  %882 = vmatprep.subr.bf16.mxu0 0
  %883 = vmatpush2.bf16.msra.mxu0 0
  %884 = vmatprep.subr.bf16.mxu0 0
  %885 = vmatpush2.bf16.msra.mxu0 0
  %886 = vmatprep.mubr.bf16.mxu0 0
  %887 = vmatmul.mubr.bf16.gmra.mxu0 %v852
  %v888 = vpop.f32.mrf.mxu0
  %v889 = vadd.f32 0.0, %v888
  %v890 = vpop.f32.mrf.mxu0
  %v891 = vpop.f32.mrf.mxu0
  %v892 = vpop.f32.mrf.mxu0
  %893 = vdwg.mxu0
  %v894 = vadd.f32 %v845, %v889
  %v895 = vxor.u32 %v894, 2147483648
  %v896 = vmul.f32 %v895, 1.442695
  %v897 = vpow.pop %v896
  %v898 = vadd.f32 %v897, 1.0
  %v899 = vrcp.pop %v898
  %v900 = vmul.f32 1.0, %v899
  %v901 = vtanh.pop %v894
  %v902 = vmul.f32 %v900, %v766
  %904 = vrot.lane.b32.xlu0 %v901, 32
  %v905 = vpop.permute.xlu0 %904
  %v907 = vmul.f32 %v900, %v905
  %909 = vrot.lane.b32.xlu0 %v907, 32
  %v910 = vpop.permute.xlu0 %909
  %v912 = vadd.f32 %v902, %v910
  %v913 = vtanh.pop %v912
  %915 = vrot.lane.b32.xlu0 %v913, 32
  %v916 = vpop.permute.xlu0 %915
  %v918 = vmul.f32 %v900, %v916
  %v919 = vpack.c.bf16 %v844, %v844
  %921 = vrot.lane.b32.xlu0 %v919, 64
  %v922 = vpop.permute.xlu0 %921
  %v924 = vsel %vm243, %v922, 0
  %926 = vmatprep.subr.bf16.mxu0 0
  %927 = vmatpush1.bf16.msra.mxu0 0
  %928 = vmatprep.subr.bf16.mxu0 0
  %929 = vmatpush1.bf16.msra.mxu0 0
  %930 = vmatprep.subr.bf16.mxu0 0
  %931 = vmatpush1.bf16.msra.mxu0 0
  %932 = vmatprep.subr.bf16.mxu0 0
  %933 = vmatpush1.bf16.msra.mxu0 0
  %934 = vmatprep.subr.bf16.mxu0 0
  %935 = vmatpush1.bf16.msra.mxu0 0
  %936 = vmatprep.subr.bf16.mxu0 0
  %937 = vmatpush1.bf16.msra.mxu0 0
  %938 = vmatprep.subr.bf16.mxu0 0
  %939 = vmatpush1.bf16.msra.mxu0 %v321
  %940 = vmatprep.subr.bf16.mxu0 0
  %941 = vmatpush1.bf16.msra.mxu0 %v320
  %942 = vmatprep.subr.bf16.mxu0 0
  %943 = vmatpush2.bf16.msra.mxu0 0
  %944 = vmatprep.subr.bf16.mxu0 0
  %945 = vmatpush2.bf16.msra.mxu0 0
  %946 = vmatprep.subr.bf16.mxu0 0
  %947 = vmatpush2.bf16.msra.mxu0 0
  %948 = vmatprep.subr.bf16.mxu0 0
  %949 = vmatpush2.bf16.msra.mxu0 0
  %950 = vmatprep.subr.bf16.mxu0 0
  %951 = vmatpush2.bf16.msra.mxu0 0
  %952 = vmatprep.subr.bf16.mxu0 0
  %953 = vmatpush2.bf16.msra.mxu0 0
  %954 = vmatprep.subr.bf16.mxu0 0
  %955 = vmatpush2.bf16.msra.mxu0 0
  %956 = vmatprep.subr.bf16.mxu0 0
  %957 = vmatpush2.bf16.msra.mxu0 0
  %958 = vmatprep.mubr.bf16.mxu0 0
  %959 = vmatmul.mubr.bf16.gmra.mxu0 %v924
  %v960 = vpop.f32.mrf.mxu0
  %v961 = vadd.f32 0.0, %v960
  %v962 = vpop.f32.mrf.mxu0
  %v963 = vpop.f32.mrf.mxu0
  %v964 = vpop.f32.mrf.mxu0
  %965 = vdwg.mxu0
  %v966 = vadd.f32 %v846, %v961
  %v967 = vxor.u32 %v966, 2147483648
  %v968 = vmul.f32 %v967, 1.442695
  %v969 = vpow.pop %v968
  %v970 = vadd.f32 %v969, 1.0
  %v971 = vrcp.pop %v970
  %v972 = vmul.f32 1.0, %v971
  %v973 = vtanh.pop %v966
  %v974 = vmul.f32 %v972, %v838
  %976 = vrot.lane.b32.xlu0 %v973, 32
  %v977 = vpop.permute.xlu0 %976
  %v979 = vmul.f32 %v972, %v977
  %981 = vrot.lane.b32.xlu0 %v979, 32
  %v982 = vpop.permute.xlu0 %981
  %v984 = vadd.f32 %v974, %v982
  %v985 = vtanh.pop %v984
  %987 = vrot.lane.b32.xlu0 %v985, 32
  %v988 = vpop.permute.xlu0 %987
  %v990 = vmul.f32 %v972, %v988
  %v991 = vld [vmem:[%s547] sm:$0xff]
  %v992 = vld [vmem:[%s543 + $0x8] sm:$0xff]
  %v993 = vpack.c.bf16 %v918, %v918
  %995 = vrot.lane.b32.xlu0 %v993, 64
  %v996 = vpop.permute.xlu0 %995
  %v998 = vsel %vm243, %v996, 0
  %1000 = vmatprep.subr.bf16.mxu0 0
  %1001 = vmatpush1.bf16.msra.mxu0 0
  %1002 = vmatprep.subr.bf16.mxu0 0
  %1003 = vmatpush1.bf16.msra.mxu0 0
  %1004 = vmatprep.subr.bf16.mxu0 0
  %1005 = vmatpush1.bf16.msra.mxu0 0
  %1006 = vmatprep.subr.bf16.mxu0 0
  %1007 = vmatpush1.bf16.msra.mxu0 0
  %1008 = vmatprep.subr.bf16.mxu0 0
  %1009 = vmatpush1.bf16.msra.mxu0 0
  %1010 = vmatprep.subr.bf16.mxu0 0
  %1011 = vmatpush1.bf16.msra.mxu0 0
  %1012 = vmatprep.subr.bf16.mxu0 0
  %1013 = vmatpush1.bf16.msra.mxu0 %v240
  %1014 = vmatprep.subr.bf16.mxu0 0
  %1015 = vmatpush1.bf16.msra.mxu0 %v239
  %1016 = vmatprep.subr.bf16.mxu0 0
  %1017 = vmatpush2.bf16.msra.mxu0 0
  %1018 = vmatprep.subr.bf16.mxu0 0
  %1019 = vmatpush2.bf16.msra.mxu0 0
  %1020 = vmatprep.subr.bf16.mxu0 0
  %1021 = vmatpush2.bf16.msra.mxu0 0
  %1022 = vmatprep.subr.bf16.mxu0 0
  %1023 = vmatpush2.bf16.msra.mxu0 0
  %1024 = vmatprep.subr.bf16.mxu0 0
  %1025 = vmatpush2.bf16.msra.mxu0 0
  %1026 = vmatprep.subr.bf16.mxu0 0
  %1027 = vmatpush2.bf16.msra.mxu0 0
  %1028 = vmatprep.subr.bf16.mxu0 0
  %1029 = vmatpush2.bf16.msra.mxu0 0
  %1030 = vmatprep.subr.bf16.mxu0 0
  %1031 = vmatpush2.bf16.msra.mxu0 0
  %1032 = vmatprep.mubr.bf16.mxu0 0
  %1033 = vmatmul.mubr.bf16.gmra.mxu0 %v998
  %v1034 = vpop.f32.mrf.mxu0
  %v1035 = vadd.f32 0.0, %v1034
  %v1036 = vpop.f32.mrf.mxu0
  %v1037 = vpop.f32.mrf.mxu0
  %v1038 = vpop.f32.mrf.mxu0
  %1039 = vdwg.mxu0
  %v1040 = vadd.f32 %v991, %v1035
  %v1041 = vxor.u32 %v1040, 2147483648
  %v1042 = vmul.f32 %v1041, 1.442695
  %v1043 = vpow.pop %v1042
  %v1044 = vadd.f32 %v1043, 1.0
  %v1045 = vrcp.pop %v1044
  %v1046 = vmul.f32 1.0, %v1045
  %v1047 = vtanh.pop %v1040
  %v1048 = vmul.f32 %v1046, %v912
  %1050 = vrot.lane.b32.xlu0 %v1047, 32
  %v1051 = vpop.permute.xlu0 %1050
  %v1053 = vmul.f32 %v1046, %v1051
  %1055 = vrot.lane.b32.xlu0 %v1053, 32
  %v1056 = vpop.permute.xlu0 %1055
  %v1058 = vadd.f32 %v1048, %v1056
  %v1059 = vtanh.pop %v1058
  %1061 = vrot.lane.b32.xlu0 %v1059, 32
  %v1062 = vpop.permute.xlu0 %1061
  %v1064 = vmul.f32 %v1046, %v1062
  %v1065 = vpack.c.bf16 %v990, %v990
  %1067 = vrot.lane.b32.xlu0 %v1065, 64
  %v1068 = vpop.permute.xlu0 %1067
  %v1070 = vsel %vm243, %v1068, 0
  %1072 = vmatprep.subr.bf16.mxu0 0
  %1073 = vmatpush1.bf16.msra.mxu0 0
  %1074 = vmatprep.subr.bf16.mxu0 0
  %1075 = vmatpush1.bf16.msra.mxu0 0
  %1076 = vmatprep.subr.bf16.mxu0 0
  %1077 = vmatpush1.bf16.msra.mxu0 0
  %1078 = vmatprep.subr.bf16.mxu0 0
  %1079 = vmatpush1.bf16.msra.mxu0 0
  %1080 = vmatprep.subr.bf16.mxu0 0
  %1081 = vmatpush1.bf16.msra.mxu0 0
  %1082 = vmatprep.subr.bf16.mxu0 0
  %1083 = vmatpush1.bf16.msra.mxu0 0
  %1084 = vmatprep.subr.bf16.mxu0 0
  %1085 = vmatpush1.bf16.msra.mxu0 %v321
  %1086 = vmatprep.subr.bf16.mxu0 0
  %1087 = vmatpush1.bf16.msra.mxu0 %v320
  %1088 = vmatprep.subr.bf16.mxu0 0
  %1089 = vmatpush2.bf16.msra.mxu0 0
  %1090 = vmatprep.subr.bf16.mxu0 0
  %1091 = vmatpush2.bf16.msra.mxu0 0
  %1092 = vmatprep.subr.bf16.mxu0 0
  %1093 = vmatpush2.bf16.msra.mxu0 0
  %1094 = vmatprep.subr.bf16.mxu0 0
  %1095 = vmatpush2.bf16.msra.mxu0 0
  %1096 = vmatprep.subr.bf16.mxu0 0
  %1097 = vmatpush2.bf16.msra.mxu0 0
  %1098 = vmatprep.subr.bf16.mxu0 0
  %1099 = vmatpush2.bf16.msra.mxu0 0
  %1100 = vmatprep.subr.bf16.mxu0 0
  %1101 = vmatpush2.bf16.msra.mxu0 0
  %1102 = vmatprep.subr.bf16.mxu0 0
  %1103 = vmatpush2.bf16.msra.mxu0 0
  %1104 = vmatprep.mubr.bf16.mxu0 0
  %1105 = vmatmul.mubr.bf16.gmra.mxu0 %v1070
  %v1106 = vpop.f32.mrf.mxu0
  %v1107 = vadd.f32 0.0, %v1106
  %v1108 = vpop.f32.mrf.mxu0
  %v1109 = vpop.f32.mrf.mxu0
  %v1110 = vpop.f32.mrf.mxu0
  %1111 = vdwg.mxu0
  %v1112 = vadd.f32 %v992, %v1107
  %v1113 = vxor.u32 %v1112, 2147483648
  %v1114 = vmul.f32 %v1113, 1.442695
  %v1115 = vpow.pop %v1114
  %v1116 = vadd.f32 %v1115, 1.0
  %v1117 = vrcp.pop %v1116
  %v1118 = vmul.f32 1.0, %v1117
  %v1119 = vtanh.pop %v1112
  %v1120 = vmul.f32 %v1118, %v984
  %1122 = vrot.lane.b32.xlu0 %v1119, 32
  %v1123 = vpop.permute.xlu0 %1122
  %v1125 = vmul.f32 %v1118, %v1123
  %1127 = vrot.lane.b32.xlu0 %v1125, 32
  %v1128 = vpop.permute.xlu0 %1127
  %v1130 = vadd.f32 %v1120, %v1128
  %v1131 = vtanh.pop %v1130
  %1133 = vrot.lane.b32.xlu0 %v1131, 32
  %v1134 = vpop.permute.xlu0 %1133
  %v1136 = vmul.f32 %v1118, %v1134
  %v1137 = vld [vmem:[%s395] sm:$0xff]
  %v1138 = vld [vmem:[%s391 + $0x8] sm:$0xff]
  %v1139 = vpack.c.bf16 %v1064, %v1064
  %1141 = vrot.lane.b32.xlu0 %v1139, 64
  %v1142 = vpop.permute.xlu0 %1141
  %v1144 = vsel %vm243, %v1142, 0
  %1146 = vmatprep.subr.bf16.mxu0 0
  %1147 = vmatpush1.bf16.msra.mxu0 0
  %1148 = vmatprep.subr.bf16.mxu0 0
  %1149 = vmatpush1.bf16.msra.mxu0 0
  %1150 = vmatprep.subr.bf16.mxu0 0
  %1151 = vmatpush1.bf16.msra.mxu0 0
  %1152 = vmatprep.subr.bf16.mxu0 0
  %1153 = vmatpush1.bf16.msra.mxu0 0
  %1154 = vmatprep.subr.bf16.mxu0 0
  %1155 = vmatpush1.bf16.msra.mxu0 0
  %1156 = vmatprep.subr.bf16.mxu0 0
  %1157 = vmatpush1.bf16.msra.mxu0 0
  %1158 = vmatprep.subr.bf16.mxu0 0
  %1159 = vmatpush1.bf16.msra.mxu0 %v240
  %1160 = vmatprep.subr.bf16.mxu0 0
  %1161 = vmatpush1.bf16.msra.mxu0 %v239
  %1162 = vmatprep.subr.bf16.mxu0 0
  %1163 = vmatpush2.bf16.msra.mxu0 0
  %1164 = vmatprep.subr.bf16.mxu0 0
  %1165 = vmatpush2.bf16.msra.mxu0 0
  %1166 = vmatprep.subr.bf16.mxu0 0
  %1167 = vmatpush2.bf16.msra.mxu0 0
  %1168 = vmatprep.subr.bf16.mxu0 0
  %1169 = vmatpush2.bf16.msra.mxu0 0
  %1170 = vmatprep.subr.bf16.mxu0 0
  %1171 = vmatpush2.bf16.msra.mxu0 0
  %1172 = vmatprep.subr.bf16.mxu0 0
  %1173 = vmatpush2.bf16.msra.mxu0 0
  %1174 = vmatprep.subr.bf16.mxu0 0
  %1175 = vmatpush2.bf16.msra.mxu0 0
  %1176 = vmatprep.subr.bf16.mxu0 0
  %1177 = vmatpush2.bf16.msra.mxu0 0
  %1178 = vmatprep.mubr.bf16.mxu0 0
  %1179 = vmatmul.mubr.bf16.gmra.mxu0 %v1144
  %v1180 = vpop.f32.mrf.mxu0
  %v1181 = vadd.f32 0.0, %v1180
  %v1182 = vpop.f32.mrf.mxu0
  %v1183 = vpop.f32.mrf.mxu0
  %v1184 = vpop.f32.mrf.mxu0
  %1185 = vdwg.mxu0
  %v1186 = vadd.f32 %v1137, %v1181
  %v1187 = vxor.u32 %v1186, 2147483648
  %v1188 = vmul.f32 %v1187, 1.442695
  %v1189 = vpow.pop %v1188
  %v1190 = vadd.f32 %v1189, 1.0
  %v1191 = vrcp.pop %v1190
  %v1192 = vmul.f32 1.0, %v1191
  %v1193 = vtanh.pop %v1186
  %v1194 = vmul.f32 %v1192, %v1058
  %1196 = vrot.lane.b32.xlu0 %v1193, 32
  %v1197 = vpop.permute.xlu0 %1196
  %v1199 = vmul.f32 %v1192, %v1197
  %1201 = vrot.lane.b32.xlu0 %v1199, 32
  %v1202 = vpop.permute.xlu0 %1201
  %v1204 = vadd.f32 %v1194, %v1202
  %v1205 = vtanh.pop %v1204
  %1207 = vrot.lane.b32.xlu0 %v1205, 32
  %v1208 = vpop.permute.xlu0 %1207
  %v1210 = vmul.f32 %v1192, %v1208
  %v1211 = vpack.c.bf16 %v1136, %v1136
  %1213 = vrot.lane.b32.xlu0 %v1211, 64
  %v1214 = vpop.permute.xlu0 %1213
  %v1216 = vsel %vm243, %v1214, 0
  %1218 = vmatprep.subr.bf16.mxu0 0
  %1219 = vmatpush1.bf16.msra.mxu0 0
  %1220 = vmatprep.subr.bf16.mxu0 0
  %1221 = vmatpush1.bf16.msra.mxu0 0
  %1222 = vmatprep.subr.bf16.mxu0 0
  %1223 = vmatpush1.bf16.msra.mxu0 0
  %1224 = vmatprep.subr.bf16.mxu0 0
  %1225 = vmatpush1.bf16.msra.mxu0 0
  %1226 = vmatprep.subr.bf16.mxu0 0
  %1227 = vmatpush1.bf16.msra.mxu0 0
  %1228 = vmatprep.subr.bf16.mxu0 0
  %1229 = vmatpush1.bf16.msra.mxu0 0
  %1230 = vmatprep.subr.bf16.mxu0 0
  %1231 = vmatpush1.bf16.msra.mxu0 %v321
  %1232 = vmatprep.subr.bf16.mxu0 0
  %1233 = vmatpush1.bf16.msra.mxu0 %v320
  %1234 = vmatprep.subr.bf16.mxu0 0
  %1235 = vmatpush2.bf16.msra.mxu0 0
  %1236 = vmatprep.subr.bf16.mxu0 0
  %1237 = vmatpush2.bf16.msra.mxu0 0
  %1238 = vmatprep.subr.bf16.mxu0 0
  %1239 = vmatpush2.bf16.msra.mxu0 0
  %1240 = vmatprep.subr.bf16.mxu0 0
  %1241 = vmatpush2.bf16.msra.mxu0 0
  %1242 = vmatprep.subr.bf16.mxu0 0
  %1243 = vmatpush2.bf16.msra.mxu0 0
  %1244 = vmatprep.subr.bf16.mxu0 0
  %1245 = vmatpush2.bf16.msra.mxu0 0
  %1246 = vmatprep.subr.bf16.mxu0 0
  %1247 = vmatpush2.bf16.msra.mxu0 0
  %1248 = vmatprep.subr.bf16.mxu0 0
  %1249 = vmatpush2.bf16.msra.mxu0 0
  %1250 = vmatprep.mubr.bf16.mxu0 0
  %1251 = vmatmul.mubr.bf16.gmra.mxu0 %v1216
  %v1252 = vpop.f32.mrf.mxu0
  %v1253 = vadd.f32 0.0, %v1252
  %v1254 = vpop.f32.mrf.mxu0
  %v1255 = vpop.f32.mrf.mxu0
  %v1256 = vpop.f32.mrf.mxu0
  %1257 = vdwg.mxu0
  %v1258 = vadd.f32 %v1138, %v1253
  %v1259 = vxor.u32 %v1258, 2147483648
  %v1260 = vmul.f32 %v1259, 1.442695
  %v1261 = vpow.pop %v1260
  %v1262 = vadd.f32 %v1261, 1.0
  %v1263 = vrcp.pop %v1262
  %v1264 = vmul.f32 1.0, %v1263
  %v1265 = vtanh.pop %v1258
  %v1266 = vmul.f32 %v1264, %v1130
  %1268 = vrot.lane.b32.xlu0 %v1265, 32
  %v1269 = vpop.permute.xlu0 %1268
  %v1271 = vmul.f32 %v1264, %v1269
  %1273 = vrot.lane.b32.xlu0 %v1271, 32
  %v1274 = vpop.permute.xlu0 %1273
  %v1276 = vadd.f32 %v1266, %v1274
  %v1277 = vtanh.pop %v1276
  %1279 = vrot.lane.b32.xlu0 %v1277, 32
  %v1280 = vpop.permute.xlu0 %1279
  %v1282 = vmul.f32 %v1264, %v1280
  %v1283 = vld [vmem:[%s229] sm:$0xff]
  %v1284 = vld [vmem:[%s225 + $0x8] sm:$0xff]
  %v1285 = vpack.c.bf16 %v1210, %v1210
  %1287 = vrot.lane.b32.xlu0 %v1285, 64
  %v1288 = vpop.permute.xlu0 %1287
  %v1290 = vsel %vm243, %v1288, 0
  %1292 = vmatprep.subr.bf16.mxu0 0
  %1293 = vmatpush1.bf16.msra.mxu0 0
  %1294 = vmatprep.subr.bf16.mxu0 0
  %1295 = vmatpush1.bf16.msra.mxu0 0
  %1296 = vmatprep.subr.bf16.mxu0 0
  %1297 = vmatpush1.bf16.msra.mxu0 0
  %1298 = vmatprep.subr.bf16.mxu0 0
  %1299 = vmatpush1.bf16.msra.mxu0 0
  %1300 = vmatprep.subr.bf16.mxu0 0
  %1301 = vmatpush1.bf16.msra.mxu0 0
  %1302 = vmatprep.subr.bf16.mxu0 0
  %1303 = vmatpush1.bf16.msra.mxu0 0
  %1304 = vmatprep.subr.bf16.mxu0 0
  %1305 = vmatpush1.bf16.msra.mxu0 %v240
  %1306 = vmatprep.subr.bf16.mxu0 0
  %1307 = vmatpush1.bf16.msra.mxu0 %v239
  %1308 = vmatprep.subr.bf16.mxu0 0
  %1309 = vmatpush2.bf16.msra.mxu0 0
  %1310 = vmatprep.subr.bf16.mxu0 0
  %1311 = vmatpush2.bf16.msra.mxu0 0
  %1312 = vmatprep.subr.bf16.mxu0 0
  %1313 = vmatpush2.bf16.msra.mxu0 0
  %1314 = vmatprep.subr.bf16.mxu0 0
  %1315 = vmatpush2.bf16.msra.mxu0 0
  %1316 = vmatprep.subr.bf16.mxu0 0
  %1317 = vmatpush2.bf16.msra.mxu0 0
  %1318 = vmatprep.subr.bf16.mxu0 0
  %1319 = vmatpush2.bf16.msra.mxu0 0
  %1320 = vmatprep.subr.bf16.mxu0 0
  %1321 = vmatpush2.bf16.msra.mxu0 0
  %1322 = vmatprep.subr.bf16.mxu0 0
  %1323 = vmatpush2.bf16.msra.mxu0 0
  %1324 = vmatprep.mubr.bf16.mxu0 0
  %1325 = vmatmul.mubr.bf16.gmra.mxu0 %v1290
  %v1326 = vpop.f32.mrf.mxu0
  %v1327 = vadd.f32 0.0, %v1326
  %v1328 = vpop.f32.mrf.mxu0
  %v1329 = vpop.f32.mrf.mxu0
  %v1330 = vpop.f32.mrf.mxu0
  %1331 = vdwg.mxu0
  %v1332 = vadd.f32 %v1283, %v1327
  %v1333 = vxor.u32 %v1332, 2147483648
  %v1334 = vmul.f32 %v1333, 1.442695
  %v1335 = vpow.pop %v1334
  %v1336 = vadd.f32 %v1335, 1.0
  %v1337 = vrcp.pop %v1336
  %v1338 = vmul.f32 1.0, %v1337
  %v1339 = vtanh.pop %v1332
  %v1340 = vmul.f32 %v1338, %v1204
  %1342 = vrot.lane.b32.xlu0 %v1339, 32
  %v1343 = vpop.permute.xlu0 %1342
  %v1345 = vmul.f32 %v1338, %v1343
  %1347 = vrot.lane.b32.xlu0 %v1345, 32
  %v1348 = vpop.permute.xlu0 %1347
  %v1350 = vadd.f32 %v1340, %v1348
  %v1351 = vtanh.pop %v1350
  %1353 = vrot.lane.b32.xlu0 %v1351, 32
  %v1354 = vpop.permute.xlu0 %1353
  %v1356 = vmul.f32 %v1338, %v1354
  %v1357 = vpack.c.bf16 %v1282, %v1282
  %1359 = vrot.lane.b32.xlu0 %v1357, 64
  %v1360 = vpop.permute.xlu0 %1359
  %v1362 = vsel %vm243, %v1360, 0
  %1364 = vmatprep.subr.bf16.mxu0 0
  %1365 = vmatpush1.bf16.msra.mxu0 0
  %1366 = vmatprep.subr.bf16.mxu0 0
  %1367 = vmatpush1.bf16.msra.mxu0 0
  %1368 = vmatprep.subr.bf16.mxu0 0
  %1369 = vmatpush1.bf16.msra.mxu0 0
  %1370 = vmatprep.subr.bf16.mxu0 0
  %1371 = vmatpush1.bf16.msra.mxu0 0
  %1372 = vmatprep.subr.bf16.mxu0 0
  %1373 = vmatpush1.bf16.msra.mxu0 0
  %1374 = vmatprep.subr.bf16.mxu0 0
  %1375 = vmatpush1.bf16.msra.mxu0 0
  %1376 = vmatprep.subr.bf16.mxu0 0
  %1377 = vmatpush1.bf16.msra.mxu0 %v321
  %1378 = vmatprep.subr.bf16.mxu0 0
  %1379 = vmatpush1.bf16.msra.mxu0 %v320
  %1380 = vmatprep.subr.bf16.mxu0 0
  %1381 = vmatpush2.bf16.msra.mxu0 0
  %1382 = vmatprep.subr.bf16.mxu0 0
  %1383 = vmatpush2.bf16.msra.mxu0 0
  %1384 = vmatprep.subr.bf16.mxu0 0
  %1385 = vmatpush2.bf16.msra.mxu0 0
  %1386 = vmatprep.subr.bf16.mxu0 0
  %1387 = vmatpush2.bf16.msra.mxu0 0
  %1388 = vmatprep.subr.bf16.mxu0 0
  %1389 = vmatpush2.bf16.msra.mxu0 0
  %1390 = vmatprep.subr.bf16.mxu0 0
  %1391 = vmatpush2.bf16.msra.mxu0 0
  %1392 = vmatprep.subr.bf16.mxu0 0
  %1393 = vmatpush2.bf16.msra.mxu0 0
  %1394 = vmatprep.subr.bf16.mxu0 0
  %1395 = vmatpush2.bf16.msra.mxu0 0
  %1396 = vmatprep.mubr.bf16.mxu0 0
  %1397 = vmatmul.mubr.bf16.gmra.mxu0 %v1362
  %v1398 = vpop.f32.mrf.mxu0
  %v1399 = vadd.f32 0.0, %v1398
  %v1400 = vpop.f32.mrf.mxu0
  %v1401 = vpop.f32.mrf.mxu0
  %v1402 = vpop.f32.mrf.mxu0
  %1403 = vdwg.mxu0
  %v1404 = vadd.f32 %v1284, %v1399
  %v1405 = vxor.u32 %v1404, 2147483648
  %v1406 = vmul.f32 %v1405, 1.442695
  %v1407 = vpow.pop %v1406
  %v1408 = vadd.f32 %v1407, 1.0
  %v1409 = vrcp.pop %v1408
  %v1410 = vmul.f32 1.0, %v1409
  %v1411 = vtanh.pop %v1404
  %v1412 = vmul.f32 %v1410, %v1276
  %1414 = vrot.lane.b32.xlu0 %v1411, 32
  %v1415 = vpop.permute.xlu0 %1414
  %v1417 = vmul.f32 %v1410, %v1415
  %1419 = vrot.lane.b32.xlu0 %v1417, 32
  %v1420 = vpop.permute.xlu0 %1419
  %v1422 = vadd.f32 %v1412, %v1420
  %v1423 = vtanh.pop %v1422
  %1425 = vrot.lane.b32.xlu0 %v1423, 32
  %v1426 = vpop.permute.xlu0 %1425
  %v1428 = vmul.f32 %v1410, %v1426
  %1430 = vrot.lane.b32.xlu0 %v1356, 64
  %v1431 = vpop.permute.xlu0 %1430
  %1434 = vrot.lane.b32.xlu0 %v1428, 96
  %v1435 = vpop.permute.xlu0 %1434
  %v1437 = vsel %vm243, %v1431, %v1435
  %v1438 = vld [vmem:[%s4] sm:$0xff]
  %v1439 = vld [vmem:[%s4 + $0x8] sm:$0xff]
  %v1440 = vld [vmem:[%s4 + $0x10] sm:$0xff]
  %v1441 = vld [vmem:[%s4 + $0x18] sm:$0xff]
  %v1442 = vld [vmem:[%s4 + $0x20] sm:$0xff]
  %v1443 = vld [vmem:[%s4 + $0x28] sm:$0xff]
  %v1444 = vld [vmem:[%s4 + $0x30] sm:$0xff]
  %v1445 = vld [vmem:[%s4 + $0x38] sm:$0xff]
  %v1446 = vld [vmem:[%s5] sm:$0x1]
  %v1448 = vlaneseq
  %v1449 = vshrl.u32 %v1448, 7
  %v1450 = vsub.s32 0, %v1449
  %v1451 = vrot.slane %v1446, %v1450
  %v1454 = vsel %vm112, %v1437, 0
  %1456 = vmatprep.subr.mxu0 0.0
  %1457 = vmatpush1.msra.mxu0 0.0
  %1458 = vmatprep.subr.mxu0 0.0
  %1459 = vmatpush1.msra.mxu0 0.0
  %1460 = vmatprep.subr.mxu0 0.0
  %1461 = vmatpush1.msra.mxu0 0.0
  %1462 = vmatprep.subr.mxu0 0.0
  %1463 = vmatpush1.msra.mxu0 0.0
  %1464 = vmatprep.subr.mxu0 0.0
  %1465 = vmatpush1.msra.mxu0 0.0
  %1466 = vmatprep.subr.mxu0 0.0
  %1467 = vmatpush1.msra.mxu0 0.0
  %1468 = vmatprep.subr.mxu0 0.0
  %1469 = vmatpush1.msra.mxu0 0.0
  %1470 = vmatprep.subr.mxu0 0.0
  %1471 = vmatpush1.msra.mxu0 0.0
  %1472 = vmatprep.subr.mxu0 0.0
  %1473 = vmatpush1.msra.mxu0 %v1445
  %1474 = vmatprep.subr.mxu0 0.0
  %1475 = vmatpush1.msra.mxu0 %v1444
  %1476 = vmatprep.subr.mxu0 0.0
  %1477 = vmatpush1.msra.mxu0 %v1443
  %1478 = vmatprep.subr.mxu0 0.0
  %1479 = vmatpush1.msra.mxu0 %v1442
  %1480 = vmatprep.subr.mxu0 0.0
  %1481 = vmatpush1.msra.mxu0 %v1441
  %1482 = vmatprep.subr.mxu0 0.0
  %1483 = vmatpush1.msra.mxu0 %v1440
  %1484 = vmatprep.subr.mxu0 0.0
  %1485 = vmatpush1.msra.mxu0 %v1439
  %1486 = vmatprep.subr.mxu0 0.0
  %1487 = vmatpush1.msra.mxu0 %v1438
  %1488 = vmatprep.subr.mxu0 0.0
  %1489 = vmatpush2.msra.mxu0 0.0
  %1490 = vmatprep.subr.mxu0 0.0
  %1491 = vmatpush2.msra.mxu0 0.0
  %1492 = vmatprep.subr.mxu0 0.0
  %1493 = vmatpush2.msra.mxu0 0.0
  %1494 = vmatprep.subr.mxu0 0.0
  %1495 = vmatpush2.msra.mxu0 0.0
  %1496 = vmatprep.subr.mxu0 0.0
  %1497 = vmatpush2.msra.mxu0 0.0
  %1498 = vmatprep.subr.mxu0 0.0
  %1499 = vmatpush2.msra.mxu0 0.0
  %1500 = vmatprep.subr.mxu0 0.0
  %1501 = vmatpush2.msra.mxu0 0.0
  %1502 = vmatprep.subr.mxu0 0.0
  %1503 = vmatpush2.msra.mxu0 0.0
  %1504 = vmatprep.subr.mxu0 0.0
  %1505 = vmatpush2.msra.mxu0 0.0
  %1506 = vmatprep.subr.mxu0 0.0
  %1507 = vmatpush2.msra.mxu0 0.0
  %1508 = vmatprep.subr.mxu0 0.0
  %1509 = vmatpush2.msra.mxu0 0.0
  %1510 = vmatprep.subr.mxu0 0.0
  %1511 = vmatpush2.msra.mxu0 0.0
  %1512 = vmatprep.subr.mxu0 0.0
  %1513 = vmatpush2.msra.mxu0 0.0
  %1514 = vmatprep.subr.mxu0 0.0
  %1515 = vmatpush2.msra.mxu0 0.0
  %1516 = vmatprep.subr.mxu0 0.0
  %1517 = vmatpush2.msra.mxu0 0.0
  %1518 = vmatprep.subr.mxu0 0.0
  %1519 = vmatpush2.msra.mxu0 0.0
  %1520 = vmatprep.mubr.f32.mxu0 0.0
  %1521 = vmatmul.mubr.f32.gmra.mxu0 %v1454
  %v1522 = vpop.f32.mrf.mxu0
  %v1523 = vadd.f32 %v1451, %v1522
  %v1524 = vpop.f32.mrf.mxu0
  %1525 = vdwg.mxu0
  %vm1526 = vcmask 23552
  %1527 = vst.msk [vmem:[%s6] sm:$0xff] %vm1526, %v1523
  // Predicated region
  $region26: #{rnn_forward.3} parent=0 // pred_check
    _
  $region27: #{rnn_forward.3} parent=0 // pred_check_branch
    %1529 = sbr.rel (0) target = $region29
  $region28: #{rnn_forward.3} parent=0 // pred_region
    _
  $region29: #{rnn_forward.3} parent=0 // pred_fallthru
    _
  // Predicated region
  $region30: #{rnn_forward.3} parent=0 // pred_check
    _
  $region31: #{rnn_forward.3} parent=0 // pred_check_branch
    %1531 = sbr.rel (0) target = $region33
  $region32: #{rnn_forward.3} parent=0 // pred_region
    _
  $region33: #{rnn_forward.3} parent=0 // pred_fallthru
    _

// kernel: rnn_forward.2
$region0: #{rnn_forward.2}
  #allocation0 [shape = 'u32[]', space=smem, size = 0x4, offset = 0x4, fixed_abs, tag = 'smem constant byte address 0x4 - core index']
  #allocation1 [shape = 'u32[144,128]{1,0:T(1,128)}', space=vmem, size = 0x12000, scoped, tag = 'internal scratch']
  #allocation2 [shape = 'f32[64,256]{1,0:T(8,128)}', space=vmem, size = 0x10000, scoped, tag = 'scratch operand']
  %s0 = inlined_call_operand.vmem [shape: bf16[64,16], index: 0, kind: input, shape index: {}]
  %s1 = inlined_call_operand.vmem [shape: bf16[16,256], index: 1, kind: input, shape index: {}]
  %s2 = inlined_call_operand.vmem [shape: bf16[2,32,128], index: 2, kind: input, shape index: {}]
  %s3 = inlined_call_operand.vmem [shape: f32[1,256], index: 3, kind: input, shape index: {}]
  %s4 = inlined_call_operand.vmem [shape: bf16[8,8,64], index: 4, kind: output, shape index: {}]
  %s5 = sld [smem:[#allocation0]]
  $region26: #{rnn_forward.2} parent=0
    _
  %s7 = ssub.s32 1, %s5
  %s8 = scalar_select 0, %s7, %s5
  // Predicated region
  $region2: #{rnn_forward.2} parent=0 // pred_check
    _
  $region3: #{rnn_forward.2} parent=0 // pred_check_branch
    %10 = sbr.rel (0) target = $region5
  $region4: #{rnn_forward.2} parent=0 // pred_region
    _
  $region5: #{rnn_forward.2} parent=0 // pred_fallthru
    _
  // Predicated region
  $region6: #{rnn_forward.2} parent=0 // pred_check
    _
  $region7: #{rnn_forward.2} parent=0 // pred_check_branch
    %12 = sbr.rel (0) target = $region9
  $region8: #{rnn_forward.2} parent=0 // pred_region
    _
  $region9: #{rnn_forward.2} parent=0 // pred_fallthru
    _
  // Predicated region
  $region10: #{rnn_forward.2} parent=0 // pred_check
    _
  $region11: #{rnn_forward.2} parent=0 // pred_check_branch
    %14 = sbr.rel (0) target = $region13
  $region12: #{rnn_forward.2} parent=0 // pred_region
    _
  $region13: #{rnn_forward.2} parent=0 // pred_fallthru
    _
  // Predicated region
  $region14: #{rnn_forward.2} parent=0 // pred_check
    _
  $region15: #{rnn_forward.2} parent=0 // pred_check_branch
    %16 = sbr.rel (0) target = $region17
  $region16: #{rnn_forward.2} parent=0 // pred_region
    _
  $region17: #{rnn_forward.2} parent=0 // pred_fallthru
    _
  %v18 = vld [vmem:[%s0] sm:$0xf]
  %v19 = vld [vmem:[%s0 + $0x4] sm:$0xf]
  %v20 = vld [vmem:[%s0 + $0x8] sm:$0xf]
  %v21 = vld [vmem:[%s0 + $0xc] sm:$0xf]
  %v22 = vld [vmem:[%s0 + $0x10] sm:$0xf]
  %v23 = vld [vmem:[%s0 + $0x14] sm:$0xf]
  %v24 = vld [vmem:[%s0 + $0x18] sm:$0xf]
  %v25 = vld [vmem:[%s0 + $0x1c] sm:$0xf]
  %v26 = vld [vmem:[%s1] sm:$0xff]
  %v27 = vld [vmem:[%s1 + $0x8] sm:$0xff]
  %v28 = vld [vmem:[%s3] sm:$0x3]
  %v30 = vlaneseq
  %v31 = vshrl.u32 %v30, 7
  %v32 = vsub.s32 0, %v31
  %v33 = vrot.slane %v28, %v32
  %v34 = vlaneseq
  %v35 = vshrl.u32 %v34, 7
  %v36 = vsub.s32 1, %v35
  %v37 = vrot.slane %v28, %v36
  %v48 = vunpack.c.l.b16 %v18
  %v49 = vunpack.c.l.b16 %v19
  %v50 = vunpack.c.l.b16 %v20
  %v51 = vunpack.c.l.b16 %v21
  %v52 = vunpack.c.l.b16 %v22
  %v53 = vunpack.c.l.b16 %v23
  %v54 = vunpack.c.l.b16 %v24
  %v55 = vunpack.c.l.b16 %v25
  %v56 = vpack.c.b16 %v49, %v48
  %v57 = vpack.c.b16 %v51, %v50
  %v58 = vpack.c.b16 %v53, %v52
  %v59 = vpack.c.b16 %v55, %v54
  %v62 = vunpack.c.l.b16 %v26
  %v63 = vunpack.c.h.b16 %v26
  %v64 = vunpack.c.l.b16 %v27
  %v65 = vunpack.c.h.b16 %v27
  %v66 = vpack.c.b16 %v64, %v62
  %v67 = vpack.c.b16 %v65, %v63
  %vm70 = vcmask 130048
  %v72 = vsel %vm70, %v56, 0
  %v75 = vsel %vm70, %v57, 0
  %v78 = vsel %vm70, %v58, 0
  %v81 = vsel %vm70, %v59, 0
  %83 = vmatprep.subr.bf16.mxu0 0
  %84 = vmatpush1.bf16.msra.mxu0 0
  %85 = vmatprep.subr.bf16.mxu0 0
  %86 = vmatpush1.bf16.msra.mxu0 0
  %87 = vmatprep.subr.bf16.mxu0 0
  %88 = vmatpush1.bf16.msra.mxu0 0
  %89 = vmatprep.subr.bf16.mxu0 0
  %90 = vmatpush1.bf16.msra.mxu0 0
  %91 = vmatprep.subr.bf16.mxu0 0
  %92 = vmatpush1.bf16.msra.mxu0 0
  %93 = vmatprep.subr.bf16.mxu0 0
  %94 = vmatpush1.bf16.msra.mxu0 0
  %95 = vmatprep.subr.bf16.mxu0 0
  %96 = vmatpush1.bf16.msra.mxu0 0
  %97 = vmatprep.subr.bf16.mxu0 %v67
  %98 = vmatpush1.bf16.msra.mxu0 %v66
  %99 = vmatprep.subr.bf16.mxu0 0
  %100 = vmatpush2.bf16.msra.mxu0 0
  %101 = vmatprep.subr.bf16.mxu0 0
  %102 = vmatpush2.bf16.msra.mxu0 0
  %103 = vmatprep.subr.bf16.mxu0 0
  %104 = vmatpush2.bf16.msra.mxu0 0
  %105 = vmatprep.subr.bf16.mxu0 0
  %106 = vmatpush2.bf16.msra.mxu0 0
  %107 = vmatprep.subr.bf16.mxu0 0
  %108 = vmatpush2.bf16.msra.mxu0 0
  %109 = vmatprep.subr.bf16.mxu0 0
  %110 = vmatpush2.bf16.msra.mxu0 0
  %111 = vmatprep.subr.bf16.mxu0 0
  %112 = vmatpush2.bf16.msra.mxu0 0
  %113 = vmatprep.subr.bf16.mxu0 0
  %114 = vmatpush2.bf16.msra.mxu0 0
  %115 = vmatprep.mubr.bf16.mxu0 0
  %116 = vmatmul.mubr.bf16.gmra.mxu0 %v72
  %v117 = vpop.f32.mrf.mxu0
  %v118 = vadd.f32 %v33, %v117
  %v119 = vpop.f32.mrf.mxu0
  %v120 = vadd.f32 %v37, %v119
  %v121 = vpop.f32.mrf.mxu0
  %v122 = vadd.f32 %v33, %v121
  %v123 = vpop.f32.mrf.mxu0
  %v124 = vadd.f32 %v37, %v123
  %125 = vmatprep.mubr.bf16.mxu0 0
  %126 = vmatmul.mubr.bf16.gmra.mxu0 %v75
  %v127 = vpop.f32.mrf.mxu0
  %v128 = vadd.f32 %v33, %v127
  %v129 = vpop.f32.mrf.mxu0
  %v130 = vadd.f32 %v37, %v129
  %v131 = vpop.f32.mrf.mxu0
  %v132 = vadd.f32 %v33, %v131
  %v133 = vpop.f32.mrf.mxu0
  %v134 = vadd.f32 %v37, %v133
  %135 = vmatprep.mubr.bf16.mxu0 0
  %136 = vmatmul.mubr.bf16.gmra.mxu0 %v78
  %v137 = vpop.f32.mrf.mxu0
  %v138 = vadd.f32 %v33, %v137
  %v139 = vpop.f32.mrf.mxu0
  %v140 = vadd.f32 %v37, %v139
  %v141 = vpop.f32.mrf.mxu0
  %v142 = vadd.f32 %v33, %v141
  %v143 = vpop.f32.mrf.mxu0
  %v144 = vadd.f32 %v37, %v143
  %145 = vmatprep.mubr.bf16.mxu0 0
  %146 = vmatmul.mubr.bf16.gmra.mxu0 %v81
  %v147 = vpop.f32.mrf.mxu0
  %v148 = vadd.f32 %v33, %v147
  %v149 = vpop.f32.mrf.mxu0
  %v150 = vadd.f32 %v37, %v149
  %v151 = vpop.f32.mrf.mxu0
  %v152 = vadd.f32 %v33, %v151
  %v153 = vpop.f32.mrf.mxu0
  %v154 = vadd.f32 %v37, %v153
  %155 = vdwg.mxu0
  %156 = vst [vmem:[#allocation2] sm:$0xff] %v118
  %157 = vst [vmem:[#allocation2 + $0x8] sm:$0xff] %v120
  %158 = vst [vmem:[#allocation2 + $0x10] sm:$0xff] %v122
  %159 = vst [vmem:[#allocation2 + $0x18] sm:$0xff] %v124
  %160 = vst [vmem:[#allocation2 + $0x20] sm:$0xff] %v128
  %161 = vst [vmem:[#allocation2 + $0x28] sm:$0xff] %v130
  %162 = vst [vmem:[#allocation2 + $0x30] sm:$0xff] %v132
  %163 = vst [vmem:[#allocation2 + $0x38] sm:$0xff] %v134
  %164 = vst [vmem:[#allocation2 + $0x40] sm:$0xff] %v138
  %165 = vst [vmem:[#allocation2 + $0x48] sm:$0xff] %v140
  %166 = vst [vmem:[#allocation2 + $0x50] sm:$0xff] %v142
  %167 = vst [vmem:[#allocation2 + $0x58] sm:$0xff] %v144
  %168 = vst [vmem:[#allocation2 + $0x60] sm:$0xff] %v148
  %169 = vst [vmem:[#allocation2 + $0x68] sm:$0xff] %v150
  %170 = vst [vmem:[#allocation2 + $0x70] sm:$0xff] %v152
  %171 = vst [vmem:[#allocation2 + $0x78] sm:$0xff] %v154
  %v172 = vld [vmem:[%s2] sm:$0xf]
  %v173 = vld [vmem:[%s2 + $0x4] sm:$0xf]
  %v174 = vld [vmem:[%s2 + $0x8] sm:$0xf]
  %v175 = vld [vmem:[%s2 + $0xc] sm:$0xf]
  %s176 = scalar_lea.vmem %s2, 16
  %v177 = vld [vmem:[%s176] sm:$0xf]
  %v178 = vld [vmem:[%s176 + $0x4] sm:$0xf]
  %v179 = vld [vmem:[%s176 + $0x8] sm:$0xf]
  %v180 = vld [vmem:[%s176 + $0xc] sm:$0xf]
  %s181 = smul.u32 0, 2
  %s182 = smul.addr %s181, 8
  %s183 = scalar_lea.vmem [#allocation2], %s182
  %v184 = vld [vmem:[%s183] sm:$0xff]
  %s185 = smul.u32 7, 2
  %s186 = smul.addr %s185, 8
  %s187 = scalar_lea.vmem [#allocation2], %s186
  %v188 = vld [vmem:[%s187 + $0x8] sm:$0xff]
  %v193 = vunpack.c.l.b16 %v172
  %v194 = vunpack.c.l.b16 %v173
  %v195 = vunpack.c.l.b16 %v174
  %v196 = vunpack.c.l.b16 %v175
  %v197 = vpack.c.b16 %v194, %v193
  %v198 = vpack.c.b16 %v196, %v195
  %vm201 = vcmask 261120
  %v203 = vsel %vm201, 0, 0
  %205 = vmatprep.subr.bf16.mxu0 0
  %206 = vmatpush1.bf16.msra.mxu0 0
  %207 = vmatprep.subr.bf16.mxu0 0
  %208 = vmatpush1.bf16.msra.mxu0 0
  %209 = vmatprep.subr.bf16.mxu0 0
  %210 = vmatpush1.bf16.msra.mxu0 0
  %211 = vmatprep.subr.bf16.mxu0 0
  %212 = vmatpush1.bf16.msra.mxu0 0
  %213 = vmatprep.subr.bf16.mxu0 0
  %214 = vmatpush1.bf16.msra.mxu0 0
  %215 = vmatprep.subr.bf16.mxu0 0
  %216 = vmatpush1.bf16.msra.mxu0 0
  %217 = vmatprep.subr.bf16.mxu0 0
  %218 = vmatpush1.bf16.msra.mxu0 %v198
  %219 = vmatprep.subr.bf16.mxu0 0
  %220 = vmatpush1.bf16.msra.mxu0 %v197
  %221 = vmatprep.subr.bf16.mxu0 0
  %222 = vmatpush2.bf16.msra.mxu0 0
  %223 = vmatprep.subr.bf16.mxu0 0
  %224 = vmatpush2.bf16.msra.mxu0 0
  %225 = vmatprep.subr.bf16.mxu0 0
  %226 = vmatpush2.bf16.msra.mxu0 0
  %227 = vmatprep.subr.bf16.mxu0 0
  %228 = vmatpush2.bf16.msra.mxu0 0
  %229 = vmatprep.subr.bf16.mxu0 0
  %230 = vmatpush2.bf16.msra.mxu0 0
  %231 = vmatprep.subr.bf16.mxu0 0
  %232 = vmatpush2.bf16.msra.mxu0 0
  %233 = vmatprep.subr.bf16.mxu0 0
  %234 = vmatpush2.bf16.msra.mxu0 0
  %235 = vmatprep.subr.bf16.mxu0 0
  %236 = vmatpush2.bf16.msra.mxu0 0
  %237 = vmatprep.mubr.bf16.mxu0 0
  %238 = vmatmul.mubr.bf16.gmra.mxu0 %v203
  %v239 = vpop.f32.mrf.mxu0
  %v240 = vadd.f32 0.0, %v239
  %v241 = vpop.f32.mrf.mxu0
  %v242 = vpop.f32.mrf.mxu0
  %v243 = vpop.f32.mrf.mxu0
  %244 = vdwg.mxu0
  %v245 = vadd.f32 %v184, %v240
  %v246 = vxor.u32 %v245, 2147483648
  %v247 = vmul.f32 %v246, 1.442695
  %v248 = vpow.pop %v247
  %v249 = vadd.f32 %v248, 1.0
  %v250 = vrcp.pop %v249
  %v251 = vmul.f32 1.0, %v250
  %v252 = vtanh.pop %v245
  %v253 = vmul.f32 %v251, 0.0
  %255 = vrot.lane.b32.xlu0 %v252, 32
  %v256 = vpop.permute.xlu0 %255
  %v258 = vmul.f32 %v251, %v256
  %260 = vrot.lane.b32.xlu0 %v258, 32
  %v261 = vpop.permute.xlu0 %260
  %v263 = vadd.f32 %v253, %v261
  %v264 = vtanh.pop %v263
  %266 = vrot.lane.b32.xlu0 %v264, 32
  %v267 = vpop.permute.xlu0 %266
  %v269 = vmul.f32 %v251, %v267
  %v274 = vunpack.c.l.b16 %v177
  %v275 = vunpack.c.l.b16 %v178
  %v276 = vunpack.c.l.b16 %v179
  %v277 = vunpack.c.l.b16 %v180
  %v278 = vpack.c.b16 %v275, %v274
  %v279 = vpack.c.b16 %v277, %v276
  %282 = vmatprep.subr.bf16.mxu0 0
  %283 = vmatpush1.bf16.msra.mxu0 0
  %284 = vmatprep.subr.bf16.mxu0 0
  %285 = vmatpush1.bf16.msra.mxu0 0
  %286 = vmatprep.subr.bf16.mxu0 0
  %287 = vmatpush1.bf16.msra.mxu0 0
  %288 = vmatprep.subr.bf16.mxu0 0
  %289 = vmatpush1.bf16.msra.mxu0 0
  %290 = vmatprep.subr.bf16.mxu0 0
  %291 = vmatpush1.bf16.msra.mxu0 0
  %292 = vmatprep.subr.bf16.mxu0 0
  %293 = vmatpush1.bf16.msra.mxu0 0
  %294 = vmatprep.subr.bf16.mxu0 0
  %295 = vmatpush1.bf16.msra.mxu0 %v279
  %296 = vmatprep.subr.bf16.mxu0 0
  %297 = vmatpush1.bf16.msra.mxu0 %v278
  %298 = vmatprep.subr.bf16.mxu0 0
  %299 = vmatpush2.bf16.msra.mxu0 0
  %300 = vmatprep.subr.bf16.mxu0 0
  %301 = vmatpush2.bf16.msra.mxu0 0
  %302 = vmatprep.subr.bf16.mxu0 0
  %303 = vmatpush2.bf16.msra.mxu0 0
  %304 = vmatprep.subr.bf16.mxu0 0
  %305 = vmatpush2.bf16.msra.mxu0 0
  %306 = vmatprep.subr.bf16.mxu0 0
  %307 = vmatpush2.bf16.msra.mxu0 0
  %308 = vmatprep.subr.bf16.mxu0 0
  %309 = vmatpush2.bf16.msra.mxu0 0
  %310 = vmatprep.subr.bf16.mxu0 0
  %311 = vmatpush2.bf16.msra.mxu0 0
  %312 = vmatprep.subr.bf16.mxu0 0
  %313 = vmatpush2.bf16.msra.mxu0 0
  %314 = vmatprep.mubr.bf16.mxu0 0
  %315 = vmatmul.mubr.bf16.gmra.mxu0 %v203
  %v316 = vpop.f32.mrf.mxu0
  %v317 = vadd.f32 0.0, %v316
  %v318 = vpop.f32.mrf.mxu0
  %v319 = vpop.f32.mrf.mxu0
  %v320 = vpop.f32.mrf.mxu0
  %321 = vdwg.mxu0
  %v322 = vadd.f32 %v188, %v317
  %v323 = vxor.u32 %v322, 2147483648
  %v324 = vmul.f32 %v323, 1.442695
  %v325 = vpow.pop %v324
  %v326 = vadd.f32 %v325, 1.0
  %v327 = vrcp.pop %v326
  %v328 = vmul.f32 1.0, %v327
  %v329 = vtanh.pop %v322
  %v330 = vmul.f32 %v328, 0.0
  %332 = vrot.lane.b32.xlu0 %v329, 32
  %v333 = vpop.permute.xlu0 %332
  %v335 = vmul.f32 %v328, %v333
  %337 = vrot.lane.b32.xlu0 %v335, 32
  %v338 = vpop.permute.xlu0 %337
  %v340 = vadd.f32 %v330, %v338
  %v341 = vtanh.pop %v340
  %343 = vrot.lane.b32.xlu0 %v341, 32
  %v344 = vpop.permute.xlu0 %343
  %v346 = vmul.f32 %v328, %v344
  %v347 = vpack.c.bf16 %v269, %v269
  %v349 = vunpack.c.l.b16 %v347
  %v350 = vpack.c.b16 %v349, %v349
  %351 = vrot.lane.b32.xlu0 %v350, 64
  %v352 = vpop.permute.xlu0 %351
  %vm354 = vcmask 257024
  %355 = vst.msk [vmem:[%s4] sm:$0xf] %vm354, %v352
  %v356 = vpack.c.bf16 %v346, %v346
  %v358 = vunpack.c.l.b16 %v356
  %v359 = vpack.c.b16 %v358, %v358
  %360 = vrot.lane.b32.xlu0 %v359, 96
  %v361 = vpop.permute.xlu0 %360
  %s363 = scalar_lea.vmem %s4, 28
  %vm364 = vcmask 519424
  %365 = vst.msk [vmem:[%s363] sm:$0xf] %vm364, %v361
  %s366 = smul.u32 1, 2
  %s367 = smul.addr %s366, 8
  %s368 = scalar_lea.vmem [#allocation2], %s367
  %v369 = vld [vmem:[%s368] sm:$0xff]
  %s370 = smul.u32 6, 2
  %s371 = smul.addr %s370, 8
  %s372 = scalar_lea.vmem [#allocation2], %s371
  %v373 = vld [vmem:[%s372 + $0x8] sm:$0xff]
  %374 = vrot.lane.b32.xlu0 %v347, 64
  %v375 = vpop.permute.xlu0 %374
  %v377 = vsel %vm201, %v375, 0
  %379 = vmatprep.subr.bf16.mxu0 0
  %380 = vmatpush1.bf16.msra.mxu0 0
  %381 = vmatprep.subr.bf16.mxu0 0
  %382 = vmatpush1.bf16.msra.mxu0 0
  %383 = vmatprep.subr.bf16.mxu0 0
  %384 = vmatpush1.bf16.msra.mxu0 0
  %385 = vmatprep.subr.bf16.mxu0 0
  %386 = vmatpush1.bf16.msra.mxu0 0
  %387 = vmatprep.subr.bf16.mxu0 0
  %388 = vmatpush1.bf16.msra.mxu0 0
  %389 = vmatprep.subr.bf16.mxu0 0
  %390 = vmatpush1.bf16.msra.mxu0 0
  %391 = vmatprep.subr.bf16.mxu0 0
  %392 = vmatpush1.bf16.msra.mxu0 %v198
  %393 = vmatprep.subr.bf16.mxu0 0
  %394 = vmatpush1.bf16.msra.mxu0 %v197
  %395 = vmatprep.subr.bf16.mxu0 0
  %396 = vmatpush2.bf16.msra.mxu0 0
  %397 = vmatprep.subr.bf16.mxu0 0
  %398 = vmatpush2.bf16.msra.mxu0 0
  %399 = vmatprep.subr.bf16.mxu0 0
  %400 = vmatpush2.bf16.msra.mxu0 0
  %401 = vmatprep.subr.bf16.mxu0 0
  %402 = vmatpush2.bf16.msra.mxu0 0
  %403 = vmatprep.subr.bf16.mxu0 0
  %404 = vmatpush2.bf16.msra.mxu0 0
  %405 = vmatprep.subr.bf16.mxu0 0
  %406 = vmatpush2.bf16.msra.mxu0 0
  %407 = vmatprep.subr.bf16.mxu0 0
  %408 = vmatpush2.bf16.msra.mxu0 0
  %409 = vmatprep.subr.bf16.mxu0 0
  %410 = vmatpush2.bf16.msra.mxu0 0
  %411 = vmatprep.mubr.bf16.mxu0 0
  %412 = vmatmul.mubr.bf16.gmra.mxu0 %v377
  %v413 = vpop.f32.mrf.mxu0
  %v414 = vadd.f32 0.0, %v413
  %v415 = vpop.f32.mrf.mxu0
  %v416 = vpop.f32.mrf.mxu0
  %v417 = vpop.f32.mrf.mxu0
  %418 = vdwg.mxu0
  %v419 = vadd.f32 %v369, %v414
  %v420 = vxor.u32 %v419, 2147483648
  %v421 = vmul.f32 %v420, 1.442695
  %v422 = vpow.pop %v421
  %v423 = vadd.f32 %v422, 1.0
  %v424 = vrcp.pop %v423
  %v425 = vmul.f32 1.0, %v424
  %v426 = vtanh.pop %v419
  %v427 = vmul.f32 %v425, %v263
  %429 = vrot.lane.b32.xlu0 %v426, 32
  %v430 = vpop.permute.xlu0 %429
  %v432 = vmul.f32 %v425, %v430
  %434 = vrot.lane.b32.xlu0 %v432, 32
  %v435 = vpop.permute.xlu0 %434
  %v437 = vadd.f32 %v427, %v435
  %v438 = vtanh.pop %v437
  %440 = vrot.lane.b32.xlu0 %v438, 32
  %v441 = vpop.permute.xlu0 %440
  %v443 = vmul.f32 %v425, %v441
  %444 = vrot.lane.b32.xlu0 %v356, 64
  %v445 = vpop.permute.xlu0 %444
  %v447 = vsel %vm201, %v445, 0
  %449 = vmatprep.subr.bf16.mxu0 0
  %450 = vmatpush1.bf16.msra.mxu0 0
  %451 = vmatprep.subr.bf16.mxu0 0
  %452 = vmatpush1.bf16.msra.mxu0 0
  %453 = vmatprep.subr.bf16.mxu0 0
  %454 = vmatpush1.bf16.msra.mxu0 0
  %455 = vmatprep.subr.bf16.mxu0 0
  %456 = vmatpush1.bf16.msra.mxu0 0
  %457 = vmatprep.subr.bf16.mxu0 0
  %458 = vmatpush1.bf16.msra.mxu0 0
  %459 = vmatprep.subr.bf16.mxu0 0
  %460 = vmatpush1.bf16.msra.mxu0 0
  %461 = vmatprep.subr.bf16.mxu0 0
  %462 = vmatpush1.bf16.msra.mxu0 %v279
  %463 = vmatprep.subr.bf16.mxu0 0
  %464 = vmatpush1.bf16.msra.mxu0 %v278
  %465 = vmatprep.subr.bf16.mxu0 0
  %466 = vmatpush2.bf16.msra.mxu0 0
  %467 = vmatprep.subr.bf16.mxu0 0
  %468 = vmatpush2.bf16.msra.mxu0 0
  %469 = vmatprep.subr.bf16.mxu0 0
  %470 = vmatpush2.bf16.msra.mxu0 0
  %471 = vmatprep.subr.bf16.mxu0 0
  %472 = vmatpush2.bf16.msra.mxu0 0
  %473 = vmatprep.subr.bf16.mxu0 0
  %474 = vmatpush2.bf16.msra.mxu0 0
  %475 = vmatprep.subr.bf16.mxu0 0
  %476 = vmatpush2.bf16.msra.mxu0 0
  %477 = vmatprep.subr.bf16.mxu0 0
  %478 = vmatpush2.bf16.msra.mxu0 0
  %479 = vmatprep.subr.bf16.mxu0 0
  %480 = vmatpush2.bf16.msra.mxu0 0
  %481 = vmatprep.mubr.bf16.mxu0 0
  %482 = vmatmul.mubr.bf16.gmra.mxu0 %v447
  %v483 = vpop.f32.mrf.mxu0
  %v484 = vadd.f32 0.0, %v483
  %v485 = vpop.f32.mrf.mxu0
  %v486 = vpop.f32.mrf.mxu0
  %v487 = vpop.f32.mrf.mxu0
  %488 = vdwg.mxu0
  %v489 = vadd.f32 %v373, %v484
  %v490 = vxor.u32 %v489, 2147483648
  %v491 = vmul.f32 %v490, 1.442695
  %v492 = vpow.pop %v491
  %v493 = vadd.f32 %v492, 1.0
  %v494 = vrcp.pop %v493
  %v495 = vmul.f32 1.0, %v494
  %v496 = vtanh.pop %v489
  %v497 = vmul.f32 %v495, %v340
  %499 = vrot.lane.b32.xlu0 %v496, 32
  %v500 = vpop.permute.xlu0 %499
  %v502 = vmul.f32 %v495, %v500
  %504 = vrot.lane.b32.xlu0 %v502, 32
  %v505 = vpop.permute.xlu0 %504
  %v507 = vadd.f32 %v497, %v505
  %v508 = vtanh.pop %v507
  %510 = vrot.lane.b32.xlu0 %v508, 32
  %v511 = vpop.permute.xlu0 %510
  %v513 = vmul.f32 %v495, %v511
  %v514 = vpack.c.bf16 %v443, %v443
  %v516 = vunpack.c.l.b16 %v514
  %v517 = vpack.c.b16 %v516, %v516
  %518 = vrot.lane.b32.xlu0 %v517, 64
  %v519 = vpop.permute.xlu0 %518
  %s521 = scalar_lea.vmem %s4, 4
  %522 = vst.msk [vmem:[%s521] sm:$0xf] %vm354, %v519
  %v523 = vpack.c.bf16 %v513, %v513
  %v525 = vunpack.c.l.b16 %v523
  %v526 = vpack.c.b16 %v525, %v525
  %527 = vrot.lane.b32.xlu0 %v526, 96
  %v528 = vpop.permute.xlu0 %527
  %s530 = scalar_lea.vmem %s4, 24
  %531 = vst.msk [vmem:[%s530] sm:$0xf] %vm364, %v528
  %s532 = smul.u32 2, 2
  %s533 = smul.addr %s532, 8
  %s534 = scalar_lea.vmem [#allocation2], %s533
  %v535 = vld [vmem:[%s534] sm:$0xff]
  %s536 = smul.u32 5, 2
  %s537 = smul.addr %s536, 8
  %s538 = scalar_lea.vmem [#allocation2], %s537
  %v539 = vld [vmem:[%s538 + $0x8] sm:$0xff]
  %540 = vrot.lane.b32.xlu0 %v514, 64
  %v541 = vpop.permute.xlu0 %540
  %v543 = vsel %vm201, %v541, 0
  %545 = vmatprep.subr.bf16.mxu0 0
  %546 = vmatpush1.bf16.msra.mxu0 0
  %547 = vmatprep.subr.bf16.mxu0 0
  %548 = vmatpush1.bf16.msra.mxu0 0
  %549 = vmatprep.subr.bf16.mxu0 0
  %550 = vmatpush1.bf16.msra.mxu0 0
  %551 = vmatprep.subr.bf16.mxu0 0
  %552 = vmatpush1.bf16.msra.mxu0 0
  %553 = vmatprep.subr.bf16.mxu0 0
  %554 = vmatpush1.bf16.msra.mxu0 0
  %555 = vmatprep.subr.bf16.mxu0 0
  %556 = vmatpush1.bf16.msra.mxu0 0
  %557 = vmatprep.subr.bf16.mxu0 0
  %558 = vmatpush1.bf16.msra.mxu0 %v198
  %559 = vmatprep.subr.bf16.mxu0 0
  %560 = vmatpush1.bf16.msra.mxu0 %v197
  %561 = vmatprep.subr.bf16.mxu0 0
  %562 = vmatpush2.bf16.msra.mxu0 0
  %563 = vmatprep.subr.bf16.mxu0 0
  %564 = vmatpush2.bf16.msra.mxu0 0
  %565 = vmatprep.subr.bf16.mxu0 0
  %566 = vmatpush2.bf16.msra.mxu0 0
  %567 = vmatprep.subr.bf16.mxu0 0
  %568 = vmatpush2.bf16.msra.mxu0 0
  %569 = vmatprep.subr.bf16.mxu0 0
  %570 = vmatpush2.bf16.msra.mxu0 0
  %571 = vmatprep.subr.bf16.mxu0 0
  %572 = vmatpush2.bf16.msra.mxu0 0
  %573 = vmatprep.subr.bf16.mxu0 0
  %574 = vmatpush2.bf16.msra.mxu0 0
  %575 = vmatprep.subr.bf16.mxu0 0
  %576 = vmatpush2.bf16.msra.mxu0 0
  %577 = vmatprep.mubr.bf16.mxu0 0
  %578 = vmatmul.mubr.bf16.gmra.mxu0 %v543
  %v579 = vpop.f32.mrf.mxu0
  %v580 = vadd.f32 0.0, %v579
  %v581 = vpop.f32.mrf.mxu0
  %v582 = vpop.f32.mrf.mxu0
  %v583 = vpop.f32.mrf.mxu0
  %584 = vdwg.mxu0
  %v585 = vadd.f32 %v535, %v580
  %v586 = vxor.u32 %v585, 2147483648
  %v587 = vmul.f32 %v586, 1.442695
  %v588 = vpow.pop %v587
  %v589 = vadd.f32 %v588, 1.0
  %v590 = vrcp.pop %v589
  %v591 = vmul.f32 1.0, %v590
  %v592 = vtanh.pop %v585
  %v593 = vmul.f32 %v591, %v437
  %595 = vrot.lane.b32.xlu0 %v592, 32
  %v596 = vpop.permute.xlu0 %595
  %v598 = vmul.f32 %v591, %v596
  %600 = vrot.lane.b32.xlu0 %v598, 32
  %v601 = vpop.permute.xlu0 %600
  %v603 = vadd.f32 %v593, %v601
  %v604 = vtanh.pop %v603
  %606 = vrot.lane.b32.xlu0 %v604, 32
  %v607 = vpop.permute.xlu0 %606
  %v609 = vmul.f32 %v591, %v607
  %610 = vrot.lane.b32.xlu0 %v523, 64
  %v611 = vpop.permute.xlu0 %610
  %v613 = vsel %vm201, %v611, 0
  %615 = vmatprep.subr.bf16.mxu0 0
  %616 = vmatpush1.bf16.msra.mxu0 0
  %617 = vmatprep.subr.bf16.mxu0 0
  %618 = vmatpush1.bf16.msra.mxu0 0
  %619 = vmatprep.subr.bf16.mxu0 0
  %620 = vmatpush1.bf16.msra.mxu0 0
  %621 = vmatprep.subr.bf16.mxu0 0
  %622 = vmatpush1.bf16.msra.mxu0 0
  %623 = vmatprep.subr.bf16.mxu0 0
  %624 = vmatpush1.bf16.msra.mxu0 0
  %625 = vmatprep.subr.bf16.mxu0 0
  %626 = vmatpush1.bf16.msra.mxu0 0
  %627 = vmatprep.subr.bf16.mxu0 0
  %628 = vmatpush1.bf16.msra.mxu0 %v279
  %629 = vmatprep.subr.bf16.mxu0 0
  %630 = vmatpush1.bf16.msra.mxu0 %v278
  %631 = vmatprep.subr.bf16.mxu0 0
  %632 = vmatpush2.bf16.msra.mxu0 0
  %633 = vmatprep.subr.bf16.mxu0 0
  %634 = vmatpush2.bf16.msra.mxu0 0
  %635 = vmatprep.subr.bf16.mxu0 0
  %636 = vmatpush2.bf16.msra.mxu0 0
  %637 = vmatprep.subr.bf16.mxu0 0
  %638 = vmatpush2.bf16.msra.mxu0 0
  %639 = vmatprep.subr.bf16.mxu0 0
  %640 = vmatpush2.bf16.msra.mxu0 0
  %641 = vmatprep.subr.bf16.mxu0 0
  %642 = vmatpush2.bf16.msra.mxu0 0
  %643 = vmatprep.subr.bf16.mxu0 0
  %644 = vmatpush2.bf16.msra.mxu0 0
  %645 = vmatprep.subr.bf16.mxu0 0
  %646 = vmatpush2.bf16.msra.mxu0 0
  %647 = vmatprep.mubr.bf16.mxu0 0
  %648 = vmatmul.mubr.bf16.gmra.mxu0 %v613
  %v649 = vpop.f32.mrf.mxu0
  %v650 = vadd.f32 0.0, %v649
  %v651 = vpop.f32.mrf.mxu0
  %v652 = vpop.f32.mrf.mxu0
  %v653 = vpop.f32.mrf.mxu0
  %654 = vdwg.mxu0
  %v655 = vadd.f32 %v539, %v650
  %v656 = vxor.u32 %v655, 2147483648
  %v657 = vmul.f32 %v656, 1.442695
  %v658 = vpow.pop %v657
  %v659 = vadd.f32 %v658, 1.0
  %v660 = vrcp.pop %v659
  %v661 = vmul.f32 1.0, %v660
  %v662 = vtanh.pop %v655
  %v663 = vmul.f32 %v661, %v507
  %665 = vrot.lane.b32.xlu0 %v662, 32
  %v666 = vpop.permute.xlu0 %665
  %v668 = vmul.f32 %v661, %v666
  %670 = vrot.lane.b32.xlu0 %v668, 32
  %v671 = vpop.permute.xlu0 %670
  %v673 = vadd.f32 %v663, %v671
  %v674 = vtanh.pop %v673
  %676 = vrot.lane.b32.xlu0 %v674, 32
  %v677 = vpop.permute.xlu0 %676
  %v679 = vmul.f32 %v661, %v677
  %v680 = vpack.c.bf16 %v609, %v609
  %v682 = vunpack.c.l.b16 %v680
  %v683 = vpack.c.b16 %v682, %v682
  %684 = vrot.lane.b32.xlu0 %v683, 64
  %v685 = vpop.permute.xlu0 %684
  %s687 = scalar_lea.vmem %s4, 8
  %688 = vst.msk [vmem:[%s687] sm:$0xf] %vm354, %v685
  %v689 = vpack.c.bf16 %v679, %v679
  %v691 = vunpack.c.l.b16 %v689
  %v692 = vpack.c.b16 %v691, %v691
  %693 = vrot.lane.b32.xlu0 %v692, 96
  %v694 = vpop.permute.xlu0 %693
  %s696 = scalar_lea.vmem %s4, 20
  %697 = vst.msk [vmem:[%s696] sm:$0xf] %vm364, %v694
  %s698 = smul.u32 3, 2
  %s699 = smul.addr %s698, 8
  %s700 = scalar_lea.vmem [#allocation2], %s699
  %v701 = vld [vmem:[%s700] sm:$0xff]
  %s702 = smul.u32 4, 2
  %s703 = smul.addr %s702, 8
  %s704 = scalar_lea.vmem [#allocation2], %s703
  %v705 = vld [vmem:[%s704 + $0x8] sm:$0xff]
  %706 = vrot.lane.b32.xlu0 %v680, 64
  %v707 = vpop.permute.xlu0 %706
  %v709 = vsel %vm201, %v707, 0
  %711 = vmatprep.subr.bf16.mxu0 0
  %712 = vmatpush1.bf16.msra.mxu0 0
  %713 = vmatprep.subr.bf16.mxu0 0
  %714 = vmatpush1.bf16.msra.mxu0 0
  %715 = vmatprep.subr.bf16.mxu0 0
  %716 = vmatpush1.bf16.msra.mxu0 0
  %717 = vmatprep.subr.bf16.mxu0 0
  %718 = vmatpush1.bf16.msra.mxu0 0
  %719 = vmatprep.subr.bf16.mxu0 0
  %720 = vmatpush1.bf16.msra.mxu0 0
  %721 = vmatprep.subr.bf16.mxu0 0
  %722 = vmatpush1.bf16.msra.mxu0 0
  %723 = vmatprep.subr.bf16.mxu0 0
  %724 = vmatpush1.bf16.msra.mxu0 %v198
  %725 = vmatprep.subr.bf16.mxu0 0
  %726 = vmatpush1.bf16.msra.mxu0 %v197
  %727 = vmatprep.subr.bf16.mxu0 0
  %728 = vmatpush2.bf16.msra.mxu0 0
  %729 = vmatprep.subr.bf16.mxu0 0
  %730 = vmatpush2.bf16.msra.mxu0 0
  %731 = vmatprep.subr.bf16.mxu0 0
  %732 = vmatpush2.bf16.msra.mxu0 0
  %733 = vmatprep.subr.bf16.mxu0 0
  %734 = vmatpush2.bf16.msra.mxu0 0
  %735 = vmatprep.subr.bf16.mxu0 0
  %736 = vmatpush2.bf16.msra.mxu0 0
  %737 = vmatprep.subr.bf16.mxu0 0
  %738 = vmatpush2.bf16.msra.mxu0 0
  %739 = vmatprep.subr.bf16.mxu0 0
  %740 = vmatpush2.bf16.msra.mxu0 0
  %741 = vmatprep.subr.bf16.mxu0 0
  %742 = vmatpush2.bf16.msra.mxu0 0
  %743 = vmatprep.mubr.bf16.mxu0 0
  %744 = vmatmul.mubr.bf16.gmra.mxu0 %v709
  %v745 = vpop.f32.mrf.mxu0
  %v746 = vadd.f32 0.0, %v745
  %v747 = vpop.f32.mrf.mxu0
  %v748 = vpop.f32.mrf.mxu0
  %v749 = vpop.f32.mrf.mxu0
  %750 = vdwg.mxu0
  %v751 = vadd.f32 %v701, %v746
  %v752 = vxor.u32 %v751, 2147483648
  %v753 = vmul.f32 %v752, 1.442695
  %v754 = vpow.pop %v753
  %v755 = vadd.f32 %v754, 1.0
  %v756 = vrcp.pop %v755
  %v757 = vmul.f32 1.0, %v756
  %v758 = vtanh.pop %v751
  %v759 = vmul.f32 %v757, %v603
  %761 = vrot.lane.b32.xlu0 %v758, 32
  %v762 = vpop.permute.xlu0 %761
  %v764 = vmul.f32 %v757, %v762
  %766 = vrot.lane.b32.xlu0 %v764, 32
  %v767 = vpop.permute.xlu0 %766
  %v769 = vadd.f32 %v759, %v767
  %v770 = vtanh.pop %v769
  %772 = vrot.lane.b32.xlu0 %v770, 32
  %v773 = vpop.permute.xlu0 %772
  %v775 = vmul.f32 %v757, %v773
  %776 = vrot.lane.b32.xlu0 %v689, 64
  %v777 = vpop.permute.xlu0 %776
  %v779 = vsel %vm201, %v777, 0
  %781 = vmatprep.subr.bf16.mxu0 0
  %782 = vmatpush1.bf16.msra.mxu0 0
  %783 = vmatprep.subr.bf16.mxu0 0
  %784 = vmatpush1.bf16.msra.mxu0 0
  %785 = vmatprep.subr.bf16.mxu0 0
  %786 = vmatpush1.bf16.msra.mxu0 0
  %787 = vmatprep.subr.bf16.mxu0 0
  %788 = vmatpush1.bf16.msra.mxu0 0
  %789 = vmatprep.subr.bf16.mxu0 0
  %790 = vmatpush1.bf16.msra.mxu0 0
  %791 = vmatprep.subr.bf16.mxu0 0
  %792 = vmatpush1.bf16.msra.mxu0 0
  %793 = vmatprep.subr.bf16.mxu0 0
  %794 = vmatpush1.bf16.msra.mxu0 %v279
  %795 = vmatprep.subr.bf16.mxu0 0
  %796 = vmatpush1.bf16.msra.mxu0 %v278
  %797 = vmatprep.subr.bf16.mxu0 0
  %798 = vmatpush2.bf16.msra.mxu0 0
  %799 = vmatprep.subr.bf16.mxu0 0
  %800 = vmatpush2.bf16.msra.mxu0 0
  %801 = vmatprep.subr.bf16.mxu0 0
  %802 = vmatpush2.bf16.msra.mxu0 0
  %803 = vmatprep.subr.bf16.mxu0 0
  %804 = vmatpush2.bf16.msra.mxu0 0
  %805 = vmatprep.subr.bf16.mxu0 0
  %806 = vmatpush2.bf16.msra.mxu0 0
  %807 = vmatprep.subr.bf16.mxu0 0
  %808 = vmatpush2.bf16.msra.mxu0 0
  %809 = vmatprep.subr.bf16.mxu0 0
  %810 = vmatpush2.bf16.msra.mxu0 0
  %811 = vmatprep.subr.bf16.mxu0 0
  %812 = vmatpush2.bf16.msra.mxu0 0
  %813 = vmatprep.mubr.bf16.mxu0 0
  %814 = vmatmul.mubr.bf16.gmra.mxu0 %v779
  %v815 = vpop.f32.mrf.mxu0
  %v816 = vadd.f32 0.0, %v815
  %v817 = vpop.f32.mrf.mxu0
  %v818 = vpop.f32.mrf.mxu0
  %v819 = vpop.f32.mrf.mxu0
  %820 = vdwg.mxu0
  %v821 = vadd.f32 %v705, %v816
  %v822 = vxor.u32 %v821, 2147483648
  %v823 = vmul.f32 %v822, 1.442695
  %v824 = vpow.pop %v823
  %v825 = vadd.f32 %v824, 1.0
  %v826 = vrcp.pop %v825
  %v827 = vmul.f32 1.0, %v826
  %v828 = vtanh.pop %v821
  %v829 = vmul.f32 %v827, %v673
  %831 = vrot.lane.b32.xlu0 %v828, 32
  %v832 = vpop.permute.xlu0 %831
  %v834 = vmul.f32 %v827, %v832
  %836 = vrot.lane.b32.xlu0 %v834, 32
  %v837 = vpop.permute.xlu0 %836
  %v839 = vadd.f32 %v829, %v837
  %v840 = vtanh.pop %v839
  %842 = vrot.lane.b32.xlu0 %v840, 32
  %v843 = vpop.permute.xlu0 %842
  %v845 = vmul.f32 %v827, %v843
  %v846 = vpack.c.bf16 %v775, %v775
  %v848 = vunpack.c.l.b16 %v846
  %v849 = vpack.c.b16 %v848, %v848
  %850 = vrot.lane.b32.xlu0 %v849, 64
  %v851 = vpop.permute.xlu0 %850
  %s853 = scalar_lea.vmem %s4, 12
  %854 = vst.msk [vmem:[%s853] sm:$0xf] %vm354, %v851
  %v855 = vpack.c.bf16 %v845, %v845
  %v857 = vunpack.c.l.b16 %v855
  %v858 = vpack.c.b16 %v857, %v857
  %859 = vrot.lane.b32.xlu0 %v858, 96
  %v860 = vpop.permute.xlu0 %859
  %s862 = scalar_lea.vmem %s4, 16
  %863 = vst.msk [vmem:[%s862] sm:$0xf] %vm364, %v860
  %v864 = vld [vmem:[%s704] sm:$0xff]
  %v865 = vld [vmem:[%s700 + $0x8] sm:$0xff]
  %866 = vrot.lane.b32.xlu0 %v846, 64
  %v867 = vpop.permute.xlu0 %866
  %v869 = vsel %vm201, %v867, 0
  %871 = vmatprep.subr.bf16.mxu0 0
  %872 = vmatpush1.bf16.msra.mxu0 0
  %873 = vmatprep.subr.bf16.mxu0 0
  %874 = vmatpush1.bf16.msra.mxu0 0
  %875 = vmatprep.subr.bf16.mxu0 0
  %876 = vmatpush1.bf16.msra.mxu0 0
  %877 = vmatprep.subr.bf16.mxu0 0
  %878 = vmatpush1.bf16.msra.mxu0 0
  %879 = vmatprep.subr.bf16.mxu0 0
  %880 = vmatpush1.bf16.msra.mxu0 0
  %881 = vmatprep.subr.bf16.mxu0 0
  %882 = vmatpush1.bf16.msra.mxu0 0
  %883 = vmatprep.subr.bf16.mxu0 0
  %884 = vmatpush1.bf16.msra.mxu0 %v198
  %885 = vmatprep.subr.bf16.mxu0 0
  %886 = vmatpush1.bf16.msra.mxu0 %v197
  %887 = vmatprep.subr.bf16.mxu0 0
  %888 = vmatpush2.bf16.msra.mxu0 0
  %889 = vmatprep.subr.bf16.mxu0 0
  %890 = vmatpush2.bf16.msra.mxu0 0
  %891 = vmatprep.subr.bf16.mxu0 0
  %892 = vmatpush2.bf16.msra.mxu0 0
  %893 = vmatprep.subr.bf16.mxu0 0
  %894 = vmatpush2.bf16.msra.mxu0 0
  %895 = vmatprep.subr.bf16.mxu0 0
  %896 = vmatpush2.bf16.msra.mxu0 0
  %897 = vmatprep.subr.bf16.mxu0 0
  %898 = vmatpush2.bf16.msra.mxu0 0
  %899 = vmatprep.subr.bf16.mxu0 0
  %900 = vmatpush2.bf16.msra.mxu0 0
  %901 = vmatprep.subr.bf16.mxu0 0
  %902 = vmatpush2.bf16.msra.mxu0 0
  %903 = vmatprep.mubr.bf16.mxu0 0
  %904 = vmatmul.mubr.bf16.gmra.mxu0 %v869
  %v905 = vpop.f32.mrf.mxu0
  %v906 = vadd.f32 0.0, %v905
  %v907 = vpop.f32.mrf.mxu0
  %v908 = vpop.f32.mrf.mxu0
  %v909 = vpop.f32.mrf.mxu0
  %910 = vdwg.mxu0
  %v911 = vadd.f32 %v864, %v906
  %v912 = vxor.u32 %v911, 2147483648
  %v913 = vmul.f32 %v912, 1.442695
  %v914 = vpow.pop %v913
  %v915 = vadd.f32 %v914, 1.0
  %v916 = vrcp.pop %v915
  %v917 = vmul.f32 1.0, %v916
  %v918 = vtanh.pop %v911
  %v919 = vmul.f32 %v917, %v769
  %921 = vrot.lane.b32.xlu0 %v918, 32
  %v922 = vpop.permute.xlu0 %921
  %v924 = vmul.f32 %v917, %v922
  %926 = vrot.lane.b32.xlu0 %v924, 32
  %v927 = vpop.permute.xlu0 %926
  %v929 = vadd.f32 %v919, %v927
  %v930 = vtanh.pop %v929
  %932 = vrot.lane.b32.xlu0 %v930, 32
  %v933 = vpop.permute.xlu0 %932
  %v935 = vmul.f32 %v917, %v933
  %936 = vrot.lane.b32.xlu0 %v855, 64
  %v937 = vpop.permute.xlu0 %936
  %v939 = vsel %vm201, %v937, 0
  %941 = vmatprep.subr.bf16.mxu0 0
  %942 = vmatpush1.bf16.msra.mxu0 0
  %943 = vmatprep.subr.bf16.mxu0 0
  %944 = vmatpush1.bf16.msra.mxu0 0
  %945 = vmatprep.subr.bf16.mxu0 0
  %946 = vmatpush1.bf16.msra.mxu0 0
  %947 = vmatprep.subr.bf16.mxu0 0
  %948 = vmatpush1.bf16.msra.mxu0 0
  %949 = vmatprep.subr.bf16.mxu0 0
  %950 = vmatpush1.bf16.msra.mxu0 0
  %951 = vmatprep.subr.bf16.mxu0 0
  %952 = vmatpush1.bf16.msra.mxu0 0
  %953 = vmatprep.subr.bf16.mxu0 0
  %954 = vmatpush1.bf16.msra.mxu0 %v279
  %955 = vmatprep.subr.bf16.mxu0 0
  %956 = vmatpush1.bf16.msra.mxu0 %v278
  %957 = vmatprep.subr.bf16.mxu0 0
  %958 = vmatpush2.bf16.msra.mxu0 0
  %959 = vmatprep.subr.bf16.mxu0 0
  %960 = vmatpush2.bf16.msra.mxu0 0
  %961 = vmatprep.subr.bf16.mxu0 0
  %962 = vmatpush2.bf16.msra.mxu0 0
  %963 = vmatprep.subr.bf16.mxu0 0
  %964 = vmatpush2.bf16.msra.mxu0 0
  %965 = vmatprep.subr.bf16.mxu0 0
  %966 = vmatpush2.bf16.msra.mxu0 0
  %967 = vmatprep.subr.bf16.mxu0 0
  %968 = vmatpush2.bf16.msra.mxu0 0
  %969 = vmatprep.subr.bf16.mxu0 0
  %970 = vmatpush2.bf16.msra.mxu0 0
  %971 = vmatprep.subr.bf16.mxu0 0
  %972 = vmatpush2.bf16.msra.mxu0 0
  %973 = vmatprep.mubr.bf16.mxu0 0
  %974 = vmatmul.mubr.bf16.gmra.mxu0 %v939
  %v975 = vpop.f32.mrf.mxu0
  %v976 = vadd.f32 0.0, %v975
  %v977 = vpop.f32.mrf.mxu0
  %v978 = vpop.f32.mrf.mxu0
  %v979 = vpop.f32.mrf.mxu0
  %980 = vdwg.mxu0
  %v981 = vadd.f32 %v865, %v976
  %v982 = vxor.u32 %v981, 2147483648
  %v983 = vmul.f32 %v982, 1.442695
  %v984 = vpow.pop %v983
  %v985 = vadd.f32 %v984, 1.0
  %v986 = vrcp.pop %v985
  %v987 = vmul.f32 1.0, %v986
  %v988 = vtanh.pop %v981
  %v989 = vmul.f32 %v987, %v839
  %991 = vrot.lane.b32.xlu0 %v988, 32
  %v992 = vpop.permute.xlu0 %991
  %v994 = vmul.f32 %v987, %v992
  %996 = vrot.lane.b32.xlu0 %v994, 32
  %v997 = vpop.permute.xlu0 %996
  %v999 = vadd.f32 %v989, %v997
  %v1000 = vtanh.pop %v999
  %1002 = vrot.lane.b32.xlu0 %v1000, 32
  %v1003 = vpop.permute.xlu0 %1002
  %v1005 = vmul.f32 %v987, %v1003
  %v1006 = vpack.c.bf16 %v935, %v935
  %v1008 = vunpack.c.l.b16 %v1006
  %v1009 = vpack.c.b16 %v1008, %v1008
  %1010 = vrot.lane.b32.xlu0 %v1009, 64
  %v1011 = vpop.permute.xlu0 %1010
  %1013 = vst.msk [vmem:[%s862] sm:$0xf] %vm354, %v1011
  %v1014 = vpack.c.bf16 %v1005, %v1005
  %v1016 = vunpack.c.l.b16 %v1014
  %v1017 = vpack.c.b16 %v1016, %v1016
  %1018 = vrot.lane.b32.xlu0 %v1017, 96
  %v1019 = vpop.permute.xlu0 %1018
  %1021 = vst.msk [vmem:[%s853] sm:$0xf] %vm364, %v1019
  %v1022 = vld [vmem:[%s538] sm:$0xff]
  %v1023 = vld [vmem:[%s534 + $0x8] sm:$0xff]
  %1024 = vrot.lane.b32.xlu0 %v1006, 64
  %v1025 = vpop.permute.xlu0 %1024
  %v1027 = vsel %vm201, %v1025, 0
  %1029 = vmatprep.subr.bf16.mxu0 0
  %1030 = vmatpush1.bf16.msra.mxu0 0
  %1031 = vmatprep.subr.bf16.mxu0 0
  %1032 = vmatpush1.bf16.msra.mxu0 0
  %1033 = vmatprep.subr.bf16.mxu0 0
  %1034 = vmatpush1.bf16.msra.mxu0 0
  %1035 = vmatprep.subr.bf16.mxu0 0
  %1036 = vmatpush1.bf16.msra.mxu0 0
  %1037 = vmatprep.subr.bf16.mxu0 0
  %1038 = vmatpush1.bf16.msra.mxu0 0
  %1039 = vmatprep.subr.bf16.mxu0 0
  %1040 = vmatpush1.bf16.msra.mxu0 0
  %1041 = vmatprep.subr.bf16.mxu0 0
  %1042 = vmatpush1.bf16.msra.mxu0 %v198
  %1043 = vmatprep.subr.bf16.mxu0 0
  %1044 = vmatpush1.bf16.msra.mxu0 %v197
  %1045 = vmatprep.subr.bf16.mxu0 0
  %1046 = vmatpush2.bf16.msra.mxu0 0
  %1047 = vmatprep.subr.bf16.mxu0 0
  %1048 = vmatpush2.bf16.msra.mxu0 0
  %1049 = vmatprep.subr.bf16.mxu0 0
  %1050 = vmatpush2.bf16.msra.mxu0 0
  %1051 = vmatprep.subr.bf16.mxu0 0
  %1052 = vmatpush2.bf16.msra.mxu0 0
  %1053 = vmatprep.subr.bf16.mxu0 0
  %1054 = vmatpush2.bf16.msra.mxu0 0
  %1055 = vmatprep.subr.bf16.mxu0 0
  %1056 = vmatpush2.bf16.msra.mxu0 0
  %1057 = vmatprep.subr.bf16.mxu0 0
  %1058 = vmatpush2.bf16.msra.mxu0 0
  %1059 = vmatprep.subr.bf16.mxu0 0
  %1060 = vmatpush2.bf16.msra.mxu0 0
  %1061 = vmatprep.mubr.bf16.mxu0 0
  %1062 = vmatmul.mubr.bf16.gmra.mxu0 %v1027
  %v1063 = vpop.f32.mrf.mxu0
  %v1064 = vadd.f32 0.0, %v1063
  %v1065 = vpop.f32.mrf.mxu0
  %v1066 = vpop.f32.mrf.mxu0
  %v1067 = vpop.f32.mrf.mxu0
  %1068 = vdwg.mxu0
  %v1069 = vadd.f32 %v1022, %v1064
  %v1070 = vxor.u32 %v1069, 2147483648
  %v1071 = vmul.f32 %v1070, 1.442695
  %v1072 = vpow.pop %v1071
  %v1073 = vadd.f32 %v1072, 1.0
  %v1074 = vrcp.pop %v1073
  %v1075 = vmul.f32 1.0, %v1074
  %v1076 = vtanh.pop %v1069
  %v1077 = vmul.f32 %v1075, %v929
  %1079 = vrot.lane.b32.xlu0 %v1076, 32
  %v1080 = vpop.permute.xlu0 %1079
  %v1082 = vmul.f32 %v1075, %v1080
  %1084 = vrot.lane.b32.xlu0 %v1082, 32
  %v1085 = vpop.permute.xlu0 %1084
  %v1087 = vadd.f32 %v1077, %v1085
  %v1088 = vtanh.pop %v1087
  %1090 = vrot.lane.b32.xlu0 %v1088, 32
  %v1091 = vpop.permute.xlu0 %1090
  %v1093 = vmul.f32 %v1075, %v1091
  %1094 = vrot.lane.b32.xlu0 %v1014, 64
  %v1095 = vpop.permute.xlu0 %1094
  %v1097 = vsel %vm201, %v1095, 0
  %1099 = vmatprep.subr.bf16.mxu0 0
  %1100 = vmatpush1.bf16.msra.mxu0 0
  %1101 = vmatprep.subr.bf16.mxu0 0
  %1102 = vmatpush1.bf16.msra.mxu0 0
  %1103 = vmatprep.subr.bf16.mxu0 0
  %1104 = vmatpush1.bf16.msra.mxu0 0
  %1105 = vmatprep.subr.bf16.mxu0 0
  %1106 = vmatpush1.bf16.msra.mxu0 0
  %1107 = vmatprep.subr.bf16.mxu0 0
  %1108 = vmatpush1.bf16.msra.mxu0 0
  %1109 = vmatprep.subr.bf16.mxu0 0
  %1110 = vmatpush1.bf16.msra.mxu0 0
  %1111 = vmatprep.subr.bf16.mxu0 0
  %1112 = vmatpush1.bf16.msra.mxu0 %v279
  %1113 = vmatprep.subr.bf16.mxu0 0
  %1114 = vmatpush1.bf16.msra.mxu0 %v278
  %1115 = vmatprep.subr.bf16.mxu0 0
  %1116 = vmatpush2.bf16.msra.mxu0 0
  %1117 = vmatprep.subr.bf16.mxu0 0
  %1118 = vmatpush2.bf16.msra.mxu0 0
  %1119 = vmatprep.subr.bf16.mxu0 0
  %1120 = vmatpush2.bf16.msra.mxu0 0
  %1121 = vmatprep.subr.bf16.mxu0 0
  %1122 = vmatpush2.bf16.msra.mxu0 0
  %1123 = vmatprep.subr.bf16.mxu0 0
  %1124 = vmatpush2.bf16.msra.mxu0 0
  %1125 = vmatprep.subr.bf16.mxu0 0
  %1126 = vmatpush2.bf16.msra.mxu0 0
  %1127 = vmatprep.subr.bf16.mxu0 0
  %1128 = vmatpush2.bf16.msra.mxu0 0
  %1129 = vmatprep.subr.bf16.mxu0 0
  %1130 = vmatpush2.bf16.msra.mxu0 0
  %1131 = vmatprep.mubr.bf16.mxu0 0
  %1132 = vmatmul.mubr.bf16.gmra.mxu0 %v1097
  %v1133 = vpop.f32.mrf.mxu0
  %v1134 = vadd.f32 0.0, %v1133
  %v1135 = vpop.f32.mrf.mxu0
  %v1136 = vpop.f32.mrf.mxu0
  %v1137 = vpop.f32.mrf.mxu0
  %1138 = vdwg.mxu0
  %v1139 = vadd.f32 %v1023, %v1134
  %v1140 = vxor.u32 %v1139, 2147483648
  %v1141 = vmul.f32 %v1140, 1.442695
  %v1142 = vpow.pop %v1141
  %v1143 = vadd.f32 %v1142, 1.0
  %v1144 = vrcp.pop %v1143
  %v1145 = vmul.f32 1.0, %v1144
  %v1146 = vtanh.pop %v1139
  %v1147 = vmul.f32 %v1145, %v999
  %1149 = vrot.lane.b32.xlu0 %v1146, 32
  %v1150 = vpop.permute.xlu0 %1149
  %v1152 = vmul.f32 %v1145, %v1150
  %1154 = vrot.lane.b32.xlu0 %v1152, 32
  %v1155 = vpop.permute.xlu0 %1154
  %v1157 = vadd.f32 %v1147, %v1155
  %v1158 = vtanh.pop %v1157
  %1160 = vrot.lane.b32.xlu0 %v1158, 32
  %v1161 = vpop.permute.xlu0 %1160
  %v1163 = vmul.f32 %v1145, %v1161
  %v1164 = vpack.c.bf16 %v1093, %v1093
  %v1166 = vunpack.c.l.b16 %v1164
  %v1167 = vpack.c.b16 %v1166, %v1166
  %1168 = vrot.lane.b32.xlu0 %v1167, 64
  %v1169 = vpop.permute.xlu0 %1168
  %1171 = vst.msk [vmem:[%s696] sm:$0xf] %vm354, %v1169
  %v1172 = vpack.c.bf16 %v1163, %v1163
  %v1174 = vunpack.c.l.b16 %v1172
  %v1175 = vpack.c.b16 %v1174, %v1174
  %1176 = vrot.lane.b32.xlu0 %v1175, 96
  %v1177 = vpop.permute.xlu0 %1176
  %1179 = vst.msk [vmem:[%s687] sm:$0xf] %vm364, %v1177
  %v1180 = vld [vmem:[%s372] sm:$0xff]
  %v1181 = vld [vmem:[%s368 + $0x8] sm:$0xff]
  %1182 = vrot.lane.b32.xlu0 %v1164, 64
  %v1183 = vpop.permute.xlu0 %1182
  %v1185 = vsel %vm201, %v1183, 0
  %1187 = vmatprep.subr.bf16.mxu0 0
  %1188 = vmatpush1.bf16.msra.mxu0 0
  %1189 = vmatprep.subr.bf16.mxu0 0
  %1190 = vmatpush1.bf16.msra.mxu0 0
  %1191 = vmatprep.subr.bf16.mxu0 0
  %1192 = vmatpush1.bf16.msra.mxu0 0
  %1193 = vmatprep.subr.bf16.mxu0 0
  %1194 = vmatpush1.bf16.msra.mxu0 0
  %1195 = vmatprep.subr.bf16.mxu0 0
  %1196 = vmatpush1.bf16.msra.mxu0 0
  %1197 = vmatprep.subr.bf16.mxu0 0
  %1198 = vmatpush1.bf16.msra.mxu0 0
  %1199 = vmatprep.subr.bf16.mxu0 0
  %1200 = vmatpush1.bf16.msra.mxu0 %v198
  %1201 = vmatprep.subr.bf16.mxu0 0
  %1202 = vmatpush1.bf16.msra.mxu0 %v197
  %1203 = vmatprep.subr.bf16.mxu0 0
  %1204 = vmatpush2.bf16.msra.mxu0 0
  %1205 = vmatprep.subr.bf16.mxu0 0
  %1206 = vmatpush2.bf16.msra.mxu0 0
  %1207 = vmatprep.subr.bf16.mxu0 0
  %1208 = vmatpush2.bf16.msra.mxu0 0
  %1209 = vmatprep.subr.bf16.mxu0 0
  %1210 = vmatpush2.bf16.msra.mxu0 0
  %1211 = vmatprep.subr.bf16.mxu0 0
  %1212 = vmatpush2.bf16.msra.mxu0 0
  %1213 = vmatprep.subr.bf16.mxu0 0
  %1214 = vmatpush2.bf16.msra.mxu0 0
  %1215 = vmatprep.subr.bf16.mxu0 0
  %1216 = vmatpush2.bf16.msra.mxu0 0
  %1217 = vmatprep.subr.bf16.mxu0 0
  %1218 = vmatpush2.bf16.msra.mxu0 0
  %1219 = vmatprep.mubr.bf16.mxu0 0
  %1220 = vmatmul.mubr.bf16.gmra.mxu0 %v1185
  %v1221 = vpop.f32.mrf.mxu0
  %v1222 = vadd.f32 0.0, %v1221
  %v1223 = vpop.f32.mrf.mxu0
  %v1224 = vpop.f32.mrf.mxu0
  %v1225 = vpop.f32.mrf.mxu0
  %1226 = vdwg.mxu0
  %v1227 = vadd.f32 %v1180, %v1222
  %v1228 = vxor.u32 %v1227, 2147483648
  %v1229 = vmul.f32 %v1228, 1.442695
  %v1230 = vpow.pop %v1229
  %v1231 = vadd.f32 %v1230, 1.0
  %v1232 = vrcp.pop %v1231
  %v1233 = vmul.f32 1.0, %v1232
  %v1234 = vtanh.pop %v1227
  %v1235 = vmul.f32 %v1233, %v1087
  %1237 = vrot.lane.b32.xlu0 %v1234, 32
  %v1238 = vpop.permute.xlu0 %1237
  %v1240 = vmul.f32 %v1233, %v1238
  %1242 = vrot.lane.b32.xlu0 %v1240, 32
  %v1243 = vpop.permute.xlu0 %1242
  %v1245 = vadd.f32 %v1235, %v1243
  %v1246 = vtanh.pop %v1245
  %1248 = vrot.lane.b32.xlu0 %v1246, 32
  %v1249 = vpop.permute.xlu0 %1248
  %v1251 = vmul.f32 %v1233, %v1249
  %1252 = vrot.lane.b32.xlu0 %v1172, 64
  %v1253 = vpop.permute.xlu0 %1252
  %v1255 = vsel %vm201, %v1253, 0
  %1257 = vmatprep.subr.bf16.mxu0 0
  %1258 = vmatpush1.bf16.msra.mxu0 0
  %1259 = vmatprep.subr.bf16.mxu0 0
  %1260 = vmatpush1.bf16.msra.mxu0 0
  %1261 = vmatprep.subr.bf16.mxu0 0
  %1262 = vmatpush1.bf16.msra.mxu0 0
  %1263 = vmatprep.subr.bf16.mxu0 0
  %1264 = vmatpush1.bf16.msra.mxu0 0
  %1265 = vmatprep.subr.bf16.mxu0 0
  %1266 = vmatpush1.bf16.msra.mxu0 0
  %1267 = vmatprep.subr.bf16.mxu0 0
  %1268 = vmatpush1.bf16.msra.mxu0 0
  %1269 = vmatprep.subr.bf16.mxu0 0
  %1270 = vmatpush1.bf16.msra.mxu0 %v279
  %1271 = vmatprep.subr.bf16.mxu0 0
  %1272 = vmatpush1.bf16.msra.mxu0 %v278
  %1273 = vmatprep.subr.bf16.mxu0 0
  %1274 = vmatpush2.bf16.msra.mxu0 0
  %1275 = vmatprep.subr.bf16.mxu0 0
  %1276 = vmatpush2.bf16.msra.mxu0 0
  %1277 = vmatprep.subr.bf16.mxu0 0
  %1278 = vmatpush2.bf16.msra.mxu0 0
  %1279 = vmatprep.subr.bf16.mxu0 0
  %1280 = vmatpush2.bf16.msra.mxu0 0
  %1281 = vmatprep.subr.bf16.mxu0 0
  %1282 = vmatpush2.bf16.msra.mxu0 0
  %1283 = vmatprep.subr.bf16.mxu0 0
  %1284 = vmatpush2.bf16.msra.mxu0 0
  %1285 = vmatprep.subr.bf16.mxu0 0
  %1286 = vmatpush2.bf16.msra.mxu0 0
  %1287 = vmatprep.subr.bf16.mxu0 0
  %1288 = vmatpush2.bf16.msra.mxu0 0
  %1289 = vmatprep.mubr.bf16.mxu0 0
  %1290 = vmatmul.mubr.bf16.gmra.mxu0 %v1255
  %v1291 = vpop.f32.mrf.mxu0
  %v1292 = vadd.f32 0.0, %v1291
  %v1293 = vpop.f32.mrf.mxu0
  %v1294 = vpop.f32.mrf.mxu0
  %v1295 = vpop.f32.mrf.mxu0
  %1296 = vdwg.mxu0
  %v1297 = vadd.f32 %v1181, %v1292
  %v1298 = vxor.u32 %v1297, 2147483648
  %v1299 = vmul.f32 %v1298, 1.442695
  %v1300 = vpow.pop %v1299
  %v1301 = vadd.f32 %v1300, 1.0
  %v1302 = vrcp.pop %v1301
  %v1303 = vmul.f32 1.0, %v1302
  %v1304 = vtanh.pop %v1297
  %v1305 = vmul.f32 %v1303, %v1157
  %1307 = vrot.lane.b32.xlu0 %v1304, 32
  %v1308 = vpop.permute.xlu0 %1307
  %v1310 = vmul.f32 %v1303, %v1308
  %1312 = vrot.lane.b32.xlu0 %v1310, 32
  %v1313 = vpop.permute.xlu0 %1312
  %v1315 = vadd.f32 %v1305, %v1313
  %v1316 = vtanh.pop %v1315
  %1318 = vrot.lane.b32.xlu0 %v1316, 32
  %v1319 = vpop.permute.xlu0 %1318
  %v1321 = vmul.f32 %v1303, %v1319
  %v1322 = vpack.c.bf16 %v1251, %v1251
  %v1324 = vunpack.c.l.b16 %v1322
  %v1325 = vpack.c.b16 %v1324, %v1324
  %1326 = vrot.lane.b32.xlu0 %v1325, 64
  %v1327 = vpop.permute.xlu0 %1326
  %1329 = vst.msk [vmem:[%s530] sm:$0xf] %vm354, %v1327
  %v1330 = vpack.c.bf16 %v1321, %v1321
  %v1332 = vunpack.c.l.b16 %v1330
  %v1333 = vpack.c.b16 %v1332, %v1332
  %1334 = vrot.lane.b32.xlu0 %v1333, 96
  %v1335 = vpop.permute.xlu0 %1334
  %1337 = vst.msk [vmem:[%s521] sm:$0xf] %vm364, %v1335
  %v1338 = vld [vmem:[%s187] sm:$0xff]
  %v1339 = vld [vmem:[%s183 + $0x8] sm:$0xff]
  %1340 = vrot.lane.b32.xlu0 %v1322, 64
  %v1341 = vpop.permute.xlu0 %1340
  %v1343 = vsel %vm201, %v1341, 0
  %1345 = vmatprep.subr.bf16.mxu0 0
  %1346 = vmatpush1.bf16.msra.mxu0 0
  %1347 = vmatprep.subr.bf16.mxu0 0
  %1348 = vmatpush1.bf16.msra.mxu0 0
  %1349 = vmatprep.subr.bf16.mxu0 0
  %1350 = vmatpush1.bf16.msra.mxu0 0
  %1351 = vmatprep.subr.bf16.mxu0 0
  %1352 = vmatpush1.bf16.msra.mxu0 0
  %1353 = vmatprep.subr.bf16.mxu0 0
  %1354 = vmatpush1.bf16.msra.mxu0 0
  %1355 = vmatprep.subr.bf16.mxu0 0
  %1356 = vmatpush1.bf16.msra.mxu0 0
  %1357 = vmatprep.subr.bf16.mxu0 0
  %1358 = vmatpush1.bf16.msra.mxu0 %v198
  %1359 = vmatprep.subr.bf16.mxu0 0
  %1360 = vmatpush1.bf16.msra.mxu0 %v197
  %1361 = vmatprep.subr.bf16.mxu0 0
  %1362 = vmatpush2.bf16.msra.mxu0 0
  %1363 = vmatprep.subr.bf16.mxu0 0
  %1364 = vmatpush2.bf16.msra.mxu0 0
  %1365 = vmatprep.subr.bf16.mxu0 0
  %1366 = vmatpush2.bf16.msra.mxu0 0
  %1367 = vmatprep.subr.bf16.mxu0 0
  %1368 = vmatpush2.bf16.msra.mxu0 0
  %1369 = vmatprep.subr.bf16.mxu0 0
  %1370 = vmatpush2.bf16.msra.mxu0 0
  %1371 = vmatprep.subr.bf16.mxu0 0
  %1372 = vmatpush2.bf16.msra.mxu0 0
  %1373 = vmatprep.subr.bf16.mxu0 0
  %1374 = vmatpush2.bf16.msra.mxu0 0
  %1375 = vmatprep.subr.bf16.mxu0 0
  %1376 = vmatpush2.bf16.msra.mxu0 0
  %1377 = vmatprep.mubr.bf16.mxu0 0
  %1378 = vmatmul.mubr.bf16.gmra.mxu0 %v1343
  %v1379 = vpop.f32.mrf.mxu0
  %v1380 = vadd.f32 0.0, %v1379
  %v1381 = vpop.f32.mrf.mxu0
  %v1382 = vpop.f32.mrf.mxu0
  %v1383 = vpop.f32.mrf.mxu0
  %1384 = vdwg.mxu0
  %v1385 = vadd.f32 %v1338, %v1380
  %v1386 = vxor.u32 %v1385, 2147483648
  %v1387 = vmul.f32 %v1386, 1.442695
  %v1388 = vpow.pop %v1387
  %v1389 = vadd.f32 %v1388, 1.0
  %v1390 = vrcp.pop %v1389
  %v1391 = vmul.f32 1.0, %v1390
  %v1392 = vtanh.pop %v1385
  %v1393 = vmul.f32 %v1391, %v1245
  %1395 = vrot.lane.b32.xlu0 %v1392, 32
  %v1396 = vpop.permute.xlu0 %1395
  %v1398 = vmul.f32 %v1391, %v1396
  %1400 = vrot.lane.b32.xlu0 %v1398, 32
  %v1401 = vpop.permute.xlu0 %1400
  %v1403 = vadd.f32 %v1393, %v1401
  %v1404 = vtanh.pop %v1403
  %1406 = vrot.lane.b32.xlu0 %v1404, 32
  %v1407 = vpop.permute.xlu0 %1406
  %v1409 = vmul.f32 %v1391, %v1407
  %1410 = vrot.lane.b32.xlu0 %v1330, 64
  %v1411 = vpop.permute.xlu0 %1410
  %v1413 = vsel %vm201, %v1411, 0
  %1415 = vmatprep.subr.bf16.mxu0 0
  %1416 = vmatpush1.bf16.msra.mxu0 0
  %1417 = vmatprep.subr.bf16.mxu0 0
  %1418 = vmatpush1.bf16.msra.mxu0 0
  %1419 = vmatprep.subr.bf16.mxu0 0
  %1420 = vmatpush1.bf16.msra.mxu0 0
  %1421 = vmatprep.subr.bf16.mxu0 0
  %1422 = vmatpush1.bf16.msra.mxu0 0
  %1423 = vmatprep.subr.bf16.mxu0 0
  %1424 = vmatpush1.bf16.msra.mxu0 0
  %1425 = vmatprep.subr.bf16.mxu0 0
  %1426 = vmatpush1.bf16.msra.mxu0 0
  %1427 = vmatprep.subr.bf16.mxu0 0
  %1428 = vmatpush1.bf16.msra.mxu0 %v279
  %1429 = vmatprep.subr.bf16.mxu0 0
  %1430 = vmatpush1.bf16.msra.mxu0 %v278
  %1431 = vmatprep.subr.bf16.mxu0 0
  %1432 = vmatpush2.bf16.msra.mxu0 0
  %1433 = vmatprep.subr.bf16.mxu0 0
  %1434 = vmatpush2.bf16.msra.mxu0 0
  %1435 = vmatprep.subr.bf16.mxu0 0
  %1436 = vmatpush2.bf16.msra.mxu0 0
  %1437 = vmatprep.subr.bf16.mxu0 0
  %1438 = vmatpush2.bf16.msra.mxu0 0
  %1439 = vmatprep.subr.bf16.mxu0 0
  %1440 = vmatpush2.bf16.msra.mxu0 0
  %1441 = vmatprep.subr.bf16.mxu0 0
  %1442 = vmatpush2.bf16.msra.mxu0 0
  %1443 = vmatprep.subr.bf16.mxu0 0
  %1444 = vmatpush2.bf16.msra.mxu0 0
  %1445 = vmatprep.subr.bf16.mxu0 0
  %1446 = vmatpush2.bf16.msra.mxu0 0
  %1447 = vmatprep.mubr.bf16.mxu0 0
  %1448 = vmatmul.mubr.bf16.gmra.mxu0 %v1413
  %v1449 = vpop.f32.mrf.mxu0
  %v1450 = vadd.f32 0.0, %v1449
  %v1451 = vpop.f32.mrf.mxu0
  %v1452 = vpop.f32.mrf.mxu0
  %v1453 = vpop.f32.mrf.mxu0
  %1454 = vdwg.mxu0
  %v1455 = vadd.f32 %v1339, %v1450
  %v1456 = vxor.u32 %v1455, 2147483648
  %v1457 = vmul.f32 %v1456, 1.442695
  %v1458 = vpow.pop %v1457
  %v1459 = vadd.f32 %v1458, 1.0
  %v1460 = vrcp.pop %v1459
  %v1461 = vmul.f32 1.0, %v1460
  %v1462 = vtanh.pop %v1455
  %v1463 = vmul.f32 %v1461, %v1315
  %1465 = vrot.lane.b32.xlu0 %v1462, 32
  %v1466 = vpop.permute.xlu0 %1465
  %v1468 = vmul.f32 %v1461, %v1466
  %1470 = vrot.lane.b32.xlu0 %v1468, 32
  %v1471 = vpop.permute.xlu0 %1470
  %v1473 = vadd.f32 %v1463, %v1471
  %v1474 = vtanh.pop %v1473
  %1476 = vrot.lane.b32.xlu0 %v1474, 32
  %v1477 = vpop.permute.xlu0 %1476
  %v1479 = vmul.f32 %v1461, %v1477
  %v1480 = vpack.c.bf16 %v1409, %v1409
  %v1482 = vunpack.c.l.b16 %v1480
  %v1483 = vpack.c.b16 %v1482, %v1482
  %1484 = vrot.lane.b32.xlu0 %v1483, 64
  %v1485 = vpop.permute.xlu0 %1484
  %1487 = vst.msk [vmem:[%s363] sm:$0xf] %vm354, %v1485
  %v1488 = vpack.c.bf16 %v1479, %v1479
  %v1490 = vunpack.c.l.b16 %v1488
  %v1491 = vpack.c.b16 %v1490, %v1490
  %1492 = vrot.lane.b32.xlu0 %v1491, 96
  %v1493 = vpop.permute.xlu0 %1492
  %1495 = vst.msk [vmem:[%s4] sm:$0xf] %vm364, %v1493
  // Predicated region
  $region18: #{rnn_forward.2} parent=0 // pred_check
    _
  $region19: #{rnn_forward.2} parent=0 // pred_check_branch
    %1497 = sbr.rel (0) target = $region21
  $region20: #{rnn_forward.2} parent=0 // pred_region
    _
  $region21: #{rnn_forward.2} parent=0 // pred_fallthru
    _
  // Predicated region
  $region22: #{rnn_forward.2} parent=0 // pred_check
    _
  $region23: #{rnn_forward.2} parent=0 // pred_check_branch
    %1499 = sbr.rel (0) target = $region25
  $region24: #{rnn_forward.2} parent=0 // pred_region
    _
  $region25: #{rnn_forward.2} parent=0 // pred_fallthru
    _

</llo_original>
